<compile_context>
chip_gen: v6e
topology: v6e:2x2x1
jax: 0.10.0
libtpu: 0.0.40
codegen_flags: <defaults>
</compile_context>

<pallas_src>
import jax
import jax.numpy as jnp
from jax import lax
from jax.experimental import pallas as pl
from jax.experimental.pallas import tpu as pltpu

# ---------------- tiny T5 config ----------------
VOCAB = 64
VOCAB_PAD = 128          # lane-dense padded vocab for the LM head / embedding table
D_MODEL = 32
D_KV = 8
N_HEADS = 4
D_FF = 64
N_LAYERS = 1
REL_BUCKETS = 8
REL_MAX_DIST = 16
EPS = 1e-6
INNER = N_HEADS * D_KV
NEG = -1e9


def _vmem():
    return pl.BlockSpec(memory_space=pltpu.MemorySpace.VMEM)


# ---------------- in-kernel helpers (operate on VMEM-resident values) ----------------
def _rmsnorm(x, w):
    # T5 RMSNorm: no mean subtraction.  x: (R, D) f32, w: (1, D) f32
    var = jnp.mean(x * x, axis=-1, keepdims=True)
    return x * lax.rsqrt(var + EPS) * w


def _softmax(s):
    # exact reciprocal for parity with the PyTorch reference (review note)
    m = jnp.max(s, axis=-1, keepdims=True)
    p = jnp.exp(s - m)
    return p * pl.reciprocal(jnp.sum(p, axis=-1, keepdims=True), approx=False)


def _batched_attention_ctx(q, k, v, rel, key_bias, batch, seq):
    """Per-example, per-head scores/softmax/ctx; everything else stays batched.

    q, k, v: (B*S, INNER) f32.  rel: (H, Sq, Sk) f32 or None (causal already
    folded in for the decoder).  key_bias: (B, Sk) additive f32 bias or None.
    Returns ctx: (B*S, INNER) f32 — caller does ONE batched output projection.
    No per-example or per-head output-projection matmuls (review change).
    """
    qb = q.astype(jnp.bfloat16)
    kb = k.astype(jnp.bfloat16)
    vb = v.astype(jnp.bfloat16)
    ctx_rows = []
    for bi in range(batch):                       # static unroll (tiny B)
        r = slice(bi * seq, (bi + 1) * seq)
        ctx_heads = []
        for h in range(N_HEADS):
            lo, hi = h * D_KV, (h + 1) * D_KV
            s = lax.dot_general(qb[r, lo:hi], kb[r, lo:hi],
                                (((1,), (1,)), ((), ())),
                                preferred_element_type=jnp.float32)      # (S, S)
            if rel is not None:
                s = s + rel[h]
            if key_bias is not None:
                s = s + key_bias[bi:bi + 1, :]
            p = _softmax(s).astype(jnp.bfloat16)
            ctx_heads.append(jnp.dot(p, vb[r, lo:hi],
                                     preferred_element_type=jnp.float32))  # (S, dkv)
        ctx_rows.append(jnp.concatenate(ctx_heads, axis=-1))               # (S, INNER)
    return jnp.concatenate(ctx_rows, axis=0)                               # (B*S, INNER)


# ---------------- the single fused kernel ----------------
def _fused_t5_kernel(ids_ref, mask_ref, rel_ref, shared_ref,
                     w96_ref, w64_ref, w32_ref, norms_ref, logits_ref):
    batch, seq = mask_ref.shape
    rows = batch * seq
    bf16 = jnp.bfloat16

    shared = shared_ref[...]                                    # (VOCAB_PAD, D) bf16
    key_bias = (1.0 - mask_ref[...]) * NEG                      # (B, S) f32
    enc_rel = rel_ref[0:N_HEADS]                                # (H, S, S) f32
    dec_rel = rel_ref[N_HEADS:2 * N_HEADS]                      # (H, S, S) f32, causal folded

    # ---- gather-free embedding: ONE one-hot @ table matmul for enc + dec ids ----
    ids = ids_ref[...]                                          # (2*B*S, 1) int32
    iota = lax.broadcasted_iota(jnp.int32, (2 * rows, VOCAB_PAD), 1)
    onehot = jnp.where(ids == iota, 1.0, 0.0).astype(bf16)      # (2*B*S, 128)
    emb = jnp.dot(onehot, shared, preferred_element_type=jnp.float32)  # (2*B*S, D) f32
    x = emb[:rows]                                              # encoder hidden (B*S, D)
    y = emb[rows:]                                              # decoder hidden (B*S, D)

    # -------- encoder (batched over B*S) --------
    for l in range(N_LAYERS):
        e_ln1 = norms_ref[l * 5 + 0: l * 5 + 1, :]
        e_ln2 = norms_ref[l * 5 + 1: l * 5 + 2, :]
        e_wqkv = w96_ref[l * 64: l * 64 + 32, :]                # (D, 3*INNER) bf16
        e_wi = w64_ref[l * 96: l * 96 + 32, :]                  # (D, FF) bf16
        b32 = l * 256
        e_wo = w32_ref[b32: b32 + 32, :]                        # (INNER, D) bf16
        e_wf = w32_ref[b32 + 32: b32 + 96, :]                   # (FF, D) bf16

        h = _rmsnorm(x, e_ln1)
        qkv = jnp.dot(h.astype(bf16), e_wqkv, preferred_element_type=jnp.float32)
        q, k, v = qkv[:, :INNER], qkv[:, INNER:2 * INNER], qkv[:, 2 * INNER:]
        ctx = _batched_attention_ctx(q, k, v, enc_rel, key_bias, batch, seq)
        x = x + jnp.dot(ctx.astype(bf16), e_wo, preferred_element_type=jnp.float32)

        h = _rmsnorm(x, e_ln2)
        hh = jnp.maximum(
            jnp.dot(h.astype(bf16), e_wi, preferred_element_type=jnp.float32), 0.0)
        x = x + jnp.dot(hh.astype(bf16), e_wf, preferred_element_type=jnp.float32)
    enc_h = _rmsnorm(x, norms_ref[5 * N_LAYERS: 5 * N_LAYERS + 1, :])      # (B*S, D)
    enc_h_b = enc_h.astype(bf16)

    # -------- decoder (batched over B*S) --------
    for l in range(N_LAYERS):
        d_ln1 = norms_ref[l * 5 + 2: l * 5 + 3, :]
        d_ln2 = norms_ref[l * 5 + 3: l * 5 + 4, :]
        d_ln3 = norms_ref[l * 5 + 4: l * 5 + 5, :]
        d_wqkv = w96_ref[l * 64 + 32: l * 64 + 64, :]           # (D, 3*INNER)
        d_wi = w64_ref[l * 96 + 32: l * 96 + 64, :]             # (D, FF)
        d_wkv = w64_ref[l * 96 + 64: l * 96 + 96, :]            # (D, 2*INNER)
        b32 = l * 256
        d_wo = w32_ref[b32 + 96: b32 + 128, :]                  # (INNER, D)
        d_wq = w32_ref[b32 + 128: b32 + 160, :]                 # (D, INNER)
        d_cwo = w32_ref[b32 + 160: b32 + 192, :]                # (INNER, D)
        d_wf = w32_ref[b32 + 192: b32 + 256, :]                 # (FF, D)

        # self attention (causal mask folded into dec_rel, no padding mask)
        h = _rmsnorm(y, d_ln1)
        qkv = jnp.dot(h.astype(bf16), d_wqkv, preferred_element_type=jnp.float32)
        q, k, v = qkv[:, :INNER], qkv[:, INNER:2 * INNER], qkv[:, 2 * INNER:]
        ctx = _batched_attention_ctx(q, k, v, dec_rel, None, batch, seq)
        y = y + jnp.dot(ctx.astype(bf16), d_wo, preferred_element_type=jnp.float32)

        # cross attention (no relative bias, encoder padding mask on keys)
        h = _rmsnorm(y, d_ln2)
        qc = jnp.dot(h.astype(bf16), d_wq, preferred_element_type=jnp.float32)
        kvc = jnp.dot(enc_h_b, d_wkv, preferred_element_type=jnp.float32)
        kc, vc = kvc[:, :INNER], kvc[:, INNER:]
        ctx = _batched_attention_ctx(qc, kc, vc, None, key_bias, batch, seq)
        y = y + jnp.dot(ctx.astype(bf16), d_cwo, preferred_element_type=jnp.float32)

        # feed-forward (ReLU)
        h = _rmsnorm(y, d_ln3)
        hh = jnp.maximum(
            jnp.dot(h.astype(bf16), d_wi, preferred_element_type=jnp.float32), 0.0)
        y = y + jnp.dot(hh.astype(bf16), d_wf, preferred_element_type=jnp.float32)
    dec_h = _rmsnorm(y, norms_ref[5 * N_LAYERS + 1: 5 * N_LAYERS + 2, :])

    # -------- tied LM head: scale, contract last dims against the padded table.
    # Output is a lane-dense (B*S, 128) slab -> unmasked vector stores.
    scaled = (dec_h * (D_MODEL ** -0.5)).astype(bf16)
    logits_ref[...] = lax.dot_general(
        scaled, shared, (((1,), (1,)), ((), ())),
        preferred_element_type=jnp.float32)


# ---------------- JAX glue: T5 relative position bias (tiny, wrapper-side) ----------------
def _relative_position_bucket(relative_position, bidirectional, num_buckets, max_distance):
    relative_buckets = jnp.zeros_like(relative_position)
    if bidirectional:
        num_buckets = num_buckets // 2
        relative_buckets = relative_buckets + (relative_position > 0).astype(jnp.int32) * num_buckets
        relative_position = jnp.abs(relative_position)
    else:
        relative_position = -jnp.minimum(relative_position, 0)
    max_exact = num_buckets // 2
    is_small = relative_position < max_exact
    rp_f = jnp.maximum(relative_position.astype(jnp.float32), 1.0)
    rp_if_large = max_exact + (
        jnp.log(rp_f / max_exact) / jnp.log(max_distance / max_exact) * (num_buckets - max_exact)
    ).astype(jnp.int32)
    rp_if_large = jnp.minimum(rp_if_large, num_buckets - 1)
    relative_buckets = relative_buckets + jnp.where(is_small, relative_position, rp_if_large)
    return relative_buckets


def compute_position_bias(q_len, k_len, bidirectional, table):
    # (H, q, k), NOT broadcast over batch (mask is added in-kernel).
    ctx = jnp.arange(q_len, dtype=jnp.int32)[:, None]
    mem = jnp.arange(k_len, dtype=jnp.int32)[None, :]
    rel = mem - ctx
    buckets = _relative_position_bucket(rel, bidirectional, REL_BUCKETS, REL_MAX_DIST)
    values = table[buckets]                      # (q, k, H)
    return jnp.transpose(values, (2, 0, 1))      # (H, q, k)


def shift_right(input_ids):
    # decoder_start_token_id = 0 (pad), as in T5
    b = input_ids.shape[0]
    start = jnp.zeros((b, 1), dtype=input_ids.dtype)
    return jnp.concatenate([start, input_ids[:, :-1]], axis=1)


def _pack_weights(params):
    """Pack per-tensor params into a few bf16 slabs (cuts ~24 DMAs to 8)."""
    w96, w64, w32, norms = [], [], [], []
    for l in range(N_LAYERS):
        w96 += [params["e_wqkv"][l], params["d_wqkv"][l]]                      # (32, 96) each
        w64 += [params["e_wi"][l], params["d_wi"][l], params["d_wkv"][l]]      # (32, 64) each
        w32 += [params["e_wo"][l], params["e_wf"][l], params["d_wo"][l],
                params["d_wq"][l], params["d_cwo"][l], params["d_wf"][l]]      # (*, 32)
        norms += [params["e_ln1"][l], params["e_ln2"][l], params["d_ln1"][l],
                  params["d_ln2"][l], params["d_ln3"][l]]                      # (1, 32) each
    norms += [params["enc_final_ln"], params["dec_final_ln"]]
    shared_pad = jnp.zeros((VOCAB_PAD, D_MODEL), jnp.float32).at[:VOCAB, :].set(params["shared"])
    return (jnp.concatenate(w96, axis=0).astype(jnp.bfloat16),   # (L*64, 96)
            jnp.concatenate(w64, axis=0).astype(jnp.bfloat16),   # (L*96, 64)
            jnp.concatenate(w32, axis=0).astype(jnp.bfloat16),   # (L*256, 32)
            jnp.concatenate(norms, axis=0),                       # (5L+2, 32) f32
            shared_pad.astype(jnp.bfloat16))                      # (128, 32)


# ---------------- forward: one pallas_call for the whole model ----------------
def scoring_model_forward(params, input_ids, attention_mask):
    """Equivalent of ScoringModel.forward -> logits (B, S, VOCAB), float32."""
    b, s = input_ids.shape
    dec_input_ids = shift_right(input_ids)
    mask_f = attention_mask.astype(jnp.float32)                                  # (B, S)
    enc_rel = compute_position_bias(s, s, True, params["enc_rel_bias"])          # (H, S, S)
    causal = jnp.where(jnp.arange(s)[None, :] <= jnp.arange(s)[:, None], 0.0, NEG)
    dec_rel = compute_position_bias(s, s, False, params["dec_rel_bias"]) + causal[None]
    rel = jnp.concatenate([enc_rel, dec_rel], axis=0)                            # (2H, S, S)
    ids_all = jnp.concatenate(
        [input_ids.reshape(b * s, 1), dec_input_ids.reshape(b * s, 1)],
        axis=0).astype(jnp.int32)                                                # (2*B*S, 1)

    w96, w64, w32, norms, shared_pad = _pack_weights(params)

    logits_pad = pl.pallas_call(
        _fused_t5_kernel,
        out_shape=jax.ShapeDtypeStruct((b * s, VOCAB_PAD), jnp.float32),
        in_specs=[_vmem()] * 8,
        out_specs=_vmem(),
    )(ids_all, mask_f, rel, shared_pad, w96, w64, w32, norms)

    return logits_pad[:, :VOCAB].reshape(b, s, VOCAB)


# ---------------- deterministic parameter init (fused QKV layout) ----------------
def init_params(key):
    keys = iter(jax.random.split(key, 64))

    def normal(shape, scale=0.02):
        return scale * jax.random.normal(next(keys), shape, jnp.float32)

    def ones(shape):
        return jnp.ones(shape, jnp.float32)

    L = N_LAYERS
    return {
        "shared": normal((VOCAB, D_MODEL)),
        "enc_rel_bias": normal((REL_BUCKETS, N_HEADS)),
        "dec_rel_bias": normal((REL_BUCKETS, N_HEADS)),
        # encoder (stacked over layers)
        "e_ln1": ones((L, 1, D_MODEL)),
        "e_wqkv": normal((L, D_MODEL, 3 * INNER)),
        "e_wo": normal((L, INNER, D_MODEL)),
        "e_ln2": ones((L, 1, D_MODEL)),
        "e_wi": normal((L, D_MODEL, D_FF)),
        "e_wf": normal((L, D_FF, D_MODEL)),
        "enc_final_ln": ones((1, D_MODEL)),
        # decoder (stacked over layers)
        "d_ln1": ones((L, 1, D_MODEL)),
        "d_wqkv": normal((L, D_MODEL, 3 * INNER)),
        "d_wo": normal((L, INNER, D_MODEL)),
        "d_ln2": ones((L, 1, D_MODEL)),
        "d_wq": normal((L, D_MODEL, INNER)),
        "d_wkv": normal((L, D_MODEL, 2 * INNER)),
        "d_cwo": normal((L, INNER, D_MODEL)),
        "d_ln3": ones((L, 1, D_MODEL)),
        "d_wi": normal((L, D_MODEL, D_FF)),
        "d_wf": normal((L, D_FF, D_MODEL)),
        "dec_final_ln": ones((1, D_MODEL)),
    }


# ---------------- main ----------------
if __name__ == "__main__":
    key = jax.random.PRNGKey(0)
    k_param, k_ids = jax.random.split(key)

    params = init_params(k_param)

    B, S = 2, 8
    input_ids = jax.random.randint(k_ids, (B, S), 1, VOCAB, dtype=jnp.int32)
    attention_mask = jnp.ones((B, S), dtype=jnp.int32)
    attention_mask = attention_mask.at[1, -2:].set(0)  # pad last 2 tokens of example 1

    fwd = jax.jit(scoring_model_forward)
    logits = fwd(params, input_ids, attention_mask)
    jax.block_until_ready(logits)

    assert logits.shape == (B, S, VOCAB), logits.shape
    assert logits.dtype == jnp.float32
    assert bool(jnp.all(jnp.isfinite(logits)))
    print("KERNEL_OK")
</pallas_src>

<mosaic_0001>
module attributes {stable_mosaic.version = 11 : i64} {
  func.func @_fused_t5_kernel(%arg0: memref<32x1xi32, #tpu.memory_space<vmem>>, %arg1: memref<2x8xf32, #tpu.memory_space<vmem>>, %arg2: memref<8x8x8xf32, #tpu.memory_space<vmem>>, %arg3: memref<128x32xbf16, #tpu.memory_space<vmem>>, %arg4: memref<64x96xbf16, #tpu.memory_space<vmem>>, %arg5: memref<96x64xbf16, #tpu.memory_space<vmem>>, %arg6: memref<256x32xbf16, #tpu.memory_space<vmem>>, %arg7: memref<7x32xf32, #tpu.memory_space<vmem>>, %arg8: memref<16x128xf32, #tpu.memory_space<vmem>>) attributes {dimension_semantics = [], scalar_prefetch = 0 : i64, scratch_operands = 0 : i64, tpu.core_type = #tpu.core_type<tc>} {
    %c0 = arith.constant 0 : index
    %c0_0 = arith.constant 0 : index
    %0 = vector.load %arg3[%c0, %c0_0] : memref<128x32xbf16, #tpu.memory_space<vmem>>, vector<128x32xbf16>
    %c0_1 = arith.constant 0 : index
    %c0_2 = arith.constant 0 : index
    %1 = vector.load %arg1[%c0_1, %c0_2] : memref<2x8xf32, #tpu.memory_space<vmem>>, vector<2x8xf32>
    %cst = arith.constant 1.000000e+00 : f32
    %2 = vector.broadcast %cst : f32 to vector<2x8xf32>
    %3 = arith.subf %2, %1 : vector<2x8xf32>
    %cst_3 = arith.constant -1.000000e+09 : f32
    %4 = vector.broadcast %cst_3 : f32 to vector<2x8xf32>
    %5 = arith.mulf %3, %4 : vector<2x8xf32>
    %c0_4 = arith.constant 0 : index
    %c0_5 = arith.constant 0 : index
    %c0_6 = arith.constant 0 : index
    %6 = vector.load %arg2[%c0_4, %c0_5, %c0_6] : memref<8x8x8xf32, #tpu.memory_space<vmem>>, vector<4x8x8xf32>
    %c4 = arith.constant 4 : index
    %c0_7 = arith.constant 0 : index
    %c0_8 = arith.constant 0 : index
    %7 = vector.load %arg2[%c4, %c0_7, %c0_8] : memref<8x8x8xf32, #tpu.memory_space<vmem>>, vector<4x8x8xf32>
    %c0_9 = arith.constant 0 : index
    %c0_10 = arith.constant 0 : index
    %8 = vector.load %arg0[%c0_9, %c0_10] : memref<32x1xi32, #tpu.memory_space<vmem>>, vector<32x1xi32>
    %9 = tpu.iota {dimensions = array<i32: 1>} : vector<32x128xi32>
    %10 = vector.broadcast %8 : vector<32x1xi32> to vector<32x128xi32>
    %11 = arith.cmpi eq, %10, %9 : vector<32x128xi32>
    %cst_11 = arith.constant 1.000000e+00 : f32
    %cst_12 = arith.constant 0.000000e+00 : f32
    %12 = vector.broadcast %cst_11 : f32 to vector<32x128xf32>
    %13 = vector.broadcast %cst_12 : f32 to vector<32x128xf32>
    %14 = arith.select %11, %12, %13 : vector<32x128xi1>, vector<32x128xf32>
    %15 = arith.truncf %14 : vector<32x128xf32> to vector<32x128xbf16>
    %cst_13 = arith.constant dense<0.000000e+00> : vector<32x32xf32>
    %16 = tpu.matmul %15, %0, %cst_13 {dimension_numbers = #tpu.dot_dimension_numbers<[1], [0], [0], [1], [0, 0, 1, 1], [], []>} : vector<32x128xbf16>, vector<128x32xbf16>, vector<32x32xf32> -> vector<32x32xf32>
    %17 = vector.extract_strided_slice %16 {offsets = [0, 0], sizes = [16, 32], strides = [1, 1]} : vector<32x32xf32> to vector<16x32xf32>
    %18 = vector.extract_strided_slice %16 {offsets = [16, 0], sizes = [16, 32], strides = [1, 1]} : vector<32x32xf32> to vector<16x32xf32>
    %c0_14 = arith.constant 0 : index
    %c0_15 = arith.constant 0 : index
    %19 = vector.load %arg7[%c0_14, %c0_15] : memref<7x32xf32, #tpu.memory_space<vmem>>, vector<1x32xf32>
    %c1 = arith.constant 1 : index
    %c0_16 = arith.constant 0 : index
    %20 = vector.load %arg7[%c1, %c0_16] : memref<7x32xf32, #tpu.memory_space<vmem>>, vector<1x32xf32>
    %c0_17 = arith.constant 0 : index
    %c0_18 = arith.constant 0 : index
    %21 = vector.load %arg4[%c0_17, %c0_18] : memref<64x96xbf16, #tpu.memory_space<vmem>>, vector<32x96xbf16>
    %c0_19 = arith.constant 0 : index
    %c0_20 = arith.constant 0 : index
    %22 = vector.load %arg5[%c0_19, %c0_20] : memref<96x64xbf16, #tpu.memory_space<vmem>>, vector<32x64xbf16>
    %c0_21 = arith.constant 0 : index
    %c0_22 = arith.constant 0 : index
    %23 = vector.load %arg6[%c0_21, %c0_22] : memref<256x32xbf16, #tpu.memory_space<vmem>>, vector<32x32xbf16>
    %c32 = arith.constant 32 : index
    %c0_23 = arith.constant 0 : index
    %24 = vector.load %arg6[%c32, %c0_23] : memref<256x32xbf16, #tpu.memory_space<vmem>>, vector<64x32xbf16>
    %25 = arith.mulf %17, %17 : vector<16x32xf32>
    %cst_24 = arith.constant dense<0.000000e+00> : vector<16xf32>
    %26 = vector.multi_reduction <add>, %25, %cst_24 [1] : vector<16x32xf32> to vector<16xf32>
    %27 = vector.shape_cast %26 : vector<16xf32> to vector<16x1xf32>
    %cst_25 = arith.constant 3.200000e+01 : f32
    %28 = vector.broadcast %cst_25 : f32 to vector<16x1xf32>
    %29 = arith.divf %27, %28 : vector<16x1xf32>
    %cst_26 = arith.constant 9.99999997E-7 : f32
    %30 = vector.broadcast %cst_26 : f32 to vector<16x1xf32>
    %31 = arith.addf %29, %30 : vector<16x1xf32>
    %32 = math.rsqrt %31 : vector<16x1xf32>
    %33 = vector.broadcast %32 : vector<16x1xf32> to vector<16x32xf32>
    %34 = arith.mulf %17, %33 : vector<16x32xf32>
    %35 = vector.broadcast %19 : vector<1x32xf32> to vector<16x32xf32>
    %36 = arith.mulf %34, %35 : vector<16x32xf32>
    %37 = arith.truncf %36 : vector<16x32xf32> to vector<16x32xbf16>
    %cst_27 = arith.constant dense<0.000000e+00> : vector<16x96xf32>
    %38 = tpu.matmul %37, %21, %cst_27 {dimension_numbers = #tpu.dot_dimension_numbers<[1], [0], [0], [1], [0, 0, 1, 1], [], []>} : vector<16x32xbf16>, vector<32x96xbf16>, vector<16x96xf32> -> vector<16x96xf32>
    %39 = vector.extract_strided_slice %38 {offsets = [0, 0], sizes = [16, 32], strides = [1, 1]} : vector<16x96xf32> to vector<16x32xf32>
    %40 = vector.extract_strided_slice %38 {offsets = [0, 32], sizes = [16, 32], strides = [1, 1]} : vector<16x96xf32> to vector<16x32xf32>
    %41 = vector.extract_strided_slice %38 {offsets = [0, 64], sizes = [16, 32], strides = [1, 1]} : vector<16x96xf32> to vector<16x32xf32>
    %42 = arith.truncf %39 : vector<16x32xf32> to vector<16x32xbf16>
    %43 = arith.truncf %40 : vector<16x32xf32> to vector<16x32xbf16>
    %44 = arith.truncf %41 : vector<16x32xf32> to vector<16x32xbf16>
    %45 = vector.extract_strided_slice %42 {offsets = [0, 0], sizes = [8, 8], strides = [1, 1]} : vector<16x32xbf16> to vector<8x8xbf16>
    %46 = vector.extract_strided_slice %43 {offsets = [0, 0], sizes = [8, 8], strides = [1, 1]} : vector<16x32xbf16> to vector<8x8xbf16>
    %cst_28 = arith.constant dense<0.000000e+00> : vector<8x8xf32>
    %47 = tpu.matmul %45, %46, %cst_28 {dimension_numbers = #tpu.dot_dimension_numbers<[1], [1], [0], [0], [0, 0, 1, 0], [], []>} : vector<8x8xbf16>, vector<8x8xbf16>, vector<8x8xf32> -> vector<8x8xf32>
    %48 = vector.extract_strided_slice %6 {offsets = [0, 0, 0], sizes = [1, 8, 8], strides = [1, 1, 1]} : vector<4x8x8xf32> to vector<1x8x8xf32>
    %49 = vector.shape_cast %48 : vector<1x8x8xf32> to vector<8x8xf32>
    %50 = arith.addf %47, %49 : vector<8x8xf32>
    %51 = vector.extract_strided_slice %5 {offsets = [0, 0], sizes = [1, 8], strides = [1, 1]} : vector<2x8xf32> to vector<1x8xf32>
    %52 = vector.broadcast %51 : vector<1x8xf32> to vector<8x8xf32>
    %53 = arith.addf %50, %52 : vector<8x8xf32>
    %cst_29 = arith.constant dense<0xFF800000> : vector<8xf32>
    %54 = vector.multi_reduction <maximumf>, %53, %cst_29 [1] : vector<8x8xf32> to vector<8xf32>
    %55 = vector.shape_cast %54 : vector<8xf32> to vector<8x1xf32>
    %56 = vector.broadcast %55 : vector<8x1xf32> to vector<8x8xf32>
    %57 = arith.subf %53, %56 : vector<8x8xf32>
    %58 = math.exp %57 : vector<8x8xf32>
    %cst_30 = arith.constant dense<0.000000e+00> : vector<8xf32>
    %59 = vector.multi_reduction <add>, %58, %cst_30 [1] : vector<8x8xf32> to vector<8xf32>
    %60 = vector.shape_cast %59 : vector<8xf32> to vector<8x1xf32>
    %61 = tpu.reciprocal %60 : vector<8x1xf32> -> vector<8x1xf32>
    %62 = vector.broadcast %61 : vector<8x1xf32> to vector<8x8xf32>
    %63 = arith.mulf %58, %62 : vector<8x8xf32>
    %64 = arith.truncf %63 : vector<8x8xf32> to vector<8x8xbf16>
    %65 = vector.extract_strided_slice %44 {offsets = [0, 0], sizes = [8, 8], strides = [1, 1]} : vector<16x32xbf16> to vector<8x8xbf16>
    %cst_31 = arith.constant dense<0.000000e+00> : vector<8x8xf32>
    %66 = tpu.matmul %64, %65, %cst_31 {dimension_numbers = #tpu.dot_dimension_numbers<[1], [0], [0], [1], [0, 0, 1, 1], [], []>} : vector<8x8xbf16>, vector<8x8xbf16>, vector<8x8xf32> -> vector<8x8xf32>
    %67 = vector.extract_strided_slice %42 {offsets = [0, 8], sizes = [8, 8], strides = [1, 1]} : vector<16x32xbf16> to vector<8x8xbf16>
    %68 = vector.extract_strided_slice %43 {offsets = [0, 8], sizes = [8, 8], strides = [1, 1]} : vector<16x32xbf16> to vector<8x8xbf16>
    %cst_32 = arith.constant dense<0.000000e+00> : vector<8x8xf32>
    %69 = tpu.matmul %67, %68, %cst_32 {dimension_numbers = #tpu.dot_dimension_numbers<[1], [1], [0], [0], [0, 0, 1, 0], [], []>} : vector<8x8xbf16>, vector<8x8xbf16>, vector<8x8xf32> -> vector<8x8xf32>
    %70 = vector.extract_strided_slice %6 {offsets = [1, 0, 0], sizes = [1, 8, 8], strides = [1, 1, 1]} : vector<4x8x8xf32> to vector<1x8x8xf32>
    %71 = vector.shape_cast %70 : vector<1x8x8xf32> to vector<8x8xf32>
    %72 = arith.addf %69, %71 : vector<8x8xf32>
    %73 = vector.extract_strided_slice %5 {offsets = [0, 0], sizes = [1, 8], strides = [1, 1]} : vector<2x8xf32> to vector<1x8xf32>
    %74 = vector.broadcast %73 : vector<1x8xf32> to vector<8x8xf32>
    %75 = arith.addf %72, %74 : vector<8x8xf32>
    %cst_33 = arith.constant dense<0xFF800000> : vector<8xf32>
    %76 = vector.multi_reduction <maximumf>, %75, %cst_33 [1] : vector<8x8xf32> to vector<8xf32>
    %77 = vector.shape_cast %76 : vector<8xf32> to vector<8x1xf32>
    %78 = vector.broadcast %77 : vector<8x1xf32> to vector<8x8xf32>
    %79 = arith.subf %75, %78 : vector<8x8xf32>
    %80 = math.exp %79 : vector<8x8xf32>
    %cst_34 = arith.constant dense<0.000000e+00> : vector<8xf32>
    %81 = vector.multi_reduction <add>, %80, %cst_34 [1] : vector<8x8xf32> to vector<8xf32>
    %82 = vector.shape_cast %81 : vector<8xf32> to vector<8x1xf32>
    %83 = tpu.reciprocal %82 : vector<8x1xf32> -> vector<8x1xf32>
    %84 = vector.broadcast %83 : vector<8x1xf32> to vector<8x8xf32>
    %85 = arith.mulf %80, %84 : vector<8x8xf32>
    %86 = arith.truncf %85 : vector<8x8xf32> to vector<8x8xbf16>
    %87 = vector.extract_strided_slice %44 {offsets = [0, 8], sizes = [8, 8], strides = [1, 1]} : vector<16x32xbf16> to vector<8x8xbf16>
    %cst_35 = arith.constant dense<0.000000e+00> : vector<8x8xf32>
    %88 = tpu.matmul %86, %87, %cst_35 {dimension_numbers = #tpu.dot_dimension_numbers<[1], [0], [0], [1], [0, 0, 1, 1], [], []>} : vector<8x8xbf16>, vector<8x8xbf16>, vector<8x8xf32> -> vector<8x8xf32>
    %89 = vector.extract_strided_slice %42 {offsets = [0, 16], sizes = [8, 8], strides = [1, 1]} : vector<16x32xbf16> to vector<8x8xbf16>
    %90 = vector.extract_strided_slice %43 {offsets = [0, 16], sizes = [8, 8], strides = [1, 1]} : vector<16x32xbf16> to vector<8x8xbf16>
    %cst_36 = arith.constant dense<0.000000e+00> : vector<8x8xf32>
    %91 = tpu.matmul %89, %90, %cst_36 {dimension_numbers = #tpu.dot_dimension_numbers<[1], [1], [0], [0], [0, 0, 1, 0], [], []>} : vector<8x8xbf16>, vector<8x8xbf16>, vector<8x8xf32> -> vector<8x8xf32>
    %92 = vector.extract_strided_slice %6 {offsets = [2, 0, 0], sizes = [1, 8, 8], strides = [1, 1, 1]} : vector<4x8x8xf32> to vector<1x8x8xf32>
    %93 = vector.shape_cast %92 : vector<1x8x8xf32> to vector<8x8xf32>
    %94 = arith.addf %91, %93 : vector<8x8xf32>
    %95 = vector.extract_strided_slice %5 {offsets = [0, 0], sizes = [1, 8], strides = [1, 1]} : vector<2x8xf32> to vector<1x8xf32>
    %96 = vector.broadcast %95 : vector<1x8xf32> to vector<8x8xf32>
    %97 = arith.addf %94, %96 : vector<8x8xf32>
    %cst_37 = arith.constant dense<0xFF800000> : vector<8xf32>
    %98 = vector.multi_reduction <maximumf>, %97, %cst_37 [1] : vector<8x8xf32> to vector<8xf32>
    %99 = vector.shape_cast %98 : vector<8xf32> to vector<8x1xf32>
    %100 = vector.broadcast %99 : vector<8x1xf32> to vector<8x8xf32>
    %101 = arith.subf %97, %100 : vector<8x8xf32>
    %102 = math.exp %101 : vector<8x8xf32>
    %cst_38 = arith.constant dense<0.000000e+00> : vector<8xf32>
    %103 = vector.multi_reduction <add>, %102, %cst_38 [1] : vector<8x8xf32> to vector<8xf32>
    %104 = vector.shape_cast %103 : vector<8xf32> to vector<8x1xf32>
    %105 = tpu.reciprocal %104 : vector<8x1xf32> -> vector<8x1xf32>
    %106 = vector.broadcast %105 : vector<8x1xf32> to vector<8x8xf32>
    %107 = arith.mulf %102, %106 : vector<8x8xf32>
    %108 = arith.truncf %107 : vector<8x8xf32> to vector<8x8xbf16>
    %109 = vector.extract_strided_slice %44 {offsets = [0, 16], sizes = [8, 8], strides = [1, 1]} : vector<16x32xbf16> to vector<8x8xbf16>
    %cst_39 = arith.constant dense<0.000000e+00> : vector<8x8xf32>
    %110 = tpu.matmul %108, %109, %cst_39 {dimension_numbers = #tpu.dot_dimension_numbers<[1], [0], [0], [1], [0, 0, 1, 1], [], []>} : vector<8x8xbf16>, vector<8x8xbf16>, vector<8x8xf32> -> vector<8x8xf32>
    %111 = vector.extract_strided_slice %42 {offsets = [0, 24], sizes = [8, 8], strides = [1, 1]} : vector<16x32xbf16> to vector<8x8xbf16>
    %112 = vector.extract_strided_slice %43 {offsets = [0, 24], sizes = [8, 8], strides = [1, 1]} : vector<16x32xbf16> to vector<8x8xbf16>
    %cst_40 = arith.constant dense<0.000000e+00> : vector<8x8xf32>
    %113 = tpu.matmul %111, %112, %cst_40 {dimension_numbers = #tpu.dot_dimension_numbers<[1], [1], [0], [0], [0, 0, 1, 0], [], []>} : vector<8x8xbf16>, vector<8x8xbf16>, vector<8x8xf32> -> vector<8x8xf32>
    %114 = vector.extract_strided_slice %6 {offsets = [3, 0, 0], sizes = [1, 8, 8], strides = [1, 1, 1]} : vector<4x8x8xf32> to vector<1x8x8xf32>
    %115 = vector.shape_cast %114 : vector<1x8x8xf32> to vector<8x8xf32>
    %116 = arith.addf %113, %115 : vector<8x8xf32>
    %117 = vector.extract_strided_slice %5 {offsets = [0, 0], sizes = [1, 8], strides = [1, 1]} : vector<2x8xf32> to vector<1x8xf32>
    %118 = vector.broadcast %117 : vector<1x8xf32> to vector<8x8xf32>
    %119 = arith.addf %116, %118 : vector<8x8xf32>
    %cst_41 = arith.constant dense<0xFF800000> : vector<8xf32>
    %120 = vector.multi_reduction <maximumf>, %119, %cst_41 [1] : vector<8x8xf32> to vector<8xf32>
    %121 = vector.shape_cast %120 : vector<8xf32> to vector<8x1xf32>
    %122 = vector.broadcast %121 : vector<8x1xf32> to vector<8x8xf32>
    %123 = arith.subf %119, %122 : vector<8x8xf32>
    %124 = math.exp %123 : vector<8x8xf32>
    %cst_42 = arith.constant dense<0.000000e+00> : vector<8xf32>
    %125 = vector.multi_reduction <add>, %124, %cst_42 [1] : vector<8x8xf32> to vector<8xf32>
    %126 = vector.shape_cast %125 : vector<8xf32> to vector<8x1xf32>
    %127 = tpu.reciprocal %126 : vector<8x1xf32> -> vector<8x1xf32>
    %128 = vector.broadcast %127 : vector<8x1xf32> to vector<8x8xf32>
    %129 = arith.mulf %124, %128 : vector<8x8xf32>
    %130 = arith.truncf %129 : vector<8x8xf32> to vector<8x8xbf16>
    %131 = vector.extract_strided_slice %44 {offsets = [0, 24], sizes = [8, 8], strides = [1, 1]} : vector<16x32xbf16> to vector<8x8xbf16>
    %cst_43 = arith.constant dense<0.000000e+00> : vector<8x8xf32>
    %132 = tpu.matmul %130, %131, %cst_43 {dimension_numbers = #tpu.dot_dimension_numbers<[1], [0], [0], [1], [0, 0, 1, 1], [], []>} : vector<8x8xbf16>, vector<8x8xbf16>, vector<8x8xf32> -> vector<8x8xf32>
    %133 = tpu.concatenate %66, %88, %110, %132 in 1 : vector<8x8xf32>, vector<8x8xf32>, vector<8x8xf32>, vector<8x8xf32> -> vector<8x32xf32>
    %134 = vector.extract_strided_slice %42 {offsets = [8, 0], sizes = [8, 8], strides = [1, 1]} : vector<16x32xbf16> to vector<8x8xbf16>
    %135 = vector.extract_strided_slice %43 {offsets = [8, 0], sizes = [8, 8], strides = [1, 1]} : vector<16x32xbf16> to vector<8x8xbf16>
    %cst_44 = arith.constant dense<0.000000e+00> : vector<8x8xf32>
    %136 = tpu.matmul %134, %135, %cst_44 {dimension_numbers = #tpu.dot_dimension_numbers<[1], [1], [0], [0], [0, 0, 1, 0], [], []>} : vector<8x8xbf16>, vector<8x8xbf16>, vector<8x8xf32> -> vector<8x8xf32>
    %137 = vector.extract_strided_slice %6 {offsets = [0, 0, 0], sizes = [1, 8, 8], strides = [1, 1, 1]} : vector<4x8x8xf32> to vector<1x8x8xf32>
    %138 = vector.shape_cast %137 : vector<1x8x8xf32> to vector<8x8xf32>
    %139 = arith.addf %136, %138 : vector<8x8xf32>
    %140 = vector.extract_strided_slice %5 {offsets = [1, 0], sizes = [1, 8], strides = [1, 1]} : vector<2x8xf32> to vector<1x8xf32>
    %141 = vector.broadcast %140 : vector<1x8xf32> to vector<8x8xf32>
    %142 = arith.addf %139, %141 : vector<8x8xf32>
    %cst_45 = arith.constant dense<0xFF800000> : vector<8xf32>
    %143 = vector.multi_reduction <maximumf>, %142, %cst_45 [1] : vector<8x8xf32> to vector<8xf32>
    %144 = vector.shape_cast %143 : vector<8xf32> to vector<8x1xf32>
    %145 = vector.broadcast %144 : vector<8x1xf32> to vector<8x8xf32>
    %146 = arith.subf %142, %145 : vector<8x8xf32>
    %147 = math.exp %146 : vector<8x8xf32>
    %cst_46 = arith.constant dense<0.000000e+00> : vector<8xf32>
    %148 = vector.multi_reduction <add>, %147, %cst_46 [1] : vector<8x8xf32> to vector<8xf32>
    %149 = vector.shape_cast %148 : vector<8xf32> to vector<8x1xf32>
    %150 = tpu.reciprocal %149 : vector<8x1xf32> -> vector<8x1xf32>
    %151 = vector.broadcast %150 : vector<8x1xf32> to vector<8x8xf32>
    %152 = arith.mulf %147, %151 : vector<8x8xf32>
    %153 = arith.truncf %152 : vector<8x8xf32> to vector<8x8xbf16>
    %154 = vector.extract_strided_slice %44 {offsets = [8, 0], sizes = [8, 8], strides = [1, 1]} : vector<16x32xbf16> to vector<8x8xbf16>
    %cst_47 = arith.constant dense<0.000000e+00> : vector<8x8xf32>
    %155 = tpu.matmul %153, %154, %cst_47 {dimension_numbers = #tpu.dot_dimension_numbers<[1], [0], [0], [1], [0, 0, 1, 1], [], []>} : vector<8x8xbf16>, vector<8x8xbf16>, vector<8x8xf32> -> vector<8x8xf32>
    %156 = vector.extract_strided_slice %42 {offsets = [8, 8], sizes = [8, 8], strides = [1, 1]} : vector<16x32xbf16> to vector<8x8xbf16>
    %157 = vector.extract_strided_slice %43 {offsets = [8, 8], sizes = [8, 8], strides = [1, 1]} : vector<16x32xbf16> to vector<8x8xbf16>
    %cst_48 = arith.constant dense<0.000000e+00> : vector<8x8xf32>
    %158 = tpu.matmul %156, %157, %cst_48 {dimension_numbers = #tpu.dot_dimension_numbers<[1], [1], [0], [0], [0, 0, 1, 0], [], []>} : vector<8x8xbf16>, vector<8x8xbf16>, vector<8x8xf32> -> vector<8x8xf32>
    %159 = vector.extract_strided_slice %6 {offsets = [1, 0, 0], sizes = [1, 8, 8], strides = [1, 1, 1]} : vector<4x8x8xf32> to vector<1x8x8xf32>
    %160 = vector.shape_cast %159 : vector<1x8x8xf32> to vector<8x8xf32>
    %161 = arith.addf %158, %160 : vector<8x8xf32>
    %162 = vector.extract_strided_slice %5 {offsets = [1, 0], sizes = [1, 8], strides = [1, 1]} : vector<2x8xf32> to vector<1x8xf32>
    %163 = vector.broadcast %162 : vector<1x8xf32> to vector<8x8xf32>
    %164 = arith.addf %161, %163 : vector<8x8xf32>
    %cst_49 = arith.constant dense<0xFF800000> : vector<8xf32>
    %165 = vector.multi_reduction <maximumf>, %164, %cst_49 [1] : vector<8x8xf32> to vector<8xf32>
    %166 = vector.shape_cast %165 : vector<8xf32> to vector<8x1xf32>
    %167 = vector.broadcast %166 : vector<8x1xf32> to vector<8x8xf32>
    %168 = arith.subf %164, %167 : vector<8x8xf32>
    %169 = math.exp %168 : vector<8x8xf32>
    %cst_50 = arith.constant dense<0.000000e+00> : vector<8xf32>
    %170 = vector.multi_reduction <add>, %169, %cst_50 [1] : vector<8x8xf32> to vector<8xf32>
    %171 = vector.shape_cast %170 : vector<8xf32> to vector<8x1xf32>
    %172 = tpu.reciprocal %171 : vector<8x1xf32> -> vector<8x1xf32>
    %173 = vector.broadcast %172 : vector<8x1xf32> to vector<8x8xf32>
    %174 = arith.mulf %169, %173 : vector<8x8xf32>
    %175 = arith.truncf %174 : vector<8x8xf32> to vector<8x8xbf16>
    %176 = vector.extract_strided_slice %44 {offsets = [8, 8], sizes = [8, 8], strides = [1, 1]} : vector<16x32xbf16> to vector<8x8xbf16>
    %cst_51 = arith.constant dense<0.000000e+00> : vector<8x8xf32>
    %177 = tpu.matmul %175, %176, %cst_51 {dimension_numbers = #tpu.dot_dimension_numbers<[1], [0], [0], [1], [0, 0, 1, 1], [], []>} : vector<8x8xbf16>, vector<8x8xbf16>, vector<8x8xf32> -> vector<8x8xf32>
    %178 = vector.extract_strided_slice %42 {offsets = [8, 16], sizes = [8, 8], strides = [1, 1]} : vector<16x32xbf16> to vector<8x8xbf16>
    %179 = vector.extract_strided_slice %43 {offsets = [8, 16], sizes = [8, 8], strides = [1, 1]} : vector<16x32xbf16> to vector<8x8xbf16>
    %cst_52 = arith.constant dense<0.000000e+00> : vector<8x8xf32>
    %180 = tpu.matmul %178, %179, %cst_52 {dimension_numbers = #tpu.dot_dimension_numbers<[1], [1], [0], [0], [0, 0, 1, 0], [], []>} : vector<8x8xbf16>, vector<8x8xbf16>, vector<8x8xf32> -> vector<8x8xf32>
    %181 = vector.extract_strided_slice %6 {offsets = [2, 0, 0], sizes = [1, 8, 8], strides = [1, 1, 1]} : vector<4x8x8xf32> to vector<1x8x8xf32>
    %182 = vector.shape_cast %181 : vector<1x8x8xf32> to vector<8x8xf32>
    %183 = arith.addf %180, %182 : vector<8x8xf32>
    %184 = vector.extract_strided_slice %5 {offsets = [1, 0], sizes = [1, 8], strides = [1, 1]} : vector<2x8xf32> to vector<1x8xf32>
    %185 = vector.broadcast %184 : vector<1x8xf32> to vector<8x8xf32>
    %186 = arith.addf %183, %185 : vector<8x8xf32>
    %cst_53 = arith.constant dense<0xFF800000> : vector<8xf32>
    %187 = vector.multi_reduction <maximumf>, %186, %cst_53 [1] : vector<8x8xf32> to vector<8xf32>
    %188 = vector.shape_cast %187 : vector<8xf32> to vector<8x1xf32>
    %189 = vector.broadcast %188 : vector<8x1xf32> to vector<8x8xf32>
    %190 = arith.subf %186, %189 : vector<8x8xf32>
    %191 = math.exp %190 : vector<8x8xf32>
    %cst_54 = arith.constant dense<0.000000e+00> : vector<8xf32>
    %192 = vector.multi_reduction <add>, %191, %cst_54 [1] : vector<8x8xf32> to vector<8xf32>
    %193 = vector.shape_cast %192 : vector<8xf32> to vector<8x1xf32>
    %194 = tpu.reciprocal %193 : vector<8x1xf32> -> vector<8x1xf32>
    %195 = vector.broadcast %194 : vector<8x1xf32> to vector<8x8xf32>
    %196 = arith.mulf %191, %195 : vector<8x8xf32>
    %197 = arith.truncf %196 : vector<8x8xf32> to vector<8x8xbf16>
    %198 = vector.extract_strided_slice %44 {offsets = [8, 16], sizes = [8, 8], strides = [1, 1]} : vector<16x32xbf16> to vector<8x8xbf16>
    %cst_55 = arith.constant dense<0.000000e+00> : vector<8x8xf32>
    %199 = tpu.matmul %197, %198, %cst_55 {dimension_numbers = #tpu.dot_dimension_numbers<[1], [0], [0], [1], [0, 0, 1, 1], [], []>} : vector<8x8xbf16>, vector<8x8xbf16>, vector<8x8xf32> -> vector<8x8xf32>
    %200 = vector.extract_strided_slice %42 {offsets = [8, 24], sizes = [8, 8], strides = [1, 1]} : vector<16x32xbf16> to vector<8x8xbf16>
    %201 = vector.extract_strided_slice %43 {offsets = [8, 24], sizes = [8, 8], strides = [1, 1]} : vector<16x32xbf16> to vector<8x8xbf16>
    %cst_56 = arith.constant dense<0.000000e+00> : vector<8x8xf32>
    %202 = tpu.matmul %200, %201, %cst_56 {dimension_numbers = #tpu.dot_dimension_numbers<[1], [1], [0], [0], [0, 0, 1, 0], [], []>} : vector<8x8xbf16>, vector<8x8xbf16>, vector<8x8xf32> -> vector<8x8xf32>
    %203 = vector.extract_strided_slice %6 {offsets = [3, 0, 0], sizes = [1, 8, 8], strides = [1, 1, 1]} : vector<4x8x8xf32> to vector<1x8x8xf32>
    %204 = vector.shape_cast %203 : vector<1x8x8xf32> to vector<8x8xf32>
    %205 = arith.addf %202, %204 : vector<8x8xf32>
    %206 = vector.extract_strided_slice %5 {offsets = [1, 0], sizes = [1, 8], strides = [1, 1]} : vector<2x8xf32> to vector<1x8xf32>
    %207 = vector.broadcast %206 : vector<1x8xf32> to vector<8x8xf32>
    %208 = arith.addf %205, %207 : vector<8x8xf32>
    %cst_57 = arith.constant dense<0xFF800000> : vector<8xf32>
    %209 = vector.multi_reduction <maximumf>, %208, %cst_57 [1] : vector<8x8xf32> to vector<8xf32>
    %210 = vector.shape_cast %209 : vector<8xf32> to vector<8x1xf32>
    %211 = vector.broadcast %210 : vector<8x1xf32> to vector<8x8xf32>
    %212 = arith.subf %208, %211 : vector<8x8xf32>
    %213 = math.exp %212 : vector<8x8xf32>
    %cst_58 = arith.constant dense<0.000000e+00> : vector<8xf32>
    %214 = vector.multi_reduction <add>, %213, %cst_58 [1] : vector<8x8xf32> to vector<8xf32>
    %215 = vector.shape_cast %214 : vector<8xf32> to vector<8x1xf32>
    %216 = tpu.reciprocal %215 : vector<8x1xf32> -> vector<8x1xf32>
    %217 = vector.broadcast %216 : vector<8x1xf32> to vector<8x8xf32>
    %218 = arith.mulf %213, %217 : vector<8x8xf32>
    %219 = arith.truncf %218 : vector<8x8xf32> to vector<8x8xbf16>
    %220 = vector.extract_strided_slice %44 {offsets = [8, 24], sizes = [8, 8], strides = [1, 1]} : vector<16x32xbf16> to vector<8x8xbf16>
    %cst_59 = arith.constant dense<0.000000e+00> : vector<8x8xf32>
    %221 = tpu.matmul %219, %220, %cst_59 {dimension_numbers = #tpu.dot_dimension_numbers<[1], [0], [0], [1], [0, 0, 1, 1], [], []>} : vector<8x8xbf16>, vector<8x8xbf16>, vector<8x8xf32> -> vector<8x8xf32>
    %222 = tpu.concatenate %155, %177, %199, %221 in 1 : vector<8x8xf32>, vector<8x8xf32>, vector<8x8xf32>, vector<8x8xf32> -> vector<8x32xf32>
    %223 = tpu.concatenate %133, %222 in 0 : vector<8x32xf32>, vector<8x32xf32> -> vector<16x32xf32>
    %224 = arith.truncf %223 : vector<16x32xf32> to vector<16x32xbf16>
    %cst_60 = arith.constant dense<0.000000e+00> : vector<16x32xf32>
    %225 = tpu.matmul %224, %23, %cst_60 {dimension_numbers = #tpu.dot_dimension_numbers<[1], [0], [0], [1], [0, 0, 1, 1], [], []>} : vector<16x32xbf16>, vector<32x32xbf16>, vector<16x32xf32> -> vector<16x32xf32>
    %226 = arith.addf %17, %225 : vector<16x32xf32>
    %227 = arith.mulf %226, %226 : vector<16x32xf32>
    %cst_61 = arith.constant dense<0.000000e+00> : vector<16xf32>
    %228 = vector.multi_reduction <add>, %227, %cst_61 [1] : vector<16x32xf32> to vector<16xf32>
    %229 = vector.shape_cast %228 : vector<16xf32> to vector<16x1xf32>
    %cst_62 = arith.constant 3.200000e+01 : f32
    %230 = vector.broadcast %cst_62 : f32 to vector<16x1xf32>
    %231 = arith.divf %229, %230 : vector<16x1xf32>
    %cst_63 = arith.constant 9.99999997E-7 : f32
    %232 = vector.broadcast %cst_63 : f32 to vector<16x1xf32>
    %233 = arith.addf %231, %232 : vector<16x1xf32>
    %234 = math.rsqrt %233 : vector<16x1xf32>
    %235 = vector.broadcast %234 : vector<16x1xf32> to vector<16x32xf32>
    %236 = arith.mulf %226, %235 : vector<16x32xf32>
    %237 = vector.broadcast %20 : vector<1x32xf32> to vector<16x32xf32>
    %238 = arith.mulf %236, %237 : vector<16x32xf32>
    %239 = arith.truncf %238 : vector<16x32xf32> to vector<16x32xbf16>
    %cst_64 = arith.constant dense<0.000000e+00> : vector<16x64xf32>
    %240 = tpu.matmul %239, %22, %cst_64 {dimension_numbers = #tpu.dot_dimension_numbers<[1], [0], [0], [1], [0, 0, 1, 1], [], []>} : vector<16x32xbf16>, vector<32x64xbf16>, vector<16x64xf32> -> vector<16x64xf32>
    %cst_65 = arith.constant 0.000000e+00 : f32
    %241 = vector.broadcast %cst_65 : f32 to vector<16x64xf32>
    %242 = arith.maximumf %240, %241 : vector<16x64xf32>
    %243 = arith.truncf %242 : vector<16x64xf32> to vector<16x64xbf16>
    %cst_66 = arith.constant dense<0.000000e+00> : vector<16x32xf32>
    %244 = tpu.matmul %243, %24, %cst_66 {dimension_numbers = #tpu.dot_dimension_numbers<[1], [0], [0], [1], [0, 0, 1, 1], [], []>} : vector<16x64xbf16>, vector<64x32xbf16>, vector<16x32xf32> -> vector<16x32xf32>
    %245 = arith.addf %226, %244 : vector<16x32xf32>
    %c5 = arith.constant 5 : index
    %c0_67 = arith.constant 0 : index
    %246 = vector.load %arg7[%c5, %c0_67] : memref<7x32xf32, #tpu.memory_space<vmem>>, vector<1x32xf32>
    %247 = arith.mulf %245, %245 : vector<16x32xf32>
    %cst_68 = arith.constant dense<0.000000e+00> : vector<16xf32>
    %248 = vector.multi_reduction <add>, %247, %cst_68 [1] : vector<16x32xf32> to vector<16xf32>
    %249 = vector.shape_cast %248 : vector<16xf32> to vector<16x1xf32>
    %cst_69 = arith.constant 3.200000e+01 : f32
    %250 = vector.broadcast %cst_69 : f32 to vector<16x1xf32>
    %251 = arith.divf %249, %250 : vector<16x1xf32>
    %cst_70 = arith.constant 9.99999997E-7 : f32
    %252 = vector.broadcast %cst_70 : f32 to vector<16x1xf32>
    %253 = arith.addf %251, %252 : vector<16x1xf32>
    %254 = math.rsqrt %253 : vector<16x1xf32>
    %255 = vector.broadcast %254 : vector<16x1xf32> to vector<16x32xf32>
    %256 = arith.mulf %245, %255 : vector<16x32xf32>
    %257 = vector.broadcast %246 : vector<1x32xf32> to vector<16x32xf32>
    %258 = arith.mulf %256, %257 : vector<16x32xf32>
    %259 = arith.truncf %258 : vector<16x32xf32> to vector<16x32xbf16>
    %c2 = arith.constant 2 : index
    %c0_71 = arith.constant 0 : index
    %260 = vector.load %arg7[%c2, %c0_71] : memref<7x32xf32, #tpu.memory_space<vmem>>, vector<1x32xf32>
    %c3 = arith.constant 3 : index
    %c0_72 = arith.constant 0 : index
    %261 = vector.load %arg7[%c3, %c0_72] : memref<7x32xf32, #tpu.memory_space<vmem>>, vector<1x32xf32>
    %c4_73 = arith.constant 4 : index
    %c0_74 = arith.constant 0 : index
    %262 = vector.load %arg7[%c4_73, %c0_74] : memref<7x32xf32, #tpu.memory_space<vmem>>, vector<1x32xf32>
    %c32_75 = arith.constant 32 : index
    %c0_76 = arith.constant 0 : index
    %263 = vector.load %arg4[%c32_75, %c0_76] : memref<64x96xbf16, #tpu.memory_space<vmem>>, vector<32x96xbf16>
    %c32_77 = arith.constant 32 : index
    %c0_78 = arith.constant 0 : index
    %264 = vector.load %arg5[%c32_77, %c0_78] : memref<96x64xbf16, #tpu.memory_space<vmem>>, vector<32x64xbf16>
    %c64 = arith.constant 64 : index
    %c0_79 = arith.constant 0 : index
    %265 = vector.load %arg5[%c64, %c0_79] : memref<96x64xbf16, #tpu.memory_space<vmem>>, vector<32x64xbf16>
    %c96 = arith.constant 96 : index
    %c0_80 = arith.constant 0 : index
    %266 = vector.load %arg6[%c96, %c0_80] : memref<256x32xbf16, #tpu.memory_space<vmem>>, vector<32x32xbf16>
    %c128 = arith.constant 128 : index
    %c0_81 = arith.constant 0 : index
    %267 = vector.load %arg6[%c128, %c0_81] : memref<256x32xbf16, #tpu.memory_space<vmem>>, vector<32x32xbf16>
    %c160 = arith.constant 160 : index
    %c0_82 = arith.constant 0 : index
    %268 = vector.load %arg6[%c160, %c0_82] : memref<256x32xbf16, #tpu.memory_space<vmem>>, vector<32x32xbf16>
    %c192 = arith.constant 192 : index
    %c0_83 = arith.constant 0 : index
    %269 = vector.load %arg6[%c192, %c0_83] : memref<256x32xbf16, #tpu.memory_space<vmem>>, vector<64x32xbf16>
    %270 = arith.mulf %18, %18 : vector<16x32xf32>
    %cst_84 = arith.constant dense<0.000000e+00> : vector<16xf32>
    %271 = vector.multi_reduction <add>, %270, %cst_84 [1] : vector<16x32xf32> to vector<16xf32>
    %272 = vector.shape_cast %271 : vector<16xf32> to vector<16x1xf32>
    %cst_85 = arith.constant 3.200000e+01 : f32
    %273 = vector.broadcast %cst_85 : f32 to vector<16x1xf32>
    %274 = arith.divf %272, %273 : vector<16x1xf32>
    %cst_86 = arith.constant 9.99999997E-7 : f32
    %275 = vector.broadcast %cst_86 : f32 to vector<16x1xf32>
    %276 = arith.addf %274, %275 : vector<16x1xf32>
    %277 = math.rsqrt %276 : vector<16x1xf32>
    %278 = vector.broadcast %277 : vector<16x1xf32> to vector<16x32xf32>
    %279 = arith.mulf %18, %278 : vector<16x32xf32>
    %280 = vector.broadcast %260 : vector<1x32xf32> to vector<16x32xf32>
    %281 = arith.mulf %279, %280 : vector<16x32xf32>
    %282 = arith.truncf %281 : vector<16x32xf32> to vector<16x32xbf16>
    %cst_87 = arith.constant dense<0.000000e+00> : vector<16x96xf32>
    %283 = tpu.matmul %282, %263, %cst_87 {dimension_numbers = #tpu.dot_dimension_numbers<[1], [0], [0], [1], [0, 0, 1, 1], [], []>} : vector<16x32xbf16>, vector<32x96xbf16>, vector<16x96xf32> -> vector<16x96xf32>
    %284 = vector.extract_strided_slice %283 {offsets = [0, 0], sizes = [16, 32], strides = [1, 1]} : vector<16x96xf32> to vector<16x32xf32>
    %285 = vector.extract_strided_slice %283 {offsets = [0, 32], sizes = [16, 32], strides = [1, 1]} : vector<16x96xf32> to vector<16x32xf32>
    %286 = vector.extract_strided_slice %283 {offsets = [0, 64], sizes = [16, 32], strides = [1, 1]} : vector<16x96xf32> to vector<16x32xf32>
    %287 = arith.truncf %284 : vector<16x32xf32> to vector<16x32xbf16>
    %288 = arith.truncf %285 : vector<16x32xf32> to vector<16x32xbf16>
    %289 = arith.truncf %286 : vector<16x32xf32> to vector<16x32xbf16>
    %290 = vector.extract_strided_slice %287 {offsets = [0, 0], sizes = [8, 8], strides = [1, 1]} : vector<16x32xbf16> to vector<8x8xbf16>
    %291 = vector.extract_strided_slice %288 {offsets = [0, 0], sizes = [8, 8], strides = [1, 1]} : vector<16x32xbf16> to vector<8x8xbf16>
    %cst_88 = arith.constant dense<0.000000e+00> : vector<8x8xf32>
    %292 = tpu.matmul %290, %291, %cst_88 {dimension_numbers = #tpu.dot_dimension_numbers<[1], [1], [0], [0], [0, 0, 1, 0], [], []>} : vector<8x8xbf16>, vector<8x8xbf16>, vector<8x8xf32> -> vector<8x8xf32>
    %293 = vector.extract_strided_slice %7 {offsets = [0, 0, 0], sizes = [1, 8, 8], strides = [1, 1, 1]} : vector<4x8x8xf32> to vector<1x8x8xf32>
    %294 = vector.shape_cast %293 : vector<1x8x8xf32> to vector<8x8xf32>
    %295 = arith.addf %292, %294 : vector<8x8xf32>
    %cst_89 = arith.constant dense<0xFF800000> : vector<8xf32>
    %296 = vector.multi_reduction <maximumf>, %295, %cst_89 [1] : vector<8x8xf32> to vector<8xf32>
    %297 = vector.shape_cast %296 : vector<8xf32> to vector<8x1xf32>
    %298 = vector.broadcast %297 : vector<8x1xf32> to vector<8x8xf32>
    %299 = arith.subf %295, %298 : vector<8x8xf32>
    %300 = math.exp %299 : vector<8x8xf32>
    %cst_90 = arith.constant dense<0.000000e+00> : vector<8xf32>
    %301 = vector.multi_reduction <add>, %300, %cst_90 [1] : vector<8x8xf32> to vector<8xf32>
    %302 = vector.shape_cast %301 : vector<8xf32> to vector<8x1xf32>
    %303 = tpu.reciprocal %302 : vector<8x1xf32> -> vector<8x1xf32>
    %304 = vector.broadcast %303 : vector<8x1xf32> to vector<8x8xf32>
    %305 = arith.mulf %300, %304 : vector<8x8xf32>
    %306 = arith.truncf %305 : vector<8x8xf32> to vector<8x8xbf16>
    %307 = vector.extract_strided_slice %289 {offsets = [0, 0], sizes = [8, 8], strides = [1, 1]} : vector<16x32xbf16> to vector<8x8xbf16>
    %cst_91 = arith.constant dense<0.000000e+00> : vector<8x8xf32>
    %308 = tpu.matmul %306, %307, %cst_91 {dimension_numbers = #tpu.dot_dimension_numbers<[1], [0], [0], [1], [0, 0, 1, 1], [], []>} : vector<8x8xbf16>, vector<8x8xbf16>, vector<8x8xf32> -> vector<8x8xf32>
    %309 = vector.extract_strided_slice %287 {offsets = [0, 8], sizes = [8, 8], strides = [1, 1]} : vector<16x32xbf16> to vector<8x8xbf16>
    %310 = vector.extract_strided_slice %288 {offsets = [0, 8], sizes = [8, 8], strides = [1, 1]} : vector<16x32xbf16> to vector<8x8xbf16>
    %cst_92 = arith.constant dense<0.000000e+00> : vector<8x8xf32>
    %311 = tpu.matmul %309, %310, %cst_92 {dimension_numbers = #tpu.dot_dimension_numbers<[1], [1], [0], [0], [0, 0, 1, 0], [], []>} : vector<8x8xbf16>, vector<8x8xbf16>, vector<8x8xf32> -> vector<8x8xf32>
    %312 = vector.extract_strided_slice %7 {offsets = [1, 0, 0], sizes = [1, 8, 8], strides = [1, 1, 1]} : vector<4x8x8xf32> to vector<1x8x8xf32>
    %313 = vector.shape_cast %312 : vector<1x8x8xf32> to vector<8x8xf32>
    %314 = arith.addf %311, %313 : vector<8x8xf32>
    %cst_93 = arith.constant dense<0xFF800000> : vector<8xf32>
    %315 = vector.multi_reduction <maximumf>, %314, %cst_93 [1] : vector<8x8xf32> to vector<8xf32>
    %316 = vector.shape_cast %315 : vector<8xf32> to vector<8x1xf32>
    %317 = vector.broadcast %316 : vector<8x1xf32> to vector<8x8xf32>
    %318 = arith.subf %314, %317 : vector<8x8xf32>
    %319 = math.exp %318 : vector<8x8xf32>
    %cst_94 = arith.constant dense<0.000000e+00> : vector<8xf32>
    %320 = vector.multi_reduction <add>, %319, %cst_94 [1] : vector<8x8xf32> to vector<8xf32>
    %321 = vector.shape_cast %320 : vector<8xf32> to vector<8x1xf32>
    %322 = tpu.reciprocal %321 : vector<8x1xf32> -> vector<8x1xf32>
    %323 = vector.broadcast %322 : vector<8x1xf32> to vector<8x8xf32>
    %324 = arith.mulf %319, %323 : vector<8x8xf32>
    %325 = arith.truncf %324 : vector<8x8xf32> to vector<8x8xbf16>
    %326 = vector.extract_strided_slice %289 {offsets = [0, 8], sizes = [8, 8], strides = [1, 1]} : vector<16x32xbf16> to vector<8x8xbf16>
    %cst_95 = arith.constant dense<0.000000e+00> : vector<8x8xf32>
    %327 = tpu.matmul %325, %326, %cst_95 {dimension_numbers = #tpu.dot_dimension_numbers<[1], [0], [0], [1], [0, 0, 1, 1], [], []>} : vector<8x8xbf16>, vector<8x8xbf16>, vector<8x8xf32> -> vector<8x8xf32>
    %328 = vector.extract_strided_slice %287 {offsets = [0, 16], sizes = [8, 8], strides = [1, 1]} : vector<16x32xbf16> to vector<8x8xbf16>
    %329 = vector.extract_strided_slice %288 {offsets = [0, 16], sizes = [8, 8], strides = [1, 1]} : vector<16x32xbf16> to vector<8x8xbf16>
    %cst_96 = arith.constant dense<0.000000e+00> : vector<8x8xf32>
    %330 = tpu.matmul %328, %329, %cst_96 {dimension_numbers = #tpu.dot_dimension_numbers<[1], [1], [0], [0], [0, 0, 1, 0], [], []>} : vector<8x8xbf16>, vector<8x8xbf16>, vector<8x8xf32> -> vector<8x8xf32>
    %331 = vector.extract_strided_slice %7 {offsets = [2, 0, 0], sizes = [1, 8, 8], strides = [1, 1, 1]} : vector<4x8x8xf32> to vector<1x8x8xf32>
    %332 = vector.shape_cast %331 : vector<1x8x8xf32> to vector<8x8xf32>
    %333 = arith.addf %330, %332 : vector<8x8xf32>
    %cst_97 = arith.constant dense<0xFF800000> : vector<8xf32>
    %334 = vector.multi_reduction <maximumf>, %333, %cst_97 [1] : vector<8x8xf32> to vector<8xf32>
    %335 = vector.shape_cast %334 : vector<8xf32> to vector<8x1xf32>
    %336 = vector.broadcast %335 : vector<8x1xf32> to vector<8x8xf32>
    %337 = arith.subf %333, %336 : vector<8x8xf32>
    %338 = math.exp %337 : vector<8x8xf32>
    %cst_98 = arith.constant dense<0.000000e+00> : vector<8xf32>
    %339 = vector.multi_reduction <add>, %338, %cst_98 [1] : vector<8x8xf32> to vector<8xf32>
    %340 = vector.shape_cast %339 : vector<8xf32> to vector<8x1xf32>
    %341 = tpu.reciprocal %340 : vector<8x1xf32> -> vector<8x1xf32>
    %342 = vector.broadcast %341 : vector<8x1xf32> to vector<8x8xf32>
    %343 = arith.mulf %338, %342 : vector<8x8xf32>
    %344 = arith.truncf %343 : vector<8x8xf32> to vector<8x8xbf16>
    %345 = vector.extract_strided_slice %289 {offsets = [0, 16], sizes = [8, 8], strides = [1, 1]} : vector<16x32xbf16> to vector<8x8xbf16>
    %cst_99 = arith.constant dense<0.000000e+00> : vector<8x8xf32>
    %346 = tpu.matmul %344, %345, %cst_99 {dimension_numbers = #tpu.dot_dimension_numbers<[1], [0], [0], [1], [0, 0, 1, 1], [], []>} : vector<8x8xbf16>, vector<8x8xbf16>, vector<8x8xf32> -> vector<8x8xf32>
    %347 = vector.extract_strided_slice %287 {offsets = [0, 24], sizes = [8, 8], strides = [1, 1]} : vector<16x32xbf16> to vector<8x8xbf16>
    %348 = vector.extract_strided_slice %288 {offsets = [0, 24], sizes = [8, 8], strides = [1, 1]} : vector<16x32xbf16> to vector<8x8xbf16>
    %cst_100 = arith.constant dense<0.000000e+00> : vector<8x8xf32>
    %349 = tpu.matmul %347, %348, %cst_100 {dimension_numbers = #tpu.dot_dimension_numbers<[1], [1], [0], [0], [0, 0, 1, 0], [], []>} : vector<8x8xbf16>, vector<8x8xbf16>, vector<8x8xf32> -> vector<8x8xf32>
    %350 = vector.extract_strided_slice %7 {offsets = [3, 0, 0], sizes = [1, 8, 8], strides = [1, 1, 1]} : vector<4x8x8xf32> to vector<1x8x8xf32>
    %351 = vector.shape_cast %350 : vector<1x8x8xf32> to vector<8x8xf32>
    %352 = arith.addf %349, %351 : vector<8x8xf32>
    %cst_101 = arith.constant dense<0xFF800000> : vector<8xf32>
    %353 = vector.multi_reduction <maximumf>, %352, %cst_101 [1] : vector<8x8xf32> to vector<8xf32>
    %354 = vector.shape_cast %353 : vector<8xf32> to vector<8x1xf32>
    %355 = vector.broadcast %354 : vector<8x1xf32> to vector<8x8xf32>
    %356 = arith.subf %352, %355 : vector<8x8xf32>
    %357 = math.exp %356 : vector<8x8xf32>
    %cst_102 = arith.constant dense<0.000000e+00> : vector<8xf32>
    %358 = vector.multi_reduction <add>, %357, %cst_102 [1] : vector<8x8xf32> to vector<8xf32>
    %359 = vector.shape_cast %358 : vector<8xf32> to vector<8x1xf32>
    %360 = tpu.reciprocal %359 : vector<8x1xf32> -> vector<8x1xf32>
    %361 = vector.broadcast %360 : vector<8x1xf32> to vector<8x8xf32>
    %362 = arith.mulf %357, %361 : vector<8x8xf32>
    %363 = arith.truncf %362 : vector<8x8xf32> to vector<8x8xbf16>
    %364 = vector.extract_strided_slice %289 {offsets = [0, 24], sizes = [8, 8], strides = [1, 1]} : vector<16x32xbf16> to vector<8x8xbf16>
    %cst_103 = arith.constant dense<0.000000e+00> : vector<8x8xf32>
    %365 = tpu.matmul %363, %364, %cst_103 {dimension_numbers = #tpu.dot_dimension_numbers<[1], [0], [0], [1], [0, 0, 1, 1], [], []>} : vector<8x8xbf16>, vector<8x8xbf16>, vector<8x8xf32> -> vector<8x8xf32>
    %366 = tpu.concatenate %308, %327, %346, %365 in 1 : vector<8x8xf32>, vector<8x8xf32>, vector<8x8xf32>, vector<8x8xf32> -> vector<8x32xf32>
    %367 = vector.extract_strided_slice %287 {offsets = [8, 0], sizes = [8, 8], strides = [1, 1]} : vector<16x32xbf16> to vector<8x8xbf16>
    %368 = vector.extract_strided_slice %288 {offsets = [8, 0], sizes = [8, 8], strides = [1, 1]} : vector<16x32xbf16> to vector<8x8xbf16>
    %cst_104 = arith.constant dense<0.000000e+00> : vector<8x8xf32>
    %369 = tpu.matmul %367, %368, %cst_104 {dimension_numbers = #tpu.dot_dimension_numbers<[1], [1], [0], [0], [0, 0, 1, 0], [], []>} : vector<8x8xbf16>, vector<8x8xbf16>, vector<8x8xf32> -> vector<8x8xf32>
    %370 = vector.extract_strided_slice %7 {offsets = [0, 0, 0], sizes = [1, 8, 8], strides = [1, 1, 1]} : vector<4x8x8xf32> to vector<1x8x8xf32>
    %371 = vector.shape_cast %370 : vector<1x8x8xf32> to vector<8x8xf32>
    %372 = arith.addf %369, %371 : vector<8x8xf32>
    %cst_105 = arith.constant dense<0xFF800000> : vector<8xf32>
    %373 = vector.multi_reduction <maximumf>, %372, %cst_105 [1] : vector<8x8xf32> to vector<8xf32>
    %374 = vector.shape_cast %373 : vector<8xf32> to vector<8x1xf32>
    %375 = vector.broadcast %374 : vector<8x1xf32> to vector<8x8xf32>
    %376 = arith.subf %372, %375 : vector<8x8xf32>
    %377 = math.exp %376 : vector<8x8xf32>
    %cst_106 = arith.constant dense<0.000000e+00> : vector<8xf32>
    %378 = vector.multi_reduction <add>, %377, %cst_106 [1] : vector<8x8xf32> to vector<8xf32>
    %379 = vector.shape_cast %378 : vector<8xf32> to vector<8x1xf32>
    %380 = tpu.reciprocal %379 : vector<8x1xf32> -> vector<8x1xf32>
    %381 = vector.broadcast %380 : vector<8x1xf32> to vector<8x8xf32>
    %382 = arith.mulf %377, %381 : vector<8x8xf32>
    %383 = arith.truncf %382 : vector<8x8xf32> to vector<8x8xbf16>
    %384 = vector.extract_strided_slice %289 {offsets = [8, 0], sizes = [8, 8], strides = [1, 1]} : vector<16x32xbf16> to vector<8x8xbf16>
    %cst_107 = arith.constant dense<0.000000e+00> : vector<8x8xf32>
    %385 = tpu.matmul %383, %384, %cst_107 {dimension_numbers = #tpu.dot_dimension_numbers<[1], [0], [0], [1], [0, 0, 1, 1], [], []>} : vector<8x8xbf16>, vector<8x8xbf16>, vector<8x8xf32> -> vector<8x8xf32>
    %386 = vector.extract_strided_slice %287 {offsets = [8, 8], sizes = [8, 8], strides = [1, 1]} : vector<16x32xbf16> to vector<8x8xbf16>
    %387 = vector.extract_strided_slice %288 {offsets = [8, 8], sizes = [8, 8], strides = [1, 1]} : vector<16x32xbf16> to vector<8x8xbf16>
    %cst_108 = arith.constant dense<0.000000e+00> : vector<8x8xf32>
    %388 = tpu.matmul %386, %387, %cst_108 {dimension_numbers = #tpu.dot_dimension_numbers<[1], [1], [0], [0], [0, 0, 1, 0], [], []>} : vector<8x8xbf16>, vector<8x8xbf16>, vector<8x8xf32> -> vector<8x8xf32>
    %389 = vector.extract_strided_slice %7 {offsets = [1, 0, 0], sizes = [1, 8, 8], strides = [1, 1, 1]} : vector<4x8x8xf32> to vector<1x8x8xf32>
    %390 = vector.shape_cast %389 : vector<1x8x8xf32> to vector<8x8xf32>
    %391 = arith.addf %388, %390 : vector<8x8xf32>
    %cst_109 = arith.constant dense<0xFF800000> : vector<8xf32>
    %392 = vector.multi_reduction <maximumf>, %391, %cst_109 [1] : vector<8x8xf32> to vector<8xf32>
    %393 = vector.shape_cast %392 : vector<8xf32> to vector<8x1xf32>
    %394 = vector.broadcast %393 : vector<8x1xf32> to vector<8x8xf32>
    %395 = arith.subf %391, %394 : vector<8x8xf32>
    %396 = math.exp %395 : vector<8x8xf32>
    %cst_110 = arith.constant dense<0.000000e+00> : vector<8xf32>
    %397 = vector.multi_reduction <add>, %396, %cst_110 [1] : vector<8x8xf32> to vector<8xf32>
    %398 = vector.shape_cast %397 : vector<8xf32> to vector<8x1xf32>
    %399 = tpu.reciprocal %398 : vector<8x1xf32> -> vector<8x1xf32>
    %400 = vector.broadcast %399 : vector<8x1xf32> to vector<8x8xf32>
    %401 = arith.mulf %396, %400 : vector<8x8xf32>
    %402 = arith.truncf %401 : vector<8x8xf32> to vector<8x8xbf16>
    %403 = vector.extract_strided_slice %289 {offsets = [8, 8], sizes = [8, 8], strides = [1, 1]} : vector<16x32xbf16> to vector<8x8xbf16>
    %cst_111 = arith.constant dense<0.000000e+00> : vector<8x8xf32>
    %404 = tpu.matmul %402, %403, %cst_111 {dimension_numbers = #tpu.dot_dimension_numbers<[1], [0], [0], [1], [0, 0, 1, 1], [], []>} : vector<8x8xbf16>, vector<8x8xbf16>, vector<8x8xf32> -> vector<8x8xf32>
    %405 = vector.extract_strided_slice %287 {offsets = [8, 16], sizes = [8, 8], strides = [1, 1]} : vector<16x32xbf16> to vector<8x8xbf16>
    %406 = vector.extract_strided_slice %288 {offsets = [8, 16], sizes = [8, 8], strides = [1, 1]} : vector<16x32xbf16> to vector<8x8xbf16>
    %cst_112 = arith.constant dense<0.000000e+00> : vector<8x8xf32>
    %407 = tpu.matmul %405, %406, %cst_112 {dimension_numbers = #tpu.dot_dimension_numbers<[1], [1], [0], [0], [0, 0, 1, 0], [], []>} : vector<8x8xbf16>, vector<8x8xbf16>, vector<8x8xf32> -> vector<8x8xf32>
    %408 = vector.extract_strided_slice %7 {offsets = [2, 0, 0], sizes = [1, 8, 8], strides = [1, 1, 1]} : vector<4x8x8xf32> to vector<1x8x8xf32>
    %409 = vector.shape_cast %408 : vector<1x8x8xf32> to vector<8x8xf32>
    %410 = arith.addf %407, %409 : vector<8x8xf32>
    %cst_113 = arith.constant dense<0xFF800000> : vector<8xf32>
    %411 = vector.multi_reduction <maximumf>, %410, %cst_113 [1] : vector<8x8xf32> to vector<8xf32>
    %412 = vector.shape_cast %411 : vector<8xf32> to vector<8x1xf32>
    %413 = vector.broadcast %412 : vector<8x1xf32> to vector<8x8xf32>
    %414 = arith.subf %410, %413 : vector<8x8xf32>
    %415 = math.exp %414 : vector<8x8xf32>
    %cst_114 = arith.constant dense<0.000000e+00> : vector<8xf32>
    %416 = vector.multi_reduction <add>, %415, %cst_114 [1] : vector<8x8xf32> to vector<8xf32>
    %417 = vector.shape_cast %416 : vector<8xf32> to vector<8x1xf32>
    %418 = tpu.reciprocal %417 : vector<8x1xf32> -> vector<8x1xf32>
    %419 = vector.broadcast %418 : vector<8x1xf32> to vector<8x8xf32>
    %420 = arith.mulf %415, %419 : vector<8x8xf32>
    %421 = arith.truncf %420 : vector<8x8xf32> to vector<8x8xbf16>
    %422 = vector.extract_strided_slice %289 {offsets = [8, 16], sizes = [8, 8], strides = [1, 1]} : vector<16x32xbf16> to vector<8x8xbf16>
    %cst_115 = arith.constant dense<0.000000e+00> : vector<8x8xf32>
    %423 = tpu.matmul %421, %422, %cst_115 {dimension_numbers = #tpu.dot_dimension_numbers<[1], [0], [0], [1], [0, 0, 1, 1], [], []>} : vector<8x8xbf16>, vector<8x8xbf16>, vector<8x8xf32> -> vector<8x8xf32>
    %424 = vector.extract_strided_slice %287 {offsets = [8, 24], sizes = [8, 8], strides = [1, 1]} : vector<16x32xbf16> to vector<8x8xbf16>
    %425 = vector.extract_strided_slice %288 {offsets = [8, 24], sizes = [8, 8], strides = [1, 1]} : vector<16x32xbf16> to vector<8x8xbf16>
    %cst_116 = arith.constant dense<0.000000e+00> : vector<8x8xf32>
    %426 = tpu.matmul %424, %425, %cst_116 {dimension_numbers = #tpu.dot_dimension_numbers<[1], [1], [0], [0], [0, 0, 1, 0], [], []>} : vector<8x8xbf16>, vector<8x8xbf16>, vector<8x8xf32> -> vector<8x8xf32>
    %427 = vector.extract_strided_slice %7 {offsets = [3, 0, 0], sizes = [1, 8, 8], strides = [1, 1, 1]} : vector<4x8x8xf32> to vector<1x8x8xf32>
    %428 = vector.shape_cast %427 : vector<1x8x8xf32> to vector<8x8xf32>
    %429 = arith.addf %426, %428 : vector<8x8xf32>
    %cst_117 = arith.constant dense<0xFF800000> : vector<8xf32>
    %430 = vector.multi_reduction <maximumf>, %429, %cst_117 [1] : vector<8x8xf32> to vector<8xf32>
    %431 = vector.shape_cast %430 : vector<8xf32> to vector<8x1xf32>
    %432 = vector.broadcast %431 : vector<8x1xf32> to vector<8x8xf32>
    %433 = arith.subf %429, %432 : vector<8x8xf32>
    %434 = math.exp %433 : vector<8x8xf32>
    %cst_118 = arith.constant dense<0.000000e+00> : vector<8xf32>
    %435 = vector.multi_reduction <add>, %434, %cst_118 [1] : vector<8x8xf32> to vector<8xf32>
    %436 = vector.shape_cast %435 : vector<8xf32> to vector<8x1xf32>
    %437 = tpu.reciprocal %436 : vector<8x1xf32> -> vector<8x1xf32>
    %438 = vector.broadcast %437 : vector<8x1xf32> to vector<8x8xf32>
    %439 = arith.mulf %434, %438 : vector<8x8xf32>
    %440 = arith.truncf %439 : vector<8x8xf32> to vector<8x8xbf16>
    %441 = vector.extract_strided_slice %289 {offsets = [8, 24], sizes = [8, 8], strides = [1, 1]} : vector<16x32xbf16> to vector<8x8xbf16>
    %cst_119 = arith.constant dense<0.000000e+00> : vector<8x8xf32>
    %442 = tpu.matmul %440, %441, %cst_119 {dimension_numbers = #tpu.dot_dimension_numbers<[1], [0], [0], [1], [0, 0, 1, 1], [], []>} : vector<8x8xbf16>, vector<8x8xbf16>, vector<8x8xf32> -> vector<8x8xf32>
    %443 = tpu.concatenate %385, %404, %423, %442 in 1 : vector<8x8xf32>, vector<8x8xf32>, vector<8x8xf32>, vector<8x8xf32> -> vector<8x32xf32>
    %444 = tpu.concatenate %366, %443 in 0 : vector<8x32xf32>, vector<8x32xf32> -> vector<16x32xf32>
    %445 = arith.truncf %444 : vector<16x32xf32> to vector<16x32xbf16>
    %cst_120 = arith.constant dense<0.000000e+00> : vector<16x32xf32>
    %446 = tpu.matmul %445, %266, %cst_120 {dimension_numbers = #tpu.dot_dimension_numbers<[1], [0], [0], [1], [0, 0, 1, 1], [], []>} : vector<16x32xbf16>, vector<32x32xbf16>, vector<16x32xf32> -> vector<16x32xf32>
    %447 = arith.addf %18, %446 : vector<16x32xf32>
    %448 = arith.mulf %447, %447 : vector<16x32xf32>
    %cst_121 = arith.constant dense<0.000000e+00> : vector<16xf32>
    %449 = vector.multi_reduction <add>, %448, %cst_121 [1] : vector<16x32xf32> to vector<16xf32>
    %450 = vector.shape_cast %449 : vector<16xf32> to vector<16x1xf32>
    %cst_122 = arith.constant 3.200000e+01 : f32
    %451 = vector.broadcast %cst_122 : f32 to vector<16x1xf32>
    %452 = arith.divf %450, %451 : vector<16x1xf32>
    %cst_123 = arith.constant 9.99999997E-7 : f32
    %453 = vector.broadcast %cst_123 : f32 to vector<16x1xf32>
    %454 = arith.addf %452, %453 : vector<16x1xf32>
    %455 = math.rsqrt %454 : vector<16x1xf32>
    %456 = vector.broadcast %455 : vector<16x1xf32> to vector<16x32xf32>
    %457 = arith.mulf %447, %456 : vector<16x32xf32>
    %458 = vector.broadcast %261 : vector<1x32xf32> to vector<16x32xf32>
    %459 = arith.mulf %457, %458 : vector<16x32xf32>
    %460 = arith.truncf %459 : vector<16x32xf32> to vector<16x32xbf16>
    %cst_124 = arith.constant dense<0.000000e+00> : vector<16x32xf32>
    %461 = tpu.matmul %460, %267, %cst_124 {dimension_numbers = #tpu.dot_dimension_numbers<[1], [0], [0], [1], [0, 0, 1, 1], [], []>} : vector<16x32xbf16>, vector<32x32xbf16>, vector<16x32xf32> -> vector<16x32xf32>
    %cst_125 = arith.constant dense<0.000000e+00> : vector<16x64xf32>
    %462 = tpu.matmul %259, %265, %cst_125 {dimension_numbers = #tpu.dot_dimension_numbers<[1], [0], [0], [1], [0, 0, 1, 1], [], []>} : vector<16x32xbf16>, vector<32x64xbf16>, vector<16x64xf32> -> vector<16x64xf32>
    %463 = vector.extract_strided_slice %462 {offsets = [0, 0], sizes = [16, 32], strides = [1, 1]} : vector<16x64xf32> to vector<16x32xf32>
    %464 = vector.extract_strided_slice %462 {offsets = [0, 32], sizes = [16, 32], strides = [1, 1]} : vector<16x64xf32> to vector<16x32xf32>
    %465 = arith.truncf %461 : vector<16x32xf32> to vector<16x32xbf16>
    %466 = arith.truncf %463 : vector<16x32xf32> to vector<16x32xbf16>
    %467 = arith.truncf %464 : vector<16x32xf32> to vector<16x32xbf16>
    %468 = vector.extract_strided_slice %465 {offsets = [0, 0], sizes = [8, 8], strides = [1, 1]} : vector<16x32xbf16> to vector<8x8xbf16>
    %469 = vector.extract_strided_slice %466 {offsets = [0, 0], sizes = [8, 8], strides = [1, 1]} : vector<16x32xbf16> to vector<8x8xbf16>
    %cst_126 = arith.constant dense<0.000000e+00> : vector<8x8xf32>
    %470 = tpu.matmul %468, %469, %cst_126 {dimension_numbers = #tpu.dot_dimension_numbers<[1], [1], [0], [0], [0, 0, 1, 0], [], []>} : vector<8x8xbf16>, vector<8x8xbf16>, vector<8x8xf32> -> vector<8x8xf32>
    %471 = vector.extract_strided_slice %5 {offsets = [0, 0], sizes = [1, 8], strides = [1, 1]} : vector<2x8xf32> to vector<1x8xf32>
    %472 = vector.broadcast %471 : vector<1x8xf32> to vector<8x8xf32>
    %473 = arith.addf %470, %472 : vector<8x8xf32>
    %cst_127 = arith.constant dense<0xFF800000> : vector<8xf32>
    %474 = vector.multi_reduction <maximumf>, %473, %cst_127 [1] : vector<8x8xf32> to vector<8xf32>
    %475 = vector.shape_cast %474 : vector<8xf32> to vector<8x1xf32>
    %476 = vector.broadcast %475 : vector<8x1xf32> to vector<8x8xf32>
    %477 = arith.subf %473, %476 : vector<8x8xf32>
    %478 = math.exp %477 : vector<8x8xf32>
    %cst_128 = arith.constant dense<0.000000e+00> : vector<8xf32>
    %479 = vector.multi_reduction <add>, %478, %cst_128 [1] : vector<8x8xf32> to vector<8xf32>
    %480 = vector.shape_cast %479 : vector<8xf32> to vector<8x1xf32>
    %481 = tpu.reciprocal %480 : vector<8x1xf32> -> vector<8x1xf32>
    %482 = vector.broadcast %481 : vector<8x1xf32> to vector<8x8xf32>
    %483 = arith.mulf %478, %482 : vector<8x8xf32>
    %484 = arith.truncf %483 : vector<8x8xf32> to vector<8x8xbf16>
    %485 = vector.extract_strided_slice %467 {offsets = [0, 0], sizes = [8, 8], strides = [1, 1]} : vector<16x32xbf16> to vector<8x8xbf16>
    %cst_129 = arith.constant dense<0.000000e+00> : vector<8x8xf32>
    %486 = tpu.matmul %484, %485, %cst_129 {dimension_numbers = #tpu.dot_dimension_numbers<[1], [0], [0], [1], [0, 0, 1, 1], [], []>} : vector<8x8xbf16>, vector<8x8xbf16>, vector<8x8xf32> -> vector<8x8xf32>
    %487 = vector.extract_strided_slice %465 {offsets = [0, 8], sizes = [8, 8], strides = [1, 1]} : vector<16x32xbf16> to vector<8x8xbf16>
    %488 = vector.extract_strided_slice %466 {offsets = [0, 8], sizes = [8, 8], strides = [1, 1]} : vector<16x32xbf16> to vector<8x8xbf16>
    %cst_130 = arith.constant dense<0.000000e+00> : vector<8x8xf32>
    %489 = tpu.matmul %487, %488, %cst_130 {dimension_numbers = #tpu.dot_dimension_numbers<[1], [1], [0], [0], [0, 0, 1, 0], [], []>} : vector<8x8xbf16>, vector<8x8xbf16>, vector<8x8xf32> -> vector<8x8xf32>
    %490 = vector.extract_strided_slice %5 {offsets = [0, 0], sizes = [1, 8], strides = [1, 1]} : vector<2x8xf32> to vector<1x8xf32>
    %491 = vector.broadcast %490 : vector<1x8xf32> to vector<8x8xf32>
    %492 = arith.addf %489, %491 : vector<8x8xf32>
    %cst_131 = arith.constant dense<0xFF800000> : vector<8xf32>
    %493 = vector.multi_reduction <maximumf>, %492, %cst_131 [1] : vector<8x8xf32> to vector<8xf32>
    %494 = vector.shape_cast %493 : vector<8xf32> to vector<8x1xf32>
    %495 = vector.broadcast %494 : vector<8x1xf32> to vector<8x8xf32>
    %496 = arith.subf %492, %495 : vector<8x8xf32>
    %497 = math.exp %496 : vector<8x8xf32>
    %cst_132 = arith.constant dense<0.000000e+00> : vector<8xf32>
    %498 = vector.multi_reduction <add>, %497, %cst_132 [1] : vector<8x8xf32> to vector<8xf32>
    %499 = vector.shape_cast %498 : vector<8xf32> to vector<8x1xf32>
    %500 = tpu.reciprocal %499 : vector<8x1xf32> -> vector<8x1xf32>
    %501 = vector.broadcast %500 : vector<8x1xf32> to vector<8x8xf32>
    %502 = arith.mulf %497, %501 : vector<8x8xf32>
    %503 = arith.truncf %502 : vector<8x8xf32> to vector<8x8xbf16>
    %504 = vector.extract_strided_slice %467 {offsets = [0, 8], sizes = [8, 8], strides = [1, 1]} : vector<16x32xbf16> to vector<8x8xbf16>
    %cst_133 = arith.constant dense<0.000000e+00> : vector<8x8xf32>
    %505 = tpu.matmul %503, %504, %cst_133 {dimension_numbers = #tpu.dot_dimension_numbers<[1], [0], [0], [1], [0, 0, 1, 1], [], []>} : vector<8x8xbf16>, vector<8x8xbf16>, vector<8x8xf32> -> vector<8x8xf32>
    %506 = vector.extract_strided_slice %465 {offsets = [0, 16], sizes = [8, 8], strides = [1, 1]} : vector<16x32xbf16> to vector<8x8xbf16>
    %507 = vector.extract_strided_slice %466 {offsets = [0, 16], sizes = [8, 8], strides = [1, 1]} : vector<16x32xbf16> to vector<8x8xbf16>
    %cst_134 = arith.constant dense<0.000000e+00> : vector<8x8xf32>
    %508 = tpu.matmul %506, %507, %cst_134 {dimension_numbers = #tpu.dot_dimension_numbers<[1], [1], [0], [0], [0, 0, 1, 0], [], []>} : vector<8x8xbf16>, vector<8x8xbf16>, vector<8x8xf32> -> vector<8x8xf32>
    %509 = vector.extract_strided_slice %5 {offsets = [0, 0], sizes = [1, 8], strides = [1, 1]} : vector<2x8xf32> to vector<1x8xf32>
    %510 = vector.broadcast %509 : vector<1x8xf32> to vector<8x8xf32>
    %511 = arith.addf %508, %510 : vector<8x8xf32>
    %cst_135 = arith.constant dense<0xFF800000> : vector<8xf32>
    %512 = vector.multi_reduction <maximumf>, %511, %cst_135 [1] : vector<8x8xf32> to vector<8xf32>
    %513 = vector.shape_cast %512 : vector<8xf32> to vector<8x1xf32>
    %514 = vector.broadcast %513 : vector<8x1xf32> to vector<8x8xf32>
    %515 = arith.subf %511, %514 : vector<8x8xf32>
    %516 = math.exp %515 : vector<8x8xf32>
    %cst_136 = arith.constant dense<0.000000e+00> : vector<8xf32>
    %517 = vector.multi_reduction <add>, %516, %cst_136 [1] : vector<8x8xf32> to vector<8xf32>
    %518 = vector.shape_cast %517 : vector<8xf32> to vector<8x1xf32>
    %519 = tpu.reciprocal %518 : vector<8x1xf32> -> vector<8x1xf32>
    %520 = vector.broadcast %519 : vector<8x1xf32> to vector<8x8xf32>
    %521 = arith.mulf %516, %520 : vector<8x8xf32>
    %522 = arith.truncf %521 : vector<8x8xf32> to vector<8x8xbf16>
    %523 = vector.extract_strided_slice %467 {offsets = [0, 16], sizes = [8, 8], strides = [1, 1]} : vector<16x32xbf16> to vector<8x8xbf16>
    %cst_137 = arith.constant dense<0.000000e+00> : vector<8x8xf32>
    %524 = tpu.matmul %522, %523, %cst_137 {dimension_numbers = #tpu.dot_dimension_numbers<[1], [0], [0], [1], [0, 0, 1, 1], [], []>} : vector<8x8xbf16>, vector<8x8xbf16>, vector<8x8xf32> -> vector<8x8xf32>
    %525 = vector.extract_strided_slice %465 {offsets = [0, 24], sizes = [8, 8], strides = [1, 1]} : vector<16x32xbf16> to vector<8x8xbf16>
    %526 = vector.extract_strided_slice %466 {offsets = [0, 24], sizes = [8, 8], strides = [1, 1]} : vector<16x32xbf16> to vector<8x8xbf16>
    %cst_138 = arith.constant dense<0.000000e+00> : vector<8x8xf32>
    %527 = tpu.matmul %525, %526, %cst_138 {dimension_numbers = #tpu.dot_dimension_numbers<[1], [1], [0], [0], [0, 0, 1, 0], [], []>} : vector<8x8xbf16>, vector<8x8xbf16>, vector<8x8xf32> -> vector<8x8xf32>
    %528 = vector.extract_strided_slice %5 {offsets = [0, 0], sizes = [1, 8], strides = [1, 1]} : vector<2x8xf32> to vector<1x8xf32>
    %529 = vector.broadcast %528 : vector<1x8xf32> to vector<8x8xf32>
    %530 = arith.addf %527, %529 : vector<8x8xf32>
    %cst_139 = arith.constant dense<0xFF800000> : vector<8xf32>
    %531 = vector.multi_reduction <maximumf>, %530, %cst_139 [1] : vector<8x8xf32> to vector<8xf32>
    %532 = vector.shape_cast %531 : vector<8xf32> to vector<8x1xf32>
    %533 = vector.broadcast %532 : vector<8x1xf32> to vector<8x8xf32>
    %534 = arith.subf %530, %533 : vector<8x8xf32>
    %535 = math.exp %534 : vector<8x8xf32>
    %cst_140 = arith.constant dense<0.000000e+00> : vector<8xf32>
    %536 = vector.multi_reduction <add>, %535, %cst_140 [1] : vector<8x8xf32> to vector<8xf32>
    %537 = vector.shape_cast %536 : vector<8xf32> to vector<8x1xf32>
    %538 = tpu.reciprocal %537 : vector<8x1xf32> -> vector<8x1xf32>
    %539 = vector.broadcast %538 : vector<8x1xf32> to vector<8x8xf32>
    %540 = arith.mulf %535, %539 : vector<8x8xf32>
    %541 = arith.truncf %540 : vector<8x8xf32> to vector<8x8xbf16>
    %542 = vector.extract_strided_slice %467 {offsets = [0, 24], sizes = [8, 8], strides = [1, 1]} : vector<16x32xbf16> to vector<8x8xbf16>
    %cst_141 = arith.constant dense<0.000000e+00> : vector<8x8xf32>
    %543 = tpu.matmul %541, %542, %cst_141 {dimension_numbers = #tpu.dot_dimension_numbers<[1], [0], [0], [1], [0, 0, 1, 1], [], []>} : vector<8x8xbf16>, vector<8x8xbf16>, vector<8x8xf32> -> vector<8x8xf32>
    %544 = tpu.concatenate %486, %505, %524, %543 in 1 : vector<8x8xf32>, vector<8x8xf32>, vector<8x8xf32>, vector<8x8xf32> -> vector<8x32xf32>
    %545 = vector.extract_strided_slice %465 {offsets = [8, 0], sizes = [8, 8], strides = [1, 1]} : vector<16x32xbf16> to vector<8x8xbf16>
    %546 = vector.extract_strided_slice %466 {offsets = [8, 0], sizes = [8, 8], strides = [1, 1]} : vector<16x32xbf16> to vector<8x8xbf16>
    %cst_142 = arith.constant dense<0.000000e+00> : vector<8x8xf32>
    %547 = tpu.matmul %545, %546, %cst_142 {dimension_numbers = #tpu.dot_dimension_numbers<[1], [1], [0], [0], [0, 0, 1, 0], [], []>} : vector<8x8xbf16>, vector<8x8xbf16>, vector<8x8xf32> -> vector<8x8xf32>
    %548 = vector.extract_strided_slice %5 {offsets = [1, 0], sizes = [1, 8], strides = [1, 1]} : vector<2x8xf32> to vector<1x8xf32>
    %549 = vector.broadcast %548 : vector<1x8xf32> to vector<8x8xf32>
    %550 = arith.addf %547, %549 : vector<8x8xf32>
    %cst_143 = arith.constant dense<0xFF800000> : vector<8xf32>
    %551 = vector.multi_reduction <maximumf>, %550, %cst_143 [1] : vector<8x8xf32> to vector<8xf32>
    %552 = vector.shape_cast %551 : vector<8xf32> to vector<8x1xf32>
    %553 = vector.broadcast %552 : vector<8x1xf32> to vector<8x8xf32>
    %554 = arith.subf %550, %553 : vector<8x8xf32>
    %555 = math.exp %554 : vector<8x8xf32>
    %cst_144 = arith.constant dense<0.000000e+00> : vector<8xf32>
    %556 = vector.multi_reduction <add>, %555, %cst_144 [1] : vector<8x8xf32> to vector<8xf32>
    %557 = vector.shape_cast %556 : vector<8xf32> to vector<8x1xf32>
    %558 = tpu.reciprocal %557 : vector<8x1xf32> -> vector<8x1xf32>
    %559 = vector.broadcast %558 : vector<8x1xf32> to vector<8x8xf32>
    %560 = arith.mulf %555, %559 : vector<8x8xf32>
    %561 = arith.truncf %560 : vector<8x8xf32> to vector<8x8xbf16>
    %562 = vector.extract_strided_slice %467 {offsets = [8, 0], sizes = [8, 8], strides = [1, 1]} : vector<16x32xbf16> to vector<8x8xbf16>
    %cst_145 = arith.constant dense<0.000000e+00> : vector<8x8xf32>
    %563 = tpu.matmul %561, %562, %cst_145 {dimension_numbers = #tpu.dot_dimension_numbers<[1], [0], [0], [1], [0, 0, 1, 1], [], []>} : vector<8x8xbf16>, vector<8x8xbf16>, vector<8x8xf32> -> vector<8x8xf32>
    %564 = vector.extract_strided_slice %465 {offsets = [8, 8], sizes = [8, 8], strides = [1, 1]} : vector<16x32xbf16> to vector<8x8xbf16>
    %565 = vector.extract_strided_slice %466 {offsets = [8, 8], sizes = [8, 8], strides = [1, 1]} : vector<16x32xbf16> to vector<8x8xbf16>
    %cst_146 = arith.constant dense<0.000000e+00> : vector<8x8xf32>
    %566 = tpu.matmul %564, %565, %cst_146 {dimension_numbers = #tpu.dot_dimension_numbers<[1], [1], [0], [0], [0, 0, 1, 0], [], []>} : vector<8x8xbf16>, vector<8x8xbf16>, vector<8x8xf32> -> vector<8x8xf32>
    %567 = vector.extract_strided_slice %5 {offsets = [1, 0], sizes = [1, 8], strides = [1, 1]} : vector<2x8xf32> to vector<1x8xf32>
    %568 = vector.broadcast %567 : vector<1x8xf32> to vector<8x8xf32>
    %569 = arith.addf %566, %568 : vector<8x8xf32>
    %cst_147 = arith.constant dense<0xFF800000> : vector<8xf32>
    %570 = vector.multi_reduction <maximumf>, %569, %cst_147 [1] : vector<8x8xf32> to vector<8xf32>
    %571 = vector.shape_cast %570 : vector<8xf32> to vector<8x1xf32>
    %572 = vector.broadcast %571 : vector<8x1xf32> to vector<8x8xf32>
    %573 = arith.subf %569, %572 : vector<8x8xf32>
    %574 = math.exp %573 : vector<8x8xf32>
    %cst_148 = arith.constant dense<0.000000e+00> : vector<8xf32>
    %575 = vector.multi_reduction <add>, %574, %cst_148 [1] : vector<8x8xf32> to vector<8xf32>
    %576 = vector.shape_cast %575 : vector<8xf32> to vector<8x1xf32>
    %577 = tpu.reciprocal %576 : vector<8x1xf32> -> vector<8x1xf32>
    %578 = vector.broadcast %577 : vector<8x1xf32> to vector<8x8xf32>
    %579 = arith.mulf %574, %578 : vector<8x8xf32>
    %580 = arith.truncf %579 : vector<8x8xf32> to vector<8x8xbf16>
    %581 = vector.extract_strided_slice %467 {offsets = [8, 8], sizes = [8, 8], strides = [1, 1]} : vector<16x32xbf16> to vector<8x8xbf16>
    %cst_149 = arith.constant dense<0.000000e+00> : vector<8x8xf32>
    %582 = tpu.matmul %580, %581, %cst_149 {dimension_numbers = #tpu.dot_dimension_numbers<[1], [0], [0], [1], [0, 0, 1, 1], [], []>} : vector<8x8xbf16>, vector<8x8xbf16>, vector<8x8xf32> -> vector<8x8xf32>
    %583 = vector.extract_strided_slice %465 {offsets = [8, 16], sizes = [8, 8], strides = [1, 1]} : vector<16x32xbf16> to vector<8x8xbf16>
    %584 = vector.extract_strided_slice %466 {offsets = [8, 16], sizes = [8, 8], strides = [1, 1]} : vector<16x32xbf16> to vector<8x8xbf16>
    %cst_150 = arith.constant dense<0.000000e+00> : vector<8x8xf32>
    %585 = tpu.matmul %583, %584, %cst_150 {dimension_numbers = #tpu.dot_dimension_numbers<[1], [1], [0], [0], [0, 0, 1, 0], [], []>} : vector<8x8xbf16>, vector<8x8xbf16>, vector<8x8xf32> -> vector<8x8xf32>
    %586 = vector.extract_strided_slice %5 {offsets = [1, 0], sizes = [1, 8], strides = [1, 1]} : vector<2x8xf32> to vector<1x8xf32>
    %587 = vector.broadcast %586 : vector<1x8xf32> to vector<8x8xf32>
    %588 = arith.addf %585, %587 : vector<8x8xf32>
    %cst_151 = arith.constant dense<0xFF800000> : vector<8xf32>
    %589 = vector.multi_reduction <maximumf>, %588, %cst_151 [1] : vector<8x8xf32> to vector<8xf32>
    %590 = vector.shape_cast %589 : vector<8xf32> to vector<8x1xf32>
    %591 = vector.broadcast %590 : vector<8x1xf32> to vector<8x8xf32>
    %592 = arith.subf %588, %591 : vector<8x8xf32>
    %593 = math.exp %592 : vector<8x8xf32>
    %cst_152 = arith.constant dense<0.000000e+00> : vector<8xf32>
    %594 = vector.multi_reduction <add>, %593, %cst_152 [1] : vector<8x8xf32> to vector<8xf32>
    %595 = vector.shape_cast %594 : vector<8xf32> to vector<8x1xf32>
    %596 = tpu.reciprocal %595 : vector<8x1xf32> -> vector<8x1xf32>
    %597 = vector.broadcast %596 : vector<8x1xf32> to vector<8x8xf32>
    %598 = arith.mulf %593, %597 : vector<8x8xf32>
    %599 = arith.truncf %598 : vector<8x8xf32> to vector<8x8xbf16>
    %600 = vector.extract_strided_slice %467 {offsets = [8, 16], sizes = [8, 8], strides = [1, 1]} : vector<16x32xbf16> to vector<8x8xbf16>
    %cst_153 = arith.constant dense<0.000000e+00> : vector<8x8xf32>
    %601 = tpu.matmul %599, %600, %cst_153 {dimension_numbers = #tpu.dot_dimension_numbers<[1], [0], [0], [1], [0, 0, 1, 1], [], []>} : vector<8x8xbf16>, vector<8x8xbf16>, vector<8x8xf32> -> vector<8x8xf32>
    %602 = vector.extract_strided_slice %465 {offsets = [8, 24], sizes = [8, 8], strides = [1, 1]} : vector<16x32xbf16> to vector<8x8xbf16>
    %603 = vector.extract_strided_slice %466 {offsets = [8, 24], sizes = [8, 8], strides = [1, 1]} : vector<16x32xbf16> to vector<8x8xbf16>
    %cst_154 = arith.constant dense<0.000000e+00> : vector<8x8xf32>
    %604 = tpu.matmul %602, %603, %cst_154 {dimension_numbers = #tpu.dot_dimension_numbers<[1], [1], [0], [0], [0, 0, 1, 0], [], []>} : vector<8x8xbf16>, vector<8x8xbf16>, vector<8x8xf32> -> vector<8x8xf32>
    %605 = vector.extract_strided_slice %5 {offsets = [1, 0], sizes = [1, 8], strides = [1, 1]} : vector<2x8xf32> to vector<1x8xf32>
    %606 = vector.broadcast %605 : vector<1x8xf32> to vector<8x8xf32>
    %607 = arith.addf %604, %606 : vector<8x8xf32>
    %cst_155 = arith.constant dense<0xFF800000> : vector<8xf32>
    %608 = vector.multi_reduction <maximumf>, %607, %cst_155 [1] : vector<8x8xf32> to vector<8xf32>
    %609 = vector.shape_cast %608 : vector<8xf32> to vector<8x1xf32>
    %610 = vector.broadcast %609 : vector<8x1xf32> to vector<8x8xf32>
    %611 = arith.subf %607, %610 : vector<8x8xf32>
    %612 = math.exp %611 : vector<8x8xf32>
    %cst_156 = arith.constant dense<0.000000e+00> : vector<8xf32>
    %613 = vector.multi_reduction <add>, %612, %cst_156 [1] : vector<8x8xf32> to vector<8xf32>
    %614 = vector.shape_cast %613 : vector<8xf32> to vector<8x1xf32>
    %615 = tpu.reciprocal %614 : vector<8x1xf32> -> vector<8x1xf32>
    %616 = vector.broadcast %615 : vector<8x1xf32> to vector<8x8xf32>
    %617 = arith.mulf %612, %616 : vector<8x8xf32>
    %618 = arith.truncf %617 : vector<8x8xf32> to vector<8x8xbf16>
    %619 = vector.extract_strided_slice %467 {offsets = [8, 24], sizes = [8, 8], strides = [1, 1]} : vector<16x32xbf16> to vector<8x8xbf16>
    %cst_157 = arith.constant dense<0.000000e+00> : vector<8x8xf32>
    %620 = tpu.matmul %618, %619, %cst_157 {dimension_numbers = #tpu.dot_dimension_numbers<[1], [0], [0], [1], [0, 0, 1, 1], [], []>} : vector<8x8xbf16>, vector<8x8xbf16>, vector<8x8xf32> -> vector<8x8xf32>
    %621 = tpu.concatenate %563, %582, %601, %620 in 1 : vector<8x8xf32>, vector<8x8xf32>, vector<8x8xf32>, vector<8x8xf32> -> vector<8x32xf32>
    %622 = tpu.concatenate %544, %621 in 0 : vector<8x32xf32>, vector<8x32xf32> -> vector<16x32xf32>
    %623 = arith.truncf %622 : vector<16x32xf32> to vector<16x32xbf16>
    %cst_158 = arith.constant dense<0.000000e+00> : vector<16x32xf32>
    %624 = tpu.matmul %623, %268, %cst_158 {dimension_numbers = #tpu.dot_dimension_numbers<[1], [0], [0], [1], [0, 0, 1, 1], [], []>} : vector<16x32xbf16>, vector<32x32xbf16>, vector<16x32xf32> -> vector<16x32xf32>
    %625 = arith.addf %447, %624 : vector<16x32xf32>
    %626 = arith.mulf %625, %625 : vector<16x32xf32>
    %cst_159 = arith.constant dense<0.000000e+00> : vector<16xf32>
    %627 = vector.multi_reduction <add>, %626, %cst_159 [1] : vector<16x32xf32> to vector<16xf32>
    %628 = vector.shape_cast %627 : vector<16xf32> to vector<16x1xf32>
    %cst_160 = arith.constant 3.200000e+01 : f32
    %629 = vector.broadcast %cst_160 : f32 to vector<16x1xf32>
    %630 = arith.divf %628, %629 : vector<16x1xf32>
    %cst_161 = arith.constant 9.99999997E-7 : f32
    %631 = vector.broadcast %cst_161 : f32 to vector<16x1xf32>
    %632 = arith.addf %630, %631 : vector<16x1xf32>
    %633 = math.rsqrt %632 : vector<16x1xf32>
    %634 = vector.broadcast %633 : vector<16x1xf32> to vector<16x32xf32>
    %635 = arith.mulf %625, %634 : vector<16x32xf32>
    %636 = vector.broadcast %262 : vector<1x32xf32> to vector<16x32xf32>
    %637 = arith.mulf %635, %636 : vector<16x32xf32>
    %638 = arith.truncf %637 : vector<16x32xf32> to vector<16x32xbf16>
    %cst_162 = arith.constant dense<0.000000e+00> : vector<16x64xf32>
    %639 = tpu.matmul %638, %264, %cst_162 {dimension_numbers = #tpu.dot_dimension_numbers<[1], [0], [0], [1], [0, 0, 1, 1], [], []>} : vector<16x32xbf16>, vector<32x64xbf16>, vector<16x64xf32> -> vector<16x64xf32>
    %cst_163 = arith.constant 0.000000e+00 : f32
    %640 = vector.broadcast %cst_163 : f32 to vector<16x64xf32>
    %641 = arith.maximumf %639, %640 : vector<16x64xf32>
    %642 = arith.truncf %641 : vector<16x64xf32> to vector<16x64xbf16>
    %cst_164 = arith.constant dense<0.000000e+00> : vector<16x32xf32>
    %643 = tpu.matmul %642, %269, %cst_164 {dimension_numbers = #tpu.dot_dimension_numbers<[1], [0], [0], [1], [0, 0, 1, 1], [], []>} : vector<16x64xbf16>, vector<64x32xbf16>, vector<16x32xf32> -> vector<16x32xf32>
    %644 = arith.addf %625, %643 : vector<16x32xf32>
    %c6 = arith.constant 6 : index
    %c0_165 = arith.constant 0 : index
    %645 = vector.load %arg7[%c6, %c0_165] : memref<7x32xf32, #tpu.memory_space<vmem>>, vector<1x32xf32>
    %646 = arith.mulf %644, %644 : vector<16x32xf32>
    %cst_166 = arith.constant dense<0.000000e+00> : vector<16xf32>
    %647 = vector.multi_reduction <add>, %646, %cst_166 [1] : vector<16x32xf32> to vector<16xf32>
    %648 = vector.shape_cast %647 : vector<16xf32> to vector<16x1xf32>
    %cst_167 = arith.constant 3.200000e+01 : f32
    %649 = vector.broadcast %cst_167 : f32 to vector<16x1xf32>
    %650 = arith.divf %648, %649 : vector<16x1xf32>
    %cst_168 = arith.constant 9.99999997E-7 : f32
    %651 = vector.broadcast %cst_168 : f32 to vector<16x1xf32>
    %652 = arith.addf %650, %651 : vector<16x1xf32>
    %653 = math.rsqrt %652 : vector<16x1xf32>
    %654 = vector.broadcast %653 : vector<16x1xf32> to vector<16x32xf32>
    %655 = arith.mulf %644, %654 : vector<16x32xf32>
    %656 = vector.broadcast %645 : vector<1x32xf32> to vector<16x32xf32>
    %657 = arith.mulf %655, %656 : vector<16x32xf32>
    %cst_169 = arith.constant 0.176776692 : f32
    %658 = vector.broadcast %cst_169 : f32 to vector<16x32xf32>
    %659 = arith.mulf %657, %658 : vector<16x32xf32>
    %660 = arith.truncf %659 : vector<16x32xf32> to vector<16x32xbf16>
    %cst_170 = arith.constant dense<0.000000e+00> : vector<16x128xf32>
    %661 = tpu.matmul %660, %0, %cst_170 {dimension_numbers = #tpu.dot_dimension_numbers<[1], [1], [0], [0], [0, 0, 1, 0], [], []>} : vector<16x32xbf16>, vector<128x32xbf16>, vector<16x128xf32> -> vector<16x128xf32>
    %c0_171 = arith.constant 0 : index
    %c0_172 = arith.constant 0 : index
    %662 = vector.load %arg8[%c0_171, %c0_172] : memref<16x128xf32, #tpu.memory_space<vmem>>, vector<16x128xf32>
    tpu.vector_store %arg8[%c0_171, %c0_172], %661 {strides = array<i32>} : memref<16x128xf32, #tpu.memory_space<vmem>>, vector<16x128xf32>,
    return
  }
}

</mosaic_0001>

<llo_original>
// kernel: scoring_model_forward.1
$region0: #{scoring_model_forward.1}
  #allocation0 [shape = 'u32[]', space=smem, size = 0x4, offset = 0x4, fixed_abs, tag = 'smem constant byte address 0x4 - core index']
  #allocation1 [shape = 'u32[144,128]{1,0:T(1,128)}', space=vmem, size = 0x12000, scoped, tag = 'internal scratch']
  %s0 = inlined_call_operand.vmem [shape: s32[32,1], index: 0, kind: input, shape index: {}]
  %s1 = inlined_call_operand.vmem [shape: f32[2,8], index: 1, kind: input, shape index: {}]
  %s2 = inlined_call_operand.vmem [shape: f32[8,8,8], index: 2, kind: input, shape index: {}]
  %s3 = inlined_call_operand.vmem [shape: bf16[128,32], index: 3, kind: input, shape index: {}]
  %s4 = inlined_call_operand.vmem [shape: bf16[64,96], index: 4, kind: input, shape index: {}]
  %s5 = inlined_call_operand.vmem [shape: bf16[96,64], index: 5, kind: input, shape index: {}]
  %s6 = inlined_call_operand.vmem [shape: bf16[256,32], index: 6, kind: input, shape index: {}]
  %s7 = inlined_call_operand.vmem [shape: f32[7,32], index: 7, kind: input, shape index: {}]
  %s8 = inlined_call_operand.vmem [shape: f32[16,128], index: 8, kind: output, shape index: {}]
  %s9 = sld [smem:[#allocation0]]
  $region42: #{scoring_model_forward.1} parent=0
    _
  %s11 = ssub.s32 1, %s9
  %s12 = scalar_select 0, %s11, %s9
  // Predicated region
  $region2: #{scoring_model_forward.1} parent=0 // pred_check
    _
  $region3: #{scoring_model_forward.1} parent=0 // pred_check_branch
    %14 = sbr.rel (0) target = $region5
  $region4: #{scoring_model_forward.1} parent=0 // pred_region
    _
  $region5: #{scoring_model_forward.1} parent=0 // pred_fallthru
    _
  // Predicated region
  $region6: #{scoring_model_forward.1} parent=0 // pred_check
    _
  $region7: #{scoring_model_forward.1} parent=0 // pred_check_branch
    %16 = sbr.rel (0) target = $region9
  $region8: #{scoring_model_forward.1} parent=0 // pred_region
    _
  $region9: #{scoring_model_forward.1} parent=0 // pred_fallthru
    _
  // Predicated region
  $region10: #{scoring_model_forward.1} parent=0 // pred_check
    _
  $region11: #{scoring_model_forward.1} parent=0 // pred_check_branch
    %18 = sbr.rel (0) target = $region13
  $region12: #{scoring_model_forward.1} parent=0 // pred_region
    _
  $region13: #{scoring_model_forward.1} parent=0 // pred_fallthru
    _
  // Predicated region
  $region14: #{scoring_model_forward.1} parent=0 // pred_check
    _
  $region15: #{scoring_model_forward.1} parent=0 // pred_check_branch
    %20 = sbr.rel (0) target = $region17
  $region16: #{scoring_model_forward.1} parent=0 // pred_region
    _
  $region17: #{scoring_model_forward.1} parent=0 // pred_fallthru
    _
  // Predicated region
  $region18: #{scoring_model_forward.1} parent=0 // pred_check
    _
  $region19: #{scoring_model_forward.1} parent=0 // pred_check_branch
    %22 = sbr.rel (0) target = $region21
  $region20: #{scoring_model_forward.1} parent=0 // pred_region
    _
  $region21: #{scoring_model_forward.1} parent=0 // pred_fallthru
    _
  // Predicated region
  $region22: #{scoring_model_forward.1} parent=0 // pred_check
    _
  $region23: #{scoring_model_forward.1} parent=0 // pred_check_branch
    %24 = sbr.rel (0) target = $region25
  $region24: #{scoring_model_forward.1} parent=0 // pred_region
    _
  $region25: #{scoring_model_forward.1} parent=0 // pred_fallthru
    _
  // Predicated region
  $region26: #{scoring_model_forward.1} parent=0 // pred_check
    _
  $region27: #{scoring_model_forward.1} parent=0 // pred_check_branch
    %26 = sbr.rel (0) target = $region29
  $region28: #{scoring_model_forward.1} parent=0 // pred_region
    _
  $region29: #{scoring_model_forward.1} parent=0 // pred_fallthru
    _
  // Predicated region
  $region30: #{scoring_model_forward.1} parent=0 // pred_check
    _
  $region31: #{scoring_model_forward.1} parent=0 // pred_check_branch
    %28 = sbr.rel (0) target = $region33
  $region32: #{scoring_model_forward.1} parent=0 // pred_region
    _
  $region33: #{scoring_model_forward.1} parent=0 // pred_fallthru
    _
  %v30 = vld [vmem:[%s3] sm:$0xf]
  %v31 = vld [vmem:[%s3 + $0x4] sm:$0xf]
  %v32 = vld [vmem:[%s3 + $0x8] sm:$0xf]
  %v33 = vld [vmem:[%s3 + $0xc] sm:$0xf]
  %v34 = vld [vmem:[%s3 + $0x10] sm:$0xf]
  %v35 = vld [vmem:[%s3 + $0x14] sm:$0xf]
  %v36 = vld [vmem:[%s3 + $0x18] sm:$0xf]
  %v37 = vld [vmem:[%s3 + $0x1c] sm:$0xf]
  %v38 = vld [vmem:[%s3 + $0x20] sm:$0xf]
  %v39 = vld [vmem:[%s3 + $0x24] sm:$0xf]
  %v40 = vld [vmem:[%s3 + $0x28] sm:$0xf]
  %v41 = vld [vmem:[%s3 + $0x2c] sm:$0xf]
  %v42 = vld [vmem:[%s3 + $0x30] sm:$0xf]
  %v43 = vld [vmem:[%s3 + $0x34] sm:$0xf]
  %v44 = vld [vmem:[%s3 + $0x38] sm:$0xf]
  %v45 = vld [vmem:[%s3 + $0x3c] sm:$0xf]
  %v46 = vld [vmem:[%s1] sm:$0x3]
  %v47 = vsub.f32 1.0, %v46
  %v48 = vmul.f32 %v47, -1e+09
  %v49 = vld [vmem:[%s2] sm:$0xff]
  %v50 = vld [vmem:[%s2 + $0x8] sm:$0xff]
  %v51 = vld [vmem:[%s2 + $0x10] sm:$0xff]
  %v52 = vld [vmem:[%s2 + $0x18] sm:$0xff]
  %s53 = scalar_lea.vmem %s2, 32
  %v54 = vld [vmem:[%s53] sm:$0xff]
  %v55 = vld [vmem:[%s53 + $0x8] sm:$0xff]
  %v56 = vld [vmem:[%s53 + $0x10] sm:$0xff]
  %v57 = vld [vmem:[%s53 + $0x18] sm:$0xff]
  %v58 = vld [vmem:[%s0] sm:$0xff]
  %v59 = vld [vmem:[%s0 + $0x8] sm:$0xff]
  %v60 = vld [vmem:[%s0 + $0x10] sm:$0xff]
  %v61 = vld [vmem:[%s0 + $0x18] sm:$0xff]
  %v62 = vlaneseq
  %v63 = vand.u32 %v62, 127
  %64 = vset.pattern.permute.xlu0 0
  %65 = vperm.xlu0 %64, %v58
  %v66 = vpop.permute.xlu0 %65
  %67 = vset.pattern.permute.xlu0 0
  %68 = vperm.xlu0 %67, %v59
  %v69 = vpop.permute.xlu0 %68
  %70 = vset.pattern.permute.xlu0 0
  %71 = vperm.xlu0 %70, %v60
  %v72 = vpop.permute.xlu0 %71
  %73 = vset.pattern.permute.xlu0 0
  %74 = vperm.xlu0 %73, %v61
  %v75 = vpop.permute.xlu0 %74
  %vm76 = vcmp.eq.s32.totalorder %v66, %v63
  %vm77 = vcmp.eq.s32.totalorder %v69, %v63
  %vm78 = vcmp.eq.s32.totalorder %v72, %v63
  %vm79 = vcmp.eq.s32.totalorder %v75, %v63
  %v80 = vsel %vm76, 1.0, 0.0
  %v81 = vsel %vm77, 1.0, 0.0
  %v82 = vsel %vm78, 1.0, 0.0
  %v83 = vsel %vm79, 1.0, 0.0
  %v84 = vpack.c.bf16 %v81, %v80
  %v85 = vpack.c.bf16 %v83, %v82
  %v102 = vunpack.c.l.b16 %v30
  %v103 = vunpack.c.l.b16 %v31
  %v104 = vunpack.c.l.b16 %v32
  %v105 = vunpack.c.l.b16 %v33
  %v106 = vunpack.c.l.b16 %v34
  %v107 = vunpack.c.l.b16 %v35
  %v108 = vunpack.c.l.b16 %v36
  %v109 = vunpack.c.l.b16 %v37
  %v110 = vunpack.c.l.b16 %v38
  %v111 = vunpack.c.l.b16 %v39
  %v112 = vunpack.c.l.b16 %v40
  %v113 = vunpack.c.l.b16 %v41
  %v114 = vunpack.c.l.b16 %v42
  %v115 = vunpack.c.l.b16 %v43
  %v116 = vunpack.c.l.b16 %v44
  %v117 = vunpack.c.l.b16 %v45
  %v118 = vpack.c.b16 %v103, %v102
  %v119 = vpack.c.b16 %v105, %v104
  %v120 = vpack.c.b16 %v107, %v106
  %v121 = vpack.c.b16 %v109, %v108
  %v122 = vpack.c.b16 %v111, %v110
  %v123 = vpack.c.b16 %v113, %v112
  %v124 = vpack.c.b16 %v115, %v114
  %v125 = vpack.c.b16 %v117, %v116
  %134 = vmatprep.subr.bf16.mxu0 0
  %135 = vmatpush1.bf16.msra.mxu0 %v125
  %136 = vmatprep.subr.bf16.mxu0 0
  %137 = vmatpush1.bf16.msra.mxu0 %v124
  %138 = vmatprep.subr.bf16.mxu0 0
  %139 = vmatpush1.bf16.msra.mxu0 %v123
  %140 = vmatprep.subr.bf16.mxu0 0
  %141 = vmatpush1.bf16.msra.mxu0 %v122
  %142 = vmatprep.subr.bf16.mxu0 0
  %143 = vmatpush1.bf16.msra.mxu0 %v121
  %144 = vmatprep.subr.bf16.mxu0 0
  %145 = vmatpush1.bf16.msra.mxu0 %v120
  %146 = vmatprep.subr.bf16.mxu0 0
  %147 = vmatpush1.bf16.msra.mxu0 %v119
  %148 = vmatprep.subr.bf16.mxu0 0
  %149 = vmatpush1.bf16.msra.mxu0 %v118
  %150 = vmatprep.subr.bf16.mxu0 0
  %151 = vmatpush2.bf16.msra.mxu0 0
  %152 = vmatprep.subr.bf16.mxu0 0
  %153 = vmatpush2.bf16.msra.mxu0 0
  %154 = vmatprep.subr.bf16.mxu0 0
  %155 = vmatpush2.bf16.msra.mxu0 0
  %156 = vmatprep.subr.bf16.mxu0 0
  %157 = vmatpush2.bf16.msra.mxu0 0
  %158 = vmatprep.subr.bf16.mxu0 0
  %159 = vmatpush2.bf16.msra.mxu0 0
  %160 = vmatprep.subr.bf16.mxu0 0
  %161 = vmatpush2.bf16.msra.mxu0 0
  %162 = vmatprep.subr.bf16.mxu0 0
  %163 = vmatpush2.bf16.msra.mxu0 0
  %164 = vmatprep.subr.bf16.mxu0 0
  %165 = vmatpush2.bf16.msra.mxu0 0
  %166 = vmatprep.mubr.bf16.mxu0 0
  %167 = vmatmul.mubr.bf16.gmra.mxu0 %v84
  %v168 = vpop.f32.mrf.mxu0
  %v169 = vadd.f32 0.0, %v168
  %v170 = vpop.f32.mrf.mxu0
  %v171 = vpop.f32.mrf.mxu0
  %v172 = vadd.f32 0.0, %v171
  %v173 = vpop.f32.mrf.mxu0
  %174 = vmatprep.mubr.bf16.mxu0 0
  %175 = vmatmul.mubr.bf16.gmra.mxu0 %v85
  %v176 = vpop.f32.mrf.mxu0
  %v177 = vadd.f32 0.0, %v176
  %v178 = vpop.f32.mrf.mxu0
  %v179 = vpop.f32.mrf.mxu0
  %v180 = vadd.f32 0.0, %v179
  %v181 = vpop.f32.mrf.mxu0
  %182 = vdwg.mxu0
  %v183 = vld [vmem:[%s7] sm:$0x1]
  %v184 = vld [vmem:[%s7 + $0x1] sm:$0x1]
  %v185 = vld [vmem:[%s4] sm:$0xf]
  %v186 = vld [vmem:[%s4 + $0x4] sm:$0xf]
  %v187 = vld [vmem:[%s4 + $0x8] sm:$0xf]
  %v188 = vld [vmem:[%s4 + $0xc] sm:$0xf]
  %v189 = vld [vmem:[%s5] sm:$0xf]
  %v190 = vld [vmem:[%s5 + $0x4] sm:$0xf]
  %v191 = vld [vmem:[%s5 + $0x8] sm:$0xf]
  %v192 = vld [vmem:[%s5 + $0xc] sm:$0xf]
  %v193 = vld [vmem:[%s6] sm:$0xf]
  %v194 = vld [vmem:[%s6 + $0x4] sm:$0xf]
  %v195 = vld [vmem:[%s6 + $0x8] sm:$0xf]
  %v196 = vld [vmem:[%s6 + $0xc] sm:$0xf]
  %v197 = vld [vmem:[%s6 + $0x10] sm:$0xf]
  %v198 = vld [vmem:[%s6 + $0x14] sm:$0xf]
  %v199 = vld [vmem:[%s6 + $0x18] sm:$0xf]
  %v200 = vld [vmem:[%s6 + $0x1c] sm:$0xf]
  %v201 = vld [vmem:[%s6 + $0x20] sm:$0xf]
  %v202 = vld [vmem:[%s6 + $0x24] sm:$0xf]
  %v203 = vld [vmem:[%s6 + $0x28] sm:$0xf]
  %v204 = vld [vmem:[%s6 + $0x2c] sm:$0xf]
  %v205 = vmul.f32 %v169, %v169
  %v206 = vmul.f32 %v172, %v172
  %vm207 = vcmask 261120
  %v208 = vsel %vm207, %v205, 0.0
  %209 = vadd.xlane.f32.xlu0 %v208
  %v210 = vpop.xlane.xlu0 %209
  %v211 = vsel %vm207, %v206, 0.0
  %212 = vadd.xlane.f32.xlu0 %v211
  %v213 = vpop.xlane.xlu0 %212
  %v214 = vrcp.pop 32.0
  %v215 = vmul.f32 %v210, %v214
  %v216 = vmul.f32 %v213, %v214
  %v217 = vadd.f32 %v215, 1e-06
  %v218 = vadd.f32 %v216, 1e-06
  %v219 = vrsqrt.pop %v217
  %v220 = vrsqrt.pop %v218
  %v221 = vmul.f32 %v169, %v219
  %v222 = vmul.f32 %v172, %v220
  %v223 = vlaneseq
  %v224 = vshrl.u32 %v223, 7
  %v225 = vsub.s32 0, %v224
  %v226 = vrot.slane %v183, %v225
  %v227 = vmul.f32 %v221, %v226
  %v228 = vmul.f32 %v222, %v226
  %v229 = vpack.c.bf16 %v228, %v227
  %v234 = vunpack.c.l.b16 %v185
  %v235 = vunpack.c.l.b16 %v186
  %v236 = vunpack.c.l.b16 %v187
  %v237 = vunpack.c.l.b16 %v188
  %v238 = vpack.c.b16 %v235, %v234
  %v239 = vpack.c.b16 %v237, %v236
  %v243 = vsel %vm207, %v229, 0
  %245 = vmatprep.subr.bf16.mxu0 0
  %246 = vmatpush1.bf16.msra.mxu0 0
  %247 = vmatprep.subr.bf16.mxu0 0
  %248 = vmatpush1.bf16.msra.mxu0 0
  %249 = vmatprep.subr.bf16.mxu0 0
  %250 = vmatpush1.bf16.msra.mxu0 0
  %251 = vmatprep.subr.bf16.mxu0 0
  %252 = vmatpush1.bf16.msra.mxu0 0
  %253 = vmatprep.subr.bf16.mxu0 0
  %254 = vmatpush1.bf16.msra.mxu0 0
  %255 = vmatprep.subr.bf16.mxu0 0
  %256 = vmatpush1.bf16.msra.mxu0 0
  %257 = vmatprep.subr.bf16.mxu0 0
  %258 = vmatpush1.bf16.msra.mxu0 %v239
  %259 = vmatprep.subr.bf16.mxu0 0
  %260 = vmatpush1.bf16.msra.mxu0 %v238
  %261 = vmatprep.subr.bf16.mxu0 0
  %262 = vmatpush2.bf16.msra.mxu0 0
  %263 = vmatprep.subr.bf16.mxu0 0
  %264 = vmatpush2.bf16.msra.mxu0 0
  %265 = vmatprep.subr.bf16.mxu0 0
  %266 = vmatpush2.bf16.msra.mxu0 0
  %267 = vmatprep.subr.bf16.mxu0 0
  %268 = vmatpush2.bf16.msra.mxu0 0
  %269 = vmatprep.subr.bf16.mxu0 0
  %270 = vmatpush2.bf16.msra.mxu0 0
  %271 = vmatprep.subr.bf16.mxu0 0
  %272 = vmatpush2.bf16.msra.mxu0 0
  %273 = vmatprep.subr.bf16.mxu0 0
  %274 = vmatpush2.bf16.msra.mxu0 0
  %275 = vmatprep.subr.bf16.mxu0 0
  %276 = vmatpush2.bf16.msra.mxu0 0
  %277 = vmatprep.mubr.bf16.mxu0 0
  %278 = vmatmul.mubr.bf16.gmra.mxu0 %v243
  %v279 = vpop.f32.mrf.mxu0
  %v280 = vadd.f32 0.0, %v279
  %v281 = vpop.f32.mrf.mxu0
  %v282 = vpop.f32.mrf.mxu0
  %v283 = vadd.f32 0.0, %v282
  %v284 = vpop.f32.mrf.mxu0
  %285 = vdwg.mxu0
  %v286 = vpack.c.bf16 %v283, %v280
  %288 = vrot.lane.b32.xlu0 %v286, 96
  %v289 = vpop.permute.xlu0 %288
  %vm290 = vcmask 64512
  %v292 = vsel %vm290, %v286, 0
  %v295 = vsel %vm290, %v289, 0
  %297 = vmatprep.subr.bf16.mxu0 0
  %298 = vmatpush1.bf16.xpose.msra.mxu0 0
  %299 = vmatprep.subr.bf16.mxu0 0
  %300 = vmatpush1.bf16.xpose.msra.mxu0 0
  %301 = vmatprep.subr.bf16.mxu0 0
  %302 = vmatpush1.bf16.xpose.msra.mxu0 0
  %303 = vmatprep.subr.bf16.mxu0 0
  %304 = vmatpush1.bf16.xpose.msra.mxu0 0
  %305 = vmatprep.subr.bf16.mxu0 0
  %306 = vmatpush1.bf16.xpose.msra.mxu0 0
  %307 = vmatprep.subr.bf16.mxu0 0
  %308 = vmatpush1.bf16.xpose.msra.mxu0 0
  %309 = vmatprep.subr.bf16.mxu0 0
  %310 = vmatpush1.bf16.xpose.msra.mxu0 0
  %311 = vmatprep.subr.bf16.mxu0 0
  %312 = vmatpush1.bf16.xpose.msra.mxu0 %v295
  %313 = vmatprep.subr.bf16.mxu0 0
  %314 = vmatpush2.bf16.xpose.msra.mxu0 0
  %315 = vmatprep.subr.bf16.mxu0 0
  %316 = vmatpush2.bf16.xpose.msra.mxu0 0
  %317 = vmatprep.subr.bf16.mxu0 0
  %318 = vmatpush2.bf16.xpose.msra.mxu0 0
  %319 = vmatprep.subr.bf16.mxu0 0
  %320 = vmatpush2.bf16.xpose.msra.mxu0 0
  %321 = vmatprep.subr.bf16.mxu0 0
  %322 = vmatpush2.bf16.xpose.msra.mxu0 0
  %323 = vmatprep.subr.bf16.mxu0 0
  %324 = vmatpush2.bf16.xpose.msra.mxu0 0
  %325 = vmatprep.subr.bf16.mxu0 0
  %326 = vmatpush2.bf16.xpose.msra.mxu0 0
  %327 = vmatprep.subr.bf16.mxu0 0
  %328 = vmatpush2.bf16.xpose.msra.mxu0 0
  %329 = vmatprep.mubr.bf16.mxu0 0
  %330 = vmatmul.mubr.bf16.gmra.mxu0 %v292
  %v331 = vpop.f32.mrf.mxu0
  %v332 = vadd.f32 %v49, %v331
  %v333 = vpop.f32.mrf.mxu0
  %v334 = vpop.f32.mrf.mxu0
  %v335 = vpop.f32.mrf.mxu0
  %336 = vdwg.mxu0
  %v337 = vlaneseq
  %v338 = vshrl.u32 %v337, 7
  %v339 = vsub.s32 0, %v338
  %v340 = vrot.slane %v48, %v339
  %v341 = vadd.f32 %v332, %v340
  %v342 = vsel %vm290, %v341, -inf
  %343 = vmax.xlane.f32.xlu0 %v342
  %v344 = vpop.xlane.xlu0 %343
  %v345 = vsub.f32 %v341, %v344
  %v346 = vmul.f32 %v345, 1.442695
  %v347 = vpow.pop %v346
  %v348 = vsel %vm290, %v347, 0.0
  %349 = vadd.xlane.f32.xlu0 %v348
  %v350 = vpop.xlane.xlu0 %349
  %v351 = vrcp.pop %v350
  %v352 = vmul.f32 %v347, %v351
  %v353 = vpack.c.bf16 %v352, %v352
  %354 = vrot.lane.b32.xlu0 %v286, 64
  %v355 = vpop.permute.xlu0 %354
  %v357 = vsel %vm290, %v353, 0
  %vm359 = vcmask 1043456
  %v361 = vsel %vm359, %v355, 0
  %363 = vmatprep.subr.bf16.mxu0 0
  %364 = vmatpush1.bf16.msra.mxu0 0
  %365 = vmatprep.subr.bf16.mxu0 0
  %366 = vmatpush1.bf16.msra.mxu0 0
  %367 = vmatprep.subr.bf16.mxu0 0
  %368 = vmatpush1.bf16.msra.mxu0 0
  %369 = vmatprep.subr.bf16.mxu0 0
  %370 = vmatpush1.bf16.msra.mxu0 0
  %371 = vmatprep.subr.bf16.mxu0 0
  %372 = vmatpush1.bf16.msra.mxu0 0
  %373 = vmatprep.subr.bf16.mxu0 0
  %374 = vmatpush1.bf16.msra.mxu0 0
  %375 = vmatprep.subr.bf16.mxu0 0
  %376 = vmatpush1.bf16.msra.mxu0 0
  %377 = vmatprep.subr.bf16.mxu0 0
  %378 = vmatpush1.bf16.msra.mxu0 %v361
  %379 = vmatprep.subr.bf16.mxu0 0
  %380 = vmatpush2.bf16.msra.mxu0 0
  %381 = vmatprep.subr.bf16.mxu0 0
  %382 = vmatpush2.bf16.msra.mxu0 0
  %383 = vmatprep.subr.bf16.mxu0 0
  %384 = vmatpush2.bf16.msra.mxu0 0
  %385 = vmatprep.subr.bf16.mxu0 0
  %386 = vmatpush2.bf16.msra.mxu0 0
  %387 = vmatprep.subr.bf16.mxu0 0
  %388 = vmatpush2.bf16.msra.mxu0 0
  %389 = vmatprep.subr.bf16.mxu0 0
  %390 = vmatpush2.bf16.msra.mxu0 0
  %391 = vmatprep.subr.bf16.mxu0 0
  %392 = vmatpush2.bf16.msra.mxu0 0
  %393 = vmatprep.subr.bf16.mxu0 0
  %394 = vmatpush2.bf16.msra.mxu0 0
  %395 = vmatprep.mubr.bf16.mxu0 0
  %396 = vmatmul.mubr.bf16.gmra.mxu0 %v357
  %v397 = vpop.f32.mrf.mxu0
  %v398 = vadd.f32 0.0, %v397
  %v399 = vpop.f32.mrf.mxu0
  %v400 = vpop.f32.mrf.mxu0
  %v401 = vpop.f32.mrf.mxu0
  %402 = vdwg.mxu0
  %403 = vrot.lane.b32.xlu0 %v286, 120
  %v404 = vpop.permute.xlu0 %403
  %405 = vrot.lane.b32.xlu0 %v286, 88
  %v406 = vpop.permute.xlu0 %405
  %v408 = vsel %vm290, %v404, 0
  %v411 = vsel %vm290, %v406, 0
  %413 = vmatprep.subr.bf16.mxu0 0
  %414 = vmatpush1.bf16.xpose.msra.mxu0 0
  %415 = vmatprep.subr.bf16.mxu0 0
  %416 = vmatpush1.bf16.xpose.msra.mxu0 0
  %417 = vmatprep.subr.bf16.mxu0 0
  %418 = vmatpush1.bf16.xpose.msra.mxu0 0
  %419 = vmatprep.subr.bf16.mxu0 0
  %420 = vmatpush1.bf16.xpose.msra.mxu0 0
  %421 = vmatprep.subr.bf16.mxu0 0
  %422 = vmatpush1.bf16.xpose.msra.mxu0 0
  %423 = vmatprep.subr.bf16.mxu0 0
  %424 = vmatpush1.bf16.xpose.msra.mxu0 0
  %425 = vmatprep.subr.bf16.mxu0 0
  %426 = vmatpush1.bf16.xpose.msra.mxu0 0
  %427 = vmatprep.subr.bf16.mxu0 0
  %428 = vmatpush1.bf16.xpose.msra.mxu0 %v411
  %429 = vmatprep.subr.bf16.mxu0 0
  %430 = vmatpush2.bf16.xpose.msra.mxu0 0
  %431 = vmatprep.subr.bf16.mxu0 0
  %432 = vmatpush2.bf16.xpose.msra.mxu0 0
  %433 = vmatprep.subr.bf16.mxu0 0
  %434 = vmatpush2.bf16.xpose.msra.mxu0 0
  %435 = vmatprep.subr.bf16.mxu0 0
  %436 = vmatpush2.bf16.xpose.msra.mxu0 0
  %437 = vmatprep.subr.bf16.mxu0 0
  %438 = vmatpush2.bf16.xpose.msra.mxu0 0
  %439 = vmatprep.subr.bf16.mxu0 0
  %440 = vmatpush2.bf16.xpose.msra.mxu0 0
  %441 = vmatprep.subr.bf16.mxu0 0
  %442 = vmatpush2.bf16.xpose.msra.mxu0 0
  %443 = vmatprep.subr.bf16.mxu0 0
  %444 = vmatpush2.bf16.xpose.msra.mxu0 0
  %445 = vmatprep.mubr.bf16.mxu0 0
  %446 = vmatmul.mubr.bf16.gmra.mxu0 %v408
  %v447 = vpop.f32.mrf.mxu0
  %v448 = vadd.f32 %v50, %v447
  %v449 = vpop.f32.mrf.mxu0
  %v450 = vpop.f32.mrf.mxu0
  %v451 = vpop.f32.mrf.mxu0
  %452 = vdwg.mxu0
  %v453 = vadd.f32 %v448, %v340
  %v454 = vsel %vm290, %v453, -inf
  %455 = vmax.xlane.f32.xlu0 %v454
  %v456 = vpop.xlane.xlu0 %455
  %v457 = vsub.f32 %v453, %v456
  %v458 = vmul.f32 %v457, 1.442695
  %v459 = vpow.pop %v458
  %v460 = vsel %vm290, %v459, 0.0
  %461 = vadd.xlane.f32.xlu0 %v460
  %v462 = vpop.xlane.xlu0 %461
  %v463 = vrcp.pop %v462
  %v464 = vmul.f32 %v459, %v463
  %v465 = vpack.c.bf16 %v464, %v464
  %466 = vrot.lane.b32.xlu0 %v286, 56
  %v467 = vpop.permute.xlu0 %466
  %v469 = vsel %vm290, %v465, 0
  %v472 = vsel %vm359, %v467, 0
  %474 = vmatprep.subr.bf16.mxu0 0
  %475 = vmatpush1.bf16.msra.mxu0 0
  %476 = vmatprep.subr.bf16.mxu0 0
  %477 = vmatpush1.bf16.msra.mxu0 0
  %478 = vmatprep.subr.bf16.mxu0 0
  %479 = vmatpush1.bf16.msra.mxu0 0
  %480 = vmatprep.subr.bf16.mxu0 0
  %481 = vmatpush1.bf16.msra.mxu0 0
  %482 = vmatprep.subr.bf16.mxu0 0
  %483 = vmatpush1.bf16.msra.mxu0 0
  %484 = vmatprep.subr.bf16.mxu0 0
  %485 = vmatpush1.bf16.msra.mxu0 0
  %486 = vmatprep.subr.bf16.mxu0 0
  %487 = vmatpush1.bf16.msra.mxu0 0
  %488 = vmatprep.subr.bf16.mxu0 0
  %489 = vmatpush1.bf16.msra.mxu0 %v472
  %490 = vmatprep.subr.bf16.mxu0 0
  %491 = vmatpush2.bf16.msra.mxu0 0
  %492 = vmatprep.subr.bf16.mxu0 0
  %493 = vmatpush2.bf16.msra.mxu0 0
  %494 = vmatprep.subr.bf16.mxu0 0
  %495 = vmatpush2.bf16.msra.mxu0 0
  %496 = vmatprep.subr.bf16.mxu0 0
  %497 = vmatpush2.bf16.msra.mxu0 0
  %498 = vmatprep.subr.bf16.mxu0 0
  %499 = vmatpush2.bf16.msra.mxu0 0
  %500 = vmatprep.subr.bf16.mxu0 0
  %501 = vmatpush2.bf16.msra.mxu0 0
  %502 = vmatprep.subr.bf16.mxu0 0
  %503 = vmatpush2.bf16.msra.mxu0 0
  %504 = vmatprep.subr.bf16.mxu0 0
  %505 = vmatpush2.bf16.msra.mxu0 0
  %506 = vmatprep.mubr.bf16.mxu0 0
  %507 = vmatmul.mubr.bf16.gmra.mxu0 %v469
  %v508 = vpop.f32.mrf.mxu0
  %v509 = vadd.f32 0.0, %v508
  %v510 = vpop.f32.mrf.mxu0
  %v511 = vpop.f32.mrf.mxu0
  %v512 = vpop.f32.mrf.mxu0
  %513 = vdwg.mxu0
  %514 = vrot.lane.b32.xlu0 %v286, 112
  %v515 = vpop.permute.xlu0 %514
  %516 = vrot.lane.b32.xlu0 %v286, 80
  %v517 = vpop.permute.xlu0 %516
  %v519 = vsel %vm290, %v515, 0
  %v522 = vsel %vm290, %v517, 0
  %524 = vmatprep.subr.bf16.mxu0 0
  %525 = vmatpush1.bf16.xpose.msra.mxu0 0
  %526 = vmatprep.subr.bf16.mxu0 0
  %527 = vmatpush1.bf16.xpose.msra.mxu0 0
  %528 = vmatprep.subr.bf16.mxu0 0
  %529 = vmatpush1.bf16.xpose.msra.mxu0 0
  %530 = vmatprep.subr.bf16.mxu0 0
  %531 = vmatpush1.bf16.xpose.msra.mxu0 0
  %532 = vmatprep.subr.bf16.mxu0 0
  %533 = vmatpush1.bf16.xpose.msra.mxu0 0
  %534 = vmatprep.subr.bf16.mxu0 0
  %535 = vmatpush1.bf16.xpose.msra.mxu0 0
  %536 = vmatprep.subr.bf16.mxu0 0
  %537 = vmatpush1.bf16.xpose.msra.mxu0 0
  %538 = vmatprep.subr.bf16.mxu0 0
  %539 = vmatpush1.bf16.xpose.msra.mxu0 %v522
  %540 = vmatprep.subr.bf16.mxu0 0
  %541 = vmatpush2.bf16.xpose.msra.mxu0 0
  %542 = vmatprep.subr.bf16.mxu0 0
  %543 = vmatpush2.bf16.xpose.msra.mxu0 0
  %544 = vmatprep.subr.bf16.mxu0 0
  %545 = vmatpush2.bf16.xpose.msra.mxu0 0
  %546 = vmatprep.subr.bf16.mxu0 0
  %547 = vmatpush2.bf16.xpose.msra.mxu0 0
  %548 = vmatprep.subr.bf16.mxu0 0
  %549 = vmatpush2.bf16.xpose.msra.mxu0 0
  %550 = vmatprep.subr.bf16.mxu0 0
  %551 = vmatpush2.bf16.xpose.msra.mxu0 0
  %552 = vmatprep.subr.bf16.mxu0 0
  %553 = vmatpush2.bf16.xpose.msra.mxu0 0
  %554 = vmatprep.subr.bf16.mxu0 0
  %555 = vmatpush2.bf16.xpose.msra.mxu0 0
  %556 = vmatprep.mubr.bf16.mxu0 0
  %557 = vmatmul.mubr.bf16.gmra.mxu0 %v519
  %v558 = vpop.f32.mrf.mxu0
  %v559 = vadd.f32 %v51, %v558
  %v560 = vpop.f32.mrf.mxu0
  %v561 = vpop.f32.mrf.mxu0
  %v562 = vpop.f32.mrf.mxu0
  %563 = vdwg.mxu0
  %v564 = vadd.f32 %v559, %v340
  %v565 = vsel %vm290, %v564, -inf
  %566 = vmax.xlane.f32.xlu0 %v565
  %v567 = vpop.xlane.xlu0 %566
  %v568 = vsub.f32 %v564, %v567
  %v569 = vmul.f32 %v568, 1.442695
  %v570 = vpow.pop %v569
  %v571 = vsel %vm290, %v570, 0.0
  %572 = vadd.xlane.f32.xlu0 %v571
  %v573 = vpop.xlane.xlu0 %572
  %v574 = vrcp.pop %v573
  %v575 = vmul.f32 %v570, %v574
  %v576 = vpack.c.bf16 %v575, %v575
  %577 = vrot.lane.b32.xlu0 %v286, 48
  %v578 = vpop.permute.xlu0 %577
  %v580 = vsel %vm290, %v576, 0
  %v583 = vsel %vm359, %v578, 0
  %585 = vmatprep.subr.bf16.mxu0 0
  %586 = vmatpush1.bf16.msra.mxu0 0
  %587 = vmatprep.subr.bf16.mxu0 0
  %588 = vmatpush1.bf16.msra.mxu0 0
  %589 = vmatprep.subr.bf16.mxu0 0
  %590 = vmatpush1.bf16.msra.mxu0 0
  %591 = vmatprep.subr.bf16.mxu0 0
  %592 = vmatpush1.bf16.msra.mxu0 0
  %593 = vmatprep.subr.bf16.mxu0 0
  %594 = vmatpush1.bf16.msra.mxu0 0
  %595 = vmatprep.subr.bf16.mxu0 0
  %596 = vmatpush1.bf16.msra.mxu0 0
  %597 = vmatprep.subr.bf16.mxu0 0
  %598 = vmatpush1.bf16.msra.mxu0 0
  %599 = vmatprep.subr.bf16.mxu0 0
  %600 = vmatpush1.bf16.msra.mxu0 %v583
  %601 = vmatprep.subr.bf16.mxu0 0
  %602 = vmatpush2.bf16.msra.mxu0 0
  %603 = vmatprep.subr.bf16.mxu0 0
  %604 = vmatpush2.bf16.msra.mxu0 0
  %605 = vmatprep.subr.bf16.mxu0 0
  %606 = vmatpush2.bf16.msra.mxu0 0
  %607 = vmatprep.subr.bf16.mxu0 0
  %608 = vmatpush2.bf16.msra.mxu0 0
  %609 = vmatprep.subr.bf16.mxu0 0
  %610 = vmatpush2.bf16.msra.mxu0 0
  %611 = vmatprep.subr.bf16.mxu0 0
  %612 = vmatpush2.bf16.msra.mxu0 0
  %613 = vmatprep.subr.bf16.mxu0 0
  %614 = vmatpush2.bf16.msra.mxu0 0
  %615 = vmatprep.subr.bf16.mxu0 0
  %616 = vmatpush2.bf16.msra.mxu0 0
  %617 = vmatprep.mubr.bf16.mxu0 0
  %618 = vmatmul.mubr.bf16.gmra.mxu0 %v580
  %v619 = vpop.f32.mrf.mxu0
  %v620 = vadd.f32 0.0, %v619
  %v621 = vpop.f32.mrf.mxu0
  %v622 = vpop.f32.mrf.mxu0
  %v623 = vpop.f32.mrf.mxu0
  %624 = vdwg.mxu0
  %625 = vrot.lane.b32.xlu0 %v286, 104
  %v626 = vpop.permute.xlu0 %625
  %627 = vrot.lane.b32.xlu0 %v286, 72
  %v628 = vpop.permute.xlu0 %627
  %v630 = vsel %vm290, %v626, 0
  %v633 = vsel %vm290, %v628, 0
  %635 = vmatprep.subr.bf16.mxu0 0
  %636 = vmatpush1.bf16.xpose.msra.mxu0 0
  %637 = vmatprep.subr.bf16.mxu0 0
  %638 = vmatpush1.bf16.xpose.msra.mxu0 0
  %639 = vmatprep.subr.bf16.mxu0 0
  %640 = vmatpush1.bf16.xpose.msra.mxu0 0
  %641 = vmatprep.subr.bf16.mxu0 0
  %642 = vmatpush1.bf16.xpose.msra.mxu0 0
  %643 = vmatprep.subr.bf16.mxu0 0
  %644 = vmatpush1.bf16.xpose.msra.mxu0 0
  %645 = vmatprep.subr.bf16.mxu0 0
  %646 = vmatpush1.bf16.xpose.msra.mxu0 0
  %647 = vmatprep.subr.bf16.mxu0 0
  %648 = vmatpush1.bf16.xpose.msra.mxu0 0
  %649 = vmatprep.subr.bf16.mxu0 0
  %650 = vmatpush1.bf16.xpose.msra.mxu0 %v633
  %651 = vmatprep.subr.bf16.mxu0 0
  %652 = vmatpush2.bf16.xpose.msra.mxu0 0
  %653 = vmatprep.subr.bf16.mxu0 0
  %654 = vmatpush2.bf16.xpose.msra.mxu0 0
  %655 = vmatprep.subr.bf16.mxu0 0
  %656 = vmatpush2.bf16.xpose.msra.mxu0 0
  %657 = vmatprep.subr.bf16.mxu0 0
  %658 = vmatpush2.bf16.xpose.msra.mxu0 0
  %659 = vmatprep.subr.bf16.mxu0 0
  %660 = vmatpush2.bf16.xpose.msra.mxu0 0
  %661 = vmatprep.subr.bf16.mxu0 0
  %662 = vmatpush2.bf16.xpose.msra.mxu0 0
  %663 = vmatprep.subr.bf16.mxu0 0
  %664 = vmatpush2.bf16.xpose.msra.mxu0 0
  %665 = vmatprep.subr.bf16.mxu0 0
  %666 = vmatpush2.bf16.xpose.msra.mxu0 0
  %667 = vmatprep.mubr.bf16.mxu0 0
  %668 = vmatmul.mubr.bf16.gmra.mxu0 %v630
  %v669 = vpop.f32.mrf.mxu0
  %v670 = vadd.f32 %v52, %v669
  %v671 = vpop.f32.mrf.mxu0
  %v672 = vpop.f32.mrf.mxu0
  %v673 = vpop.f32.mrf.mxu0
  %674 = vdwg.mxu0
  %v675 = vadd.f32 %v670, %v340
  %v676 = vsel %vm290, %v675, -inf
  %677 = vmax.xlane.f32.xlu0 %v676
  %v678 = vpop.xlane.xlu0 %677
  %v679 = vsub.f32 %v675, %v678
  %v680 = vmul.f32 %v679, 1.442695
  %v681 = vpow.pop %v680
  %v682 = vsel %vm290, %v681, 0.0
  %683 = vadd.xlane.f32.xlu0 %v682
  %v684 = vpop.xlane.xlu0 %683
  %v685 = vrcp.pop %v684
  %v686 = vmul.f32 %v681, %v685
  %v687 = vpack.c.bf16 %v686, %v686
  %688 = vrot.lane.b32.xlu0 %v286, 40
  %v689 = vpop.permute.xlu0 %688
  %v691 = vsel %vm290, %v687, 0
  %v694 = vsel %vm359, %v689, 0
  %696 = vmatprep.subr.bf16.mxu0 0
  %697 = vmatpush1.bf16.msra.mxu0 0
  %698 = vmatprep.subr.bf16.mxu0 0
  %699 = vmatpush1.bf16.msra.mxu0 0
  %700 = vmatprep.subr.bf16.mxu0 0
  %701 = vmatpush1.bf16.msra.mxu0 0
  %702 = vmatprep.subr.bf16.mxu0 0
  %703 = vmatpush1.bf16.msra.mxu0 0
  %704 = vmatprep.subr.bf16.mxu0 0
  %705 = vmatpush1.bf16.msra.mxu0 0
  %706 = vmatprep.subr.bf16.mxu0 0
  %707 = vmatpush1.bf16.msra.mxu0 0
  %708 = vmatprep.subr.bf16.mxu0 0
  %709 = vmatpush1.bf16.msra.mxu0 0
  %710 = vmatprep.subr.bf16.mxu0 0
  %711 = vmatpush1.bf16.msra.mxu0 %v694
  %712 = vmatprep.subr.bf16.mxu0 0
  %713 = vmatpush2.bf16.msra.mxu0 0
  %714 = vmatprep.subr.bf16.mxu0 0
  %715 = vmatpush2.bf16.msra.mxu0 0
  %716 = vmatprep.subr.bf16.mxu0 0
  %717 = vmatpush2.bf16.msra.mxu0 0
  %718 = vmatprep.subr.bf16.mxu0 0
  %719 = vmatpush2.bf16.msra.mxu0 0
  %720 = vmatprep.subr.bf16.mxu0 0
  %721 = vmatpush2.bf16.msra.mxu0 0
  %722 = vmatprep.subr.bf16.mxu0 0
  %723 = vmatpush2.bf16.msra.mxu0 0
  %724 = vmatprep.subr.bf16.mxu0 0
  %725 = vmatpush2.bf16.msra.mxu0 0
  %726 = vmatprep.subr.bf16.mxu0 0
  %727 = vmatpush2.bf16.msra.mxu0 0
  %728 = vmatprep.mubr.bf16.mxu0 0
  %729 = vmatmul.mubr.bf16.gmra.mxu0 %v691
  %v730 = vpop.f32.mrf.mxu0
  %v731 = vadd.f32 0.0, %v730
  %v732 = vpop.f32.mrf.mxu0
  %v733 = vpop.f32.mrf.mxu0
  %v734 = vpop.f32.mrf.mxu0
  %735 = vdwg.mxu0
  %737 = vrot.lane.b32.xlu0 %v509, 8
  %v738 = vpop.permute.xlu0 %737
  %741 = vrot.lane.b32.xlu0 %v620, 16
  %v742 = vpop.permute.xlu0 %741
  %745 = vrot.lane.b32.xlu0 %v731, 24
  %v746 = vpop.permute.xlu0 %745
  %v748 = vsel %vm290, %v398, %v738
  %vm749 = vcmask 130048
  %v750 = vsel %vm749, %v748, %v742
  %vm751 = vcmask 195584
  %v752 = vsel %vm751, %v750, %v746
  %v753 = vrot.slane %v286, 4
  %754 = vrot.lane.b32.xlu0 %v753, 96
  %v755 = vpop.permute.xlu0 %754
  %v757 = vsel %vm290, %v753, 0
  %v760 = vsel %vm290, %v755, 0
  %762 = vmatprep.subr.bf16.mxu0 0
  %763 = vmatpush1.bf16.xpose.msra.mxu0 0
  %764 = vmatprep.subr.bf16.mxu0 0
  %765 = vmatpush1.bf16.xpose.msra.mxu0 0
  %766 = vmatprep.subr.bf16.mxu0 0
  %767 = vmatpush1.bf16.xpose.msra.mxu0 0
  %768 = vmatprep.subr.bf16.mxu0 0
  %769 = vmatpush1.bf16.xpose.msra.mxu0 0
  %770 = vmatprep.subr.bf16.mxu0 0
  %771 = vmatpush1.bf16.xpose.msra.mxu0 0
  %772 = vmatprep.subr.bf16.mxu0 0
  %773 = vmatpush1.bf16.xpose.msra.mxu0 0
  %774 = vmatprep.subr.bf16.mxu0 0
  %775 = vmatpush1.bf16.xpose.msra.mxu0 0
  %776 = vmatprep.subr.bf16.mxu0 0
  %777 = vmatpush1.bf16.xpose.msra.mxu0 %v760
  %778 = vmatprep.subr.bf16.mxu0 0
  %779 = vmatpush2.bf16.xpose.msra.mxu0 0
  %780 = vmatprep.subr.bf16.mxu0 0
  %781 = vmatpush2.bf16.xpose.msra.mxu0 0
  %782 = vmatprep.subr.bf16.mxu0 0
  %783 = vmatpush2.bf16.xpose.msra.mxu0 0
  %784 = vmatprep.subr.bf16.mxu0 0
  %785 = vmatpush2.bf16.xpose.msra.mxu0 0
  %786 = vmatprep.subr.bf16.mxu0 0
  %787 = vmatpush2.bf16.xpose.msra.mxu0 0
  %788 = vmatprep.subr.bf16.mxu0 0
  %789 = vmatpush2.bf16.xpose.msra.mxu0 0
  %790 = vmatprep.subr.bf16.mxu0 0
  %791 = vmatpush2.bf16.xpose.msra.mxu0 0
  %792 = vmatprep.subr.bf16.mxu0 0
  %793 = vmatpush2.bf16.xpose.msra.mxu0 0
  %794 = vmatprep.mubr.bf16.mxu0 0
  %795 = vmatmul.mubr.bf16.gmra.mxu0 %v757
  %v796 = vpop.f32.mrf.mxu0
  %v797 = vadd.f32 %v49, %v796
  %v798 = vpop.f32.mrf.mxu0
  %v799 = vpop.f32.mrf.mxu0
  %v800 = vpop.f32.mrf.mxu0
  %801 = vdwg.mxu0
  %v802 = vlaneseq
  %v803 = vshrl.u32 %v802, 7
  %v804 = vsub.s32 1, %v803
  %v805 = vrot.slane %v48, %v804
  %v806 = vadd.f32 %v797, %v805
  %v807 = vsel %vm290, %v806, -inf
  %808 = vmax.xlane.f32.xlu0 %v807
  %v809 = vpop.xlane.xlu0 %808
  %v810 = vsub.f32 %v806, %v809
  %v811 = vmul.f32 %v810, 1.442695
  %v812 = vpow.pop %v811
  %v813 = vsel %vm290, %v812, 0.0
  %814 = vadd.xlane.f32.xlu0 %v813
  %v815 = vpop.xlane.xlu0 %814
  %v816 = vrcp.pop %v815
  %v817 = vmul.f32 %v812, %v816
  %v818 = vpack.c.bf16 %v817, %v817
  %819 = vrot.lane.b32.xlu0 %v753, 64
  %v820 = vpop.permute.xlu0 %819
  %v822 = vsel %vm290, %v818, 0
  %v825 = vsel %vm359, %v820, 0
  %827 = vmatprep.subr.bf16.mxu0 0
  %828 = vmatpush1.bf16.msra.mxu0 0
  %829 = vmatprep.subr.bf16.mxu0 0
  %830 = vmatpush1.bf16.msra.mxu0 0
  %831 = vmatprep.subr.bf16.mxu0 0
  %832 = vmatpush1.bf16.msra.mxu0 0
  %833 = vmatprep.subr.bf16.mxu0 0
  %834 = vmatpush1.bf16.msra.mxu0 0
  %835 = vmatprep.subr.bf16.mxu0 0
  %836 = vmatpush1.bf16.msra.mxu0 0
  %837 = vmatprep.subr.bf16.mxu0 0
  %838 = vmatpush1.bf16.msra.mxu0 0
  %839 = vmatprep.subr.bf16.mxu0 0
  %840 = vmatpush1.bf16.msra.mxu0 0
  %841 = vmatprep.subr.bf16.mxu0 0
  %842 = vmatpush1.bf16.msra.mxu0 %v825
  %843 = vmatprep.subr.bf16.mxu0 0
  %844 = vmatpush2.bf16.msra.mxu0 0
  %845 = vmatprep.subr.bf16.mxu0 0
  %846 = vmatpush2.bf16.msra.mxu0 0
  %847 = vmatprep.subr.bf16.mxu0 0
  %848 = vmatpush2.bf16.msra.mxu0 0
  %849 = vmatprep.subr.bf16.mxu0 0
  %850 = vmatpush2.bf16.msra.mxu0 0
  %851 = vmatprep.subr.bf16.mxu0 0
  %852 = vmatpush2.bf16.msra.mxu0 0
  %853 = vmatprep.subr.bf16.mxu0 0
  %854 = vmatpush2.bf16.msra.mxu0 0
  %855 = vmatprep.subr.bf16.mxu0 0
  %856 = vmatpush2.bf16.msra.mxu0 0
  %857 = vmatprep.subr.bf16.mxu0 0
  %858 = vmatpush2.bf16.msra.mxu0 0
  %859 = vmatprep.mubr.bf16.mxu0 0
  %860 = vmatmul.mubr.bf16.gmra.mxu0 %v822
  %v861 = vpop.f32.mrf.mxu0
  %v862 = vadd.f32 0.0, %v861
  %v863 = vpop.f32.mrf.mxu0
  %v864 = vpop.f32.mrf.mxu0
  %v865 = vpop.f32.mrf.mxu0
  %866 = vdwg.mxu0
  %867 = vrot.lane.b32.xlu0 %v753, 120
  %v868 = vpop.permute.xlu0 %867
  %869 = vrot.lane.b32.xlu0 %v753, 88
  %v870 = vpop.permute.xlu0 %869
  %v872 = vsel %vm290, %v868, 0
  %v875 = vsel %vm290, %v870, 0
  %877 = vmatprep.subr.bf16.mxu0 0
  %878 = vmatpush1.bf16.xpose.msra.mxu0 0
  %879 = vmatprep.subr.bf16.mxu0 0
  %880 = vmatpush1.bf16.xpose.msra.mxu0 0
  %881 = vmatprep.subr.bf16.mxu0 0
  %882 = vmatpush1.bf16.xpose.msra.mxu0 0
  %883 = vmatprep.subr.bf16.mxu0 0
  %884 = vmatpush1.bf16.xpose.msra.mxu0 0
  %885 = vmatprep.subr.bf16.mxu0 0
  %886 = vmatpush1.bf16.xpose.msra.mxu0 0
  %887 = vmatprep.subr.bf16.mxu0 0
  %888 = vmatpush1.bf16.xpose.msra.mxu0 0
  %889 = vmatprep.subr.bf16.mxu0 0
  %890 = vmatpush1.bf16.xpose.msra.mxu0 0
  %891 = vmatprep.subr.bf16.mxu0 0
  %892 = vmatpush1.bf16.xpose.msra.mxu0 %v875
  %893 = vmatprep.subr.bf16.mxu0 0
  %894 = vmatpush2.bf16.xpose.msra.mxu0 0
  %895 = vmatprep.subr.bf16.mxu0 0
  %896 = vmatpush2.bf16.xpose.msra.mxu0 0
  %897 = vmatprep.subr.bf16.mxu0 0
  %898 = vmatpush2.bf16.xpose.msra.mxu0 0
  %899 = vmatprep.subr.bf16.mxu0 0
  %900 = vmatpush2.bf16.xpose.msra.mxu0 0
  %901 = vmatprep.subr.bf16.mxu0 0
  %902 = vmatpush2.bf16.xpose.msra.mxu0 0
  %903 = vmatprep.subr.bf16.mxu0 0
  %904 = vmatpush2.bf16.xpose.msra.mxu0 0
  %905 = vmatprep.subr.bf16.mxu0 0
  %906 = vmatpush2.bf16.xpose.msra.mxu0 0
  %907 = vmatprep.subr.bf16.mxu0 0
  %908 = vmatpush2.bf16.xpose.msra.mxu0 0
  %909 = vmatprep.mubr.bf16.mxu0 0
  %910 = vmatmul.mubr.bf16.gmra.mxu0 %v872
  %v911 = vpop.f32.mrf.mxu0
  %v912 = vadd.f32 %v50, %v911
  %v913 = vpop.f32.mrf.mxu0
  %v914 = vpop.f32.mrf.mxu0
  %v915 = vpop.f32.mrf.mxu0
  %916 = vdwg.mxu0
  %v917 = vadd.f32 %v912, %v805
  %v918 = vsel %vm290, %v917, -inf
  %919 = vmax.xlane.f32.xlu0 %v918
  %v920 = vpop.xlane.xlu0 %919
  %v921 = vsub.f32 %v917, %v920
  %v922 = vmul.f32 %v921, 1.442695
  %v923 = vpow.pop %v922
  %v924 = vsel %vm290, %v923, 0.0
  %925 = vadd.xlane.f32.xlu0 %v924
  %v926 = vpop.xlane.xlu0 %925
  %v927 = vrcp.pop %v926
  %v928 = vmul.f32 %v923, %v927
  %v929 = vpack.c.bf16 %v928, %v928
  %930 = vrot.lane.b32.xlu0 %v753, 56
  %v931 = vpop.permute.xlu0 %930
  %v933 = vsel %vm290, %v929, 0
  %v936 = vsel %vm359, %v931, 0
  %938 = vmatprep.subr.bf16.mxu0 0
  %939 = vmatpush1.bf16.msra.mxu0 0
  %940 = vmatprep.subr.bf16.mxu0 0
  %941 = vmatpush1.bf16.msra.mxu0 0
  %942 = vmatprep.subr.bf16.mxu0 0
  %943 = vmatpush1.bf16.msra.mxu0 0
  %944 = vmatprep.subr.bf16.mxu0 0
  %945 = vmatpush1.bf16.msra.mxu0 0
  %946 = vmatprep.subr.bf16.mxu0 0
  %947 = vmatpush1.bf16.msra.mxu0 0
  %948 = vmatprep.subr.bf16.mxu0 0
  %949 = vmatpush1.bf16.msra.mxu0 0
  %950 = vmatprep.subr.bf16.mxu0 0
  %951 = vmatpush1.bf16.msra.mxu0 0
  %952 = vmatprep.subr.bf16.mxu0 0
  %953 = vmatpush1.bf16.msra.mxu0 %v936
  %954 = vmatprep.subr.bf16.mxu0 0
  %955 = vmatpush2.bf16.msra.mxu0 0
  %956 = vmatprep.subr.bf16.mxu0 0
  %957 = vmatpush2.bf16.msra.mxu0 0
  %958 = vmatprep.subr.bf16.mxu0 0
  %959 = vmatpush2.bf16.msra.mxu0 0
  %960 = vmatprep.subr.bf16.mxu0 0
  %961 = vmatpush2.bf16.msra.mxu0 0
  %962 = vmatprep.subr.bf16.mxu0 0
  %963 = vmatpush2.bf16.msra.mxu0 0
  %964 = vmatprep.subr.bf16.mxu0 0
  %965 = vmatpush2.bf16.msra.mxu0 0
  %966 = vmatprep.subr.bf16.mxu0 0
  %967 = vmatpush2.bf16.msra.mxu0 0
  %968 = vmatprep.subr.bf16.mxu0 0
  %969 = vmatpush2.bf16.msra.mxu0 0
  %970 = vmatprep.mubr.bf16.mxu0 0
  %971 = vmatmul.mubr.bf16.gmra.mxu0 %v933
  %v972 = vpop.f32.mrf.mxu0
  %v973 = vadd.f32 0.0, %v972
  %v974 = vpop.f32.mrf.mxu0
  %v975 = vpop.f32.mrf.mxu0
  %v976 = vpop.f32.mrf.mxu0
  %977 = vdwg.mxu0
  %978 = vrot.lane.b32.xlu0 %v753, 112
  %v979 = vpop.permute.xlu0 %978
  %980 = vrot.lane.b32.xlu0 %v753, 80
  %v981 = vpop.permute.xlu0 %980
  %v983 = vsel %vm290, %v979, 0
  %v986 = vsel %vm290, %v981, 0
  %988 = vmatprep.subr.bf16.mxu0 0
  %989 = vmatpush1.bf16.xpose.msra.mxu0 0
  %990 = vmatprep.subr.bf16.mxu0 0
  %991 = vmatpush1.bf16.xpose.msra.mxu0 0
  %992 = vmatprep.subr.bf16.mxu0 0
  %993 = vmatpush1.bf16.xpose.msra.mxu0 0
  %994 = vmatprep.subr.bf16.mxu0 0
  %995 = vmatpush1.bf16.xpose.msra.mxu0 0
  %996 = vmatprep.subr.bf16.mxu0 0
  %997 = vmatpush1.bf16.xpose.msra.mxu0 0
  %998 = vmatprep.subr.bf16.mxu0 0
  %999 = vmatpush1.bf16.xpose.msra.mxu0 0
  %1000 = vmatprep.subr.bf16.mxu0 0
  %1001 = vmatpush1.bf16.xpose.msra.mxu0 0
  %1002 = vmatprep.subr.bf16.mxu0 0
  %1003 = vmatpush1.bf16.xpose.msra.mxu0 %v986
  %1004 = vmatprep.subr.bf16.mxu0 0
  %1005 = vmatpush2.bf16.xpose.msra.mxu0 0
  %1006 = vmatprep.subr.bf16.mxu0 0
  %1007 = vmatpush2.bf16.xpose.msra.mxu0 0
  %1008 = vmatprep.subr.bf16.mxu0 0
  %1009 = vmatpush2.bf16.xpose.msra.mxu0 0
  %1010 = vmatprep.subr.bf16.mxu0 0
  %1011 = vmatpush2.bf16.xpose.msra.mxu0 0
  %1012 = vmatprep.subr.bf16.mxu0 0
  %1013 = vmatpush2.bf16.xpose.msra.mxu0 0
  %1014 = vmatprep.subr.bf16.mxu0 0
  %1015 = vmatpush2.bf16.xpose.msra.mxu0 0
  %1016 = vmatprep.subr.bf16.mxu0 0
  %1017 = vmatpush2.bf16.xpose.msra.mxu0 0
  %1018 = vmatprep.subr.bf16.mxu0 0
  %1019 = vmatpush2.bf16.xpose.msra.mxu0 0
  %1020 = vmatprep.mubr.bf16.mxu0 0
  %1021 = vmatmul.mubr.bf16.gmra.mxu0 %v983
  %v1022 = vpop.f32.mrf.mxu0
  %v1023 = vadd.f32 %v51, %v1022
  %v1024 = vpop.f32.mrf.mxu0
  %v1025 = vpop.f32.mrf.mxu0
  %v1026 = vpop.f32.mrf.mxu0
  %1027 = vdwg.mxu0
  %v1028 = vadd.f32 %v1023, %v805
  %v1029 = vsel %vm290, %v1028, -inf
  %1030 = vmax.xlane.f32.xlu0 %v1029
  %v1031 = vpop.xlane.xlu0 %1030
  %v1032 = vsub.f32 %v1028, %v1031
  %v1033 = vmul.f32 %v1032, 1.442695
  %v1034 = vpow.pop %v1033
  %v1035 = vsel %vm290, %v1034, 0.0
  %1036 = vadd.xlane.f32.xlu0 %v1035
  %v1037 = vpop.xlane.xlu0 %1036
  %v1038 = vrcp.pop %v1037
  %v1039 = vmul.f32 %v1034, %v1038
  %v1040 = vpack.c.bf16 %v1039, %v1039
  %1041 = vrot.lane.b32.xlu0 %v753, 48
  %v1042 = vpop.permute.xlu0 %1041
  %v1044 = vsel %vm290, %v1040, 0
  %v1047 = vsel %vm359, %v1042, 0
  %1049 = vmatprep.subr.bf16.mxu0 0
  %1050 = vmatpush1.bf16.msra.mxu0 0
  %1051 = vmatprep.subr.bf16.mxu0 0
  %1052 = vmatpush1.bf16.msra.mxu0 0
  %1053 = vmatprep.subr.bf16.mxu0 0
  %1054 = vmatpush1.bf16.msra.mxu0 0
  %1055 = vmatprep.subr.bf16.mxu0 0
  %1056 = vmatpush1.bf16.msra.mxu0 0
  %1057 = vmatprep.subr.bf16.mxu0 0
  %1058 = vmatpush1.bf16.msra.mxu0 0
  %1059 = vmatprep.subr.bf16.mxu0 0
  %1060 = vmatpush1.bf16.msra.mxu0 0
  %1061 = vmatprep.subr.bf16.mxu0 0
  %1062 = vmatpush1.bf16.msra.mxu0 0
  %1063 = vmatprep.subr.bf16.mxu0 0
  %1064 = vmatpush1.bf16.msra.mxu0 %v1047
  %1065 = vmatprep.subr.bf16.mxu0 0
  %1066 = vmatpush2.bf16.msra.mxu0 0
  %1067 = vmatprep.subr.bf16.mxu0 0
  %1068 = vmatpush2.bf16.msra.mxu0 0
  %1069 = vmatprep.subr.bf16.mxu0 0
  %1070 = vmatpush2.bf16.msra.mxu0 0
  %1071 = vmatprep.subr.bf16.mxu0 0
  %1072 = vmatpush2.bf16.msra.mxu0 0
  %1073 = vmatprep.subr.bf16.mxu0 0
  %1074 = vmatpush2.bf16.msra.mxu0 0
  %1075 = vmatprep.subr.bf16.mxu0 0
  %1076 = vmatpush2.bf16.msra.mxu0 0
  %1077 = vmatprep.subr.bf16.mxu0 0
  %1078 = vmatpush2.bf16.msra.mxu0 0
  %1079 = vmatprep.subr.bf16.mxu0 0
  %1080 = vmatpush2.bf16.msra.mxu0 0
  %1081 = vmatprep.mubr.bf16.mxu0 0
  %1082 = vmatmul.mubr.bf16.gmra.mxu0 %v1044
  %v1083 = vpop.f32.mrf.mxu0
  %v1084 = vadd.f32 0.0, %v1083
  %v1085 = vpop.f32.mrf.mxu0
  %v1086 = vpop.f32.mrf.mxu0
  %v1087 = vpop.f32.mrf.mxu0
  %1088 = vdwg.mxu0
  %1089 = vrot.lane.b32.xlu0 %v753, 104
  %v1090 = vpop.permute.xlu0 %1089
  %1091 = vrot.lane.b32.xlu0 %v753, 72
  %v1092 = vpop.permute.xlu0 %1091
  %v1094 = vsel %vm290, %v1090, 0
  %v1097 = vsel %vm290, %v1092, 0
  %1099 = vmatprep.subr.bf16.mxu0 0
  %1100 = vmatpush1.bf16.xpose.msra.mxu0 0
  %1101 = vmatprep.subr.bf16.mxu0 0
  %1102 = vmatpush1.bf16.xpose.msra.mxu0 0
  %1103 = vmatprep.subr.bf16.mxu0 0
  %1104 = vmatpush1.bf16.xpose.msra.mxu0 0
  %1105 = vmatprep.subr.bf16.mxu0 0
  %1106 = vmatpush1.bf16.xpose.msra.mxu0 0
  %1107 = vmatprep.subr.bf16.mxu0 0
  %1108 = vmatpush1.bf16.xpose.msra.mxu0 0
  %1109 = vmatprep.subr.bf16.mxu0 0
  %1110 = vmatpush1.bf16.xpose.msra.mxu0 0
  %1111 = vmatprep.subr.bf16.mxu0 0
  %1112 = vmatpush1.bf16.xpose.msra.mxu0 0
  %1113 = vmatprep.subr.bf16.mxu0 0
  %1114 = vmatpush1.bf16.xpose.msra.mxu0 %v1097
  %1115 = vmatprep.subr.bf16.mxu0 0
  %1116 = vmatpush2.bf16.xpose.msra.mxu0 0
  %1117 = vmatprep.subr.bf16.mxu0 0
  %1118 = vmatpush2.bf16.xpose.msra.mxu0 0
  %1119 = vmatprep.subr.bf16.mxu0 0
  %1120 = vmatpush2.bf16.xpose.msra.mxu0 0
  %1121 = vmatprep.subr.bf16.mxu0 0
  %1122 = vmatpush2.bf16.xpose.msra.mxu0 0
  %1123 = vmatprep.subr.bf16.mxu0 0
  %1124 = vmatpush2.bf16.xpose.msra.mxu0 0
  %1125 = vmatprep.subr.bf16.mxu0 0
  %1126 = vmatpush2.bf16.xpose.msra.mxu0 0
  %1127 = vmatprep.subr.bf16.mxu0 0
  %1128 = vmatpush2.bf16.xpose.msra.mxu0 0
  %1129 = vmatprep.subr.bf16.mxu0 0
  %1130 = vmatpush2.bf16.xpose.msra.mxu0 0
  %1131 = vmatprep.mubr.bf16.mxu0 0
  %1132 = vmatmul.mubr.bf16.gmra.mxu0 %v1094
  %v1133 = vpop.f32.mrf.mxu0
  %v1134 = vadd.f32 %v52, %v1133
  %v1135 = vpop.f32.mrf.mxu0
  %v1136 = vpop.f32.mrf.mxu0
  %v1137 = vpop.f32.mrf.mxu0
  %1138 = vdwg.mxu0
  %v1139 = vadd.f32 %v1134, %v805
  %v1140 = vsel %vm290, %v1139, -inf
  %1141 = vmax.xlane.f32.xlu0 %v1140
  %v1142 = vpop.xlane.xlu0 %1141
  %v1143 = vsub.f32 %v1139, %v1142
  %v1144 = vmul.f32 %v1143, 1.442695
  %v1145 = vpow.pop %v1144
  %v1146 = vsel %vm290, %v1145, 0.0
  %1147 = vadd.xlane.f32.xlu0 %v1146
  %v1148 = vpop.xlane.xlu0 %1147
  %v1149 = vrcp.pop %v1148
  %v1150 = vmul.f32 %v1145, %v1149
  %v1151 = vpack.c.bf16 %v1150, %v1150
  %1152 = vrot.lane.b32.xlu0 %v753, 40
  %v1153 = vpop.permute.xlu0 %1152
  %v1155 = vsel %vm290, %v1151, 0
  %v1158 = vsel %vm359, %v1153, 0
  %1160 = vmatprep.subr.bf16.mxu0 0
  %1161 = vmatpush1.bf16.msra.mxu0 0
  %1162 = vmatprep.subr.bf16.mxu0 0
  %1163 = vmatpush1.bf16.msra.mxu0 0
  %1164 = vmatprep.subr.bf16.mxu0 0
  %1165 = vmatpush1.bf16.msra.mxu0 0
  %1166 = vmatprep.subr.bf16.mxu0 0
  %1167 = vmatpush1.bf16.msra.mxu0 0
  %1168 = vmatprep.subr.bf16.mxu0 0
  %1169 = vmatpush1.bf16.msra.mxu0 0
  %1170 = vmatprep.subr.bf16.mxu0 0
  %1171 = vmatpush1.bf16.msra.mxu0 0
  %1172 = vmatprep.subr.bf16.mxu0 0
  %1173 = vmatpush1.bf16.msra.mxu0 0
  %1174 = vmatprep.subr.bf16.mxu0 0
  %1175 = vmatpush1.bf16.msra.mxu0 %v1158
  %1176 = vmatprep.subr.bf16.mxu0 0
  %1177 = vmatpush2.bf16.msra.mxu0 0
  %1178 = vmatprep.subr.bf16.mxu0 0
  %1179 = vmatpush2.bf16.msra.mxu0 0
  %1180 = vmatprep.subr.bf16.mxu0 0
  %1181 = vmatpush2.bf16.msra.mxu0 0
  %1182 = vmatprep.subr.bf16.mxu0 0
  %1183 = vmatpush2.bf16.msra.mxu0 0
  %1184 = vmatprep.subr.bf16.mxu0 0
  %1185 = vmatpush2.bf16.msra.mxu0 0
  %1186 = vmatprep.subr.bf16.mxu0 0
  %1187 = vmatpush2.bf16.msra.mxu0 0
  %1188 = vmatprep.subr.bf16.mxu0 0
  %1189 = vmatpush2.bf16.msra.mxu0 0
  %1190 = vmatprep.subr.bf16.mxu0 0
  %1191 = vmatpush2.bf16.msra.mxu0 0
  %1192 = vmatprep.mubr.bf16.mxu0 0
  %1193 = vmatmul.mubr.bf16.gmra.mxu0 %v1155
  %v1194 = vpop.f32.mrf.mxu0
  %v1195 = vadd.f32 0.0, %v1194
  %v1196 = vpop.f32.mrf.mxu0
  %v1197 = vpop.f32.mrf.mxu0
  %v1198 = vpop.f32.mrf.mxu0
  %1199 = vdwg.mxu0
  %1201 = vrot.lane.b32.xlu0 %v973, 8
  %v1202 = vpop.permute.xlu0 %1201
  %1205 = vrot.lane.b32.xlu0 %v1084, 16
  %v1206 = vpop.permute.xlu0 %1205
  %1209 = vrot.lane.b32.xlu0 %v1195, 24
  %v1210 = vpop.permute.xlu0 %1209
  %v1212 = vsel %vm290, %v862, %v1202
  %v1213 = vsel %vm749, %v1212, %v1206
  %v1214 = vsel %vm751, %v1213, %v1210
  %v1215 = vpack.c.bf16 %v1214, %v752
  %v1220 = vunpack.c.l.b16 %v193
  %v1221 = vunpack.c.l.b16 %v194
  %v1222 = vunpack.c.l.b16 %v195
  %v1223 = vunpack.c.l.b16 %v196
  %v1224 = vpack.c.b16 %v1221, %v1220
  %v1225 = vpack.c.b16 %v1223, %v1222
  %v1229 = vsel %vm207, %v1215, 0
  %1231 = vmatprep.subr.bf16.mxu0 0
  %1232 = vmatpush1.bf16.msra.mxu0 0
  %1233 = vmatprep.subr.bf16.mxu0 0
  %1234 = vmatpush1.bf16.msra.mxu0 0
  %1235 = vmatprep.subr.bf16.mxu0 0
  %1236 = vmatpush1.bf16.msra.mxu0 0
  %1237 = vmatprep.subr.bf16.mxu0 0
  %1238 = vmatpush1.bf16.msra.mxu0 0
  %1239 = vmatprep.subr.bf16.mxu0 0
  %1240 = vmatpush1.bf16.msra.mxu0 0
  %1241 = vmatprep.subr.bf16.mxu0 0
  %1242 = vmatpush1.bf16.msra.mxu0 0
  %1243 = vmatprep.subr.bf16.mxu0 0
  %1244 = vmatpush1.bf16.msra.mxu0 %v1225
  %1245 = vmatprep.subr.bf16.mxu0 0
  %1246 = vmatpush1.bf16.msra.mxu0 %v1224
  %1247 = vmatprep.subr.bf16.mxu0 0
  %1248 = vmatpush2.bf16.msra.mxu0 0
  %1249 = vmatprep.subr.bf16.mxu0 0
  %1250 = vmatpush2.bf16.msra.mxu0 0
  %1251 = vmatprep.subr.bf16.mxu0 0
  %1252 = vmatpush2.bf16.msra.mxu0 0
  %1253 = vmatprep.subr.bf16.mxu0 0
  %1254 = vmatpush2.bf16.msra.mxu0 0
  %1255 = vmatprep.subr.bf16.mxu0 0
  %1256 = vmatpush2.bf16.msra.mxu0 0
  %1257 = vmatprep.subr.bf16.mxu0 0
  %1258 = vmatpush2.bf16.msra.mxu0 0
  %1259 = vmatprep.subr.bf16.mxu0 0
  %1260 = vmatpush2.bf16.msra.mxu0 0
  %1261 = vmatprep.subr.bf16.mxu0 0
  %1262 = vmatpush2.bf16.msra.mxu0 0
  %1263 = vmatprep.mubr.bf16.mxu0 0
  %1264 = vmatmul.mubr.bf16.gmra.mxu0 %v1229
  %v1265 = vpop.f32.mrf.mxu0
  %v1266 = vadd.f32 0.0, %v1265
  %v1267 = vpop.f32.mrf.mxu0
  %v1268 = vpop.f32.mrf.mxu0
  %v1269 = vadd.f32 0.0, %v1268
  %v1270 = vpop.f32.mrf.mxu0
  %1271 = vdwg.mxu0
  %v1272 = vadd.f32 %v169, %v1266
  %v1273 = vadd.f32 %v172, %v1269
  %v1274 = vmul.f32 %v1272, %v1272
  %v1275 = vmul.f32 %v1273, %v1273
  %v1276 = vsel %vm207, %v1274, 0.0
  %1277 = vadd.xlane.f32.xlu0 %v1276
  %v1278 = vpop.xlane.xlu0 %1277
  %v1279 = vsel %vm207, %v1275, 0.0
  %1280 = vadd.xlane.f32.xlu0 %v1279
  %v1281 = vpop.xlane.xlu0 %1280
  %v1282 = vmul.f32 %v1278, %v214
  %v1283 = vmul.f32 %v1281, %v214
  %v1284 = vadd.f32 %v1282, 1e-06
  %v1285 = vadd.f32 %v1283, 1e-06
  %v1286 = vrsqrt.pop %v1284
  %v1287 = vrsqrt.pop %v1285
  %v1288 = vmul.f32 %v1272, %v1286
  %v1289 = vmul.f32 %v1273, %v1287
  %v1290 = vlaneseq
  %v1291 = vshrl.u32 %v1290, 7
  %v1292 = vsub.s32 0, %v1291
  %v1293 = vrot.slane %v184, %v1292
  %v1294 = vmul.f32 %v1288, %v1293
  %v1295 = vmul.f32 %v1289, %v1293
  %v1296 = vpack.c.bf16 %v1295, %v1294
  %v1301 = vunpack.c.l.b16 %v189
  %v1302 = vunpack.c.l.b16 %v190
  %v1303 = vunpack.c.l.b16 %v191
  %v1304 = vunpack.c.l.b16 %v192
  %v1305 = vpack.c.b16 %v1302, %v1301
  %v1306 = vpack.c.b16 %v1304, %v1303
  %v1310 = vsel %vm207, %v1296, 0
  %1312 = vmatprep.subr.bf16.mxu0 0
  %1313 = vmatpush1.bf16.msra.mxu0 0
  %1314 = vmatprep.subr.bf16.mxu0 0
  %1315 = vmatpush1.bf16.msra.mxu0 0
  %1316 = vmatprep.subr.bf16.mxu0 0
  %1317 = vmatpush1.bf16.msra.mxu0 0
  %1318 = vmatprep.subr.bf16.mxu0 0
  %1319 = vmatpush1.bf16.msra.mxu0 0
  %1320 = vmatprep.subr.bf16.mxu0 0
  %1321 = vmatpush1.bf16.msra.mxu0 0
  %1322 = vmatprep.subr.bf16.mxu0 0
  %1323 = vmatpush1.bf16.msra.mxu0 0
  %1324 = vmatprep.subr.bf16.mxu0 0
  %1325 = vmatpush1.bf16.msra.mxu0 %v1306
  %1326 = vmatprep.subr.bf16.mxu0 0
  %1327 = vmatpush1.bf16.msra.mxu0 %v1305
  %1328 = vmatprep.subr.bf16.mxu0 0
  %1329 = vmatpush2.bf16.msra.mxu0 0
  %1330 = vmatprep.subr.bf16.mxu0 0
  %1331 = vmatpush2.bf16.msra.mxu0 0
  %1332 = vmatprep.subr.bf16.mxu0 0
  %1333 = vmatpush2.bf16.msra.mxu0 0
  %1334 = vmatprep.subr.bf16.mxu0 0
  %1335 = vmatpush2.bf16.msra.mxu0 0
  %1336 = vmatprep.subr.bf16.mxu0 0
  %1337 = vmatpush2.bf16.msra.mxu0 0
  %1338 = vmatprep.subr.bf16.mxu0 0
  %1339 = vmatpush2.bf16.msra.mxu0 0
  %1340 = vmatprep.subr.bf16.mxu0 0
  %1341 = vmatpush2.bf16.msra.mxu0 0
  %1342 = vmatprep.subr.bf16.mxu0 0
  %1343 = vmatpush2.bf16.msra.mxu0 0
  %1344 = vmatprep.mubr.bf16.mxu0 0
  %1345 = vmatmul.mubr.bf16.gmra.mxu0 %v1310
  %v1346 = vpop.f32.mrf.mxu0
  %v1347 = vadd.f32 0.0, %v1346
  %v1348 = vpop.f32.mrf.mxu0
  %v1349 = vpop.f32.mrf.mxu0
  %v1350 = vadd.f32 0.0, %v1349
  %v1351 = vpop.f32.mrf.mxu0
  %1352 = vdwg.mxu0
  %v1353 = vmax.f32 %v1347, 0.0
  %v1354 = vmax.f32 %v1350, 0.0
  %v1355 = vpack.c.bf16 %v1354, %v1353
  %v1364 = vunpack.c.l.b16 %v197
  %v1365 = vunpack.c.l.b16 %v198
  %v1366 = vunpack.c.l.b16 %v199
  %v1367 = vunpack.c.l.b16 %v200
  %v1368 = vunpack.c.l.b16 %v201
  %v1369 = vunpack.c.l.b16 %v202
  %v1370 = vunpack.c.l.b16 %v203
  %v1371 = vunpack.c.l.b16 %v204
  %v1372 = vpack.c.b16 %v1365, %v1364
  %v1373 = vpack.c.b16 %v1367, %v1366
  %v1374 = vpack.c.b16 %v1369, %v1368
  %v1375 = vpack.c.b16 %v1371, %v1370
  %vm1380 = vcmask 523264
  %v1382 = vsel %vm1380, %v1355, 0
  %1384 = vmatprep.subr.bf16.mxu0 0
  %1385 = vmatpush1.bf16.msra.mxu0 0
  %1386 = vmatprep.subr.bf16.mxu0 0
  %1387 = vmatpush1.bf16.msra.mxu0 0
  %1388 = vmatprep.subr.bf16.mxu0 0
  %1389 = vmatpush1.bf16.msra.mxu0 0
  %1390 = vmatprep.subr.bf16.mxu0 0
  %1391 = vmatpush1.bf16.msra.mxu0 0
  %1392 = vmatprep.subr.bf16.mxu0 0
  %1393 = vmatpush1.bf16.msra.mxu0 %v1375
  %1394 = vmatprep.subr.bf16.mxu0 0
  %1395 = vmatpush1.bf16.msra.mxu0 %v1374
  %1396 = vmatprep.subr.bf16.mxu0 0
  %1397 = vmatpush1.bf16.msra.mxu0 %v1373
  %1398 = vmatprep.subr.bf16.mxu0 0
  %1399 = vmatpush1.bf16.msra.mxu0 %v1372
  %1400 = vmatprep.subr.bf16.mxu0 0
  %1401 = vmatpush2.bf16.msra.mxu0 0
  %1402 = vmatprep.subr.bf16.mxu0 0
  %1403 = vmatpush2.bf16.msra.mxu0 0
  %1404 = vmatprep.subr.bf16.mxu0 0
  %1405 = vmatpush2.bf16.msra.mxu0 0
  %1406 = vmatprep.subr.bf16.mxu0 0
  %1407 = vmatpush2.bf16.msra.mxu0 0
  %1408 = vmatprep.subr.bf16.mxu0 0
  %1409 = vmatpush2.bf16.msra.mxu0 0
  %1410 = vmatprep.subr.bf16.mxu0 0
  %1411 = vmatpush2.bf16.msra.mxu0 0
  %1412 = vmatprep.subr.bf16.mxu0 0
  %1413 = vmatpush2.bf16.msra.mxu0 0
  %1414 = vmatprep.subr.bf16.mxu0 0
  %1415 = vmatpush2.bf16.msra.mxu0 0
  %1416 = vmatprep.mubr.bf16.mxu0 0
  %1417 = vmatmul.mubr.bf16.gmra.mxu0 %v1382
  %v1418 = vpop.f32.mrf.mxu0
  %v1419 = vadd.f32 0.0, %v1418
  %v1420 = vpop.f32.mrf.mxu0
  %v1421 = vpop.f32.mrf.mxu0
  %v1422 = vadd.f32 0.0, %v1421
  %v1423 = vpop.f32.mrf.mxu0
  %1424 = vdwg.mxu0
  %v1425 = vadd.f32 %v1272, %v1419
  %v1426 = vadd.f32 %v1273, %v1422
  %v1427 = vld [vmem:[%s7 + $0x5] sm:$0x1]
  %v1428 = vmul.f32 %v1425, %v1425
  %v1429 = vmul.f32 %v1426, %v1426
  %v1430 = vsel %vm207, %v1428, 0.0
  %1431 = vadd.xlane.f32.xlu0 %v1430
  %v1432 = vpop.xlane.xlu0 %1431
  %v1433 = vsel %vm207, %v1429, 0.0
  %1434 = vadd.xlane.f32.xlu0 %v1433
  %v1435 = vpop.xlane.xlu0 %1434
  %v1436 = vmul.f32 %v1432, %v214
  %v1437 = vmul.f32 %v1435, %v214
  %v1438 = vadd.f32 %v1436, 1e-06
  %v1439 = vadd.f32 %v1437, 1e-06
  %v1440 = vrsqrt.pop %v1438
  %v1441 = vrsqrt.pop %v1439
  %v1442 = vmul.f32 %v1425, %v1440
  %v1443 = vmul.f32 %v1426, %v1441
  %v1444 = vlaneseq
  %v1445 = vshrl.u32 %v1444, 7
  %v1446 = vsub.s32 0, %v1445
  %v1447 = vrot.slane %v1427, %v1446
  %v1448 = vmul.f32 %v1442, %v1447
  %v1449 = vmul.f32 %v1443, %v1447
  %v1450 = vpack.c.bf16 %v1449, %v1448
  %v1451 = vld [vmem:[%s7 + $0x2] sm:$0x1]
  %v1452 = vld [vmem:[%s7 + $0x3] sm:$0x1]
  %v1453 = vld [vmem:[%s7 + $0x4] sm:$0x1]
  %v1454 = vld [vmem:[%s4 + $0x10] sm:$0xf]
  %v1455 = vld [vmem:[%s4 + $0x14] sm:$0xf]
  %v1456 = vld [vmem:[%s4 + $0x18] sm:$0xf]
  %v1457 = vld [vmem:[%s4 + $0x1c] sm:$0xf]
  %v1458 = vld [vmem:[%s5 + $0x10] sm:$0xf]
  %v1459 = vld [vmem:[%s5 + $0x14] sm:$0xf]
  %v1460 = vld [vmem:[%s5 + $0x18] sm:$0xf]
  %v1461 = vld [vmem:[%s5 + $0x1c] sm:$0xf]
  %v1462 = vld [vmem:[%s5 + $0x20] sm:$0xf]
  %v1463 = vld [vmem:[%s5 + $0x24] sm:$0xf]
  %v1464 = vld [vmem:[%s5 + $0x28] sm:$0xf]
  %v1465 = vld [vmem:[%s5 + $0x2c] sm:$0xf]
  %v1466 = vld [vmem:[%s6 + $0x30] sm:$0xf]
  %v1467 = vld [vmem:[%s6 + $0x34] sm:$0xf]
  %v1468 = vld [vmem:[%s6 + $0x38] sm:$0xf]
  %v1469 = vld [vmem:[%s6 + $0x3c] sm:$0xf]
  %v1470 = vld [vmem:[%s6 + $0x40] sm:$0xf]
  %v1471 = vld [vmem:[%s6 + $0x44] sm:$0xf]
  %v1472 = vld [vmem:[%s6 + $0x48] sm:$0xf]
  %v1473 = vld [vmem:[%s6 + $0x4c] sm:$0xf]
  %v1474 = vld [vmem:[%s6 + $0x50] sm:$0xf]
  %v1475 = vld [vmem:[%s6 + $0x54] sm:$0xf]
  %v1476 = vld [vmem:[%s6 + $0x58] sm:$0xf]
  %v1477 = vld [vmem:[%s6 + $0x5c] sm:$0xf]
  %v1478 = vld [vmem:[%s6 + $0x60] sm:$0xf]
  %v1479 = vld [vmem:[%s6 + $0x64] sm:$0xf]
  %v1480 = vld [vmem:[%s6 + $0x68] sm:$0xf]
  %v1481 = vld [vmem:[%s6 + $0x6c] sm:$0xf]
  %v1482 = vld [vmem:[%s6 + $0x70] sm:$0xf]
  %v1483 = vld [vmem:[%s6 + $0x74] sm:$0xf]
  %v1484 = vld [vmem:[%s6 + $0x78] sm:$0xf]
  %v1485 = vld [vmem:[%s6 + $0x7c] sm:$0xf]
  %v1486 = vmul.f32 %v177, %v177
  %v1487 = vmul.f32 %v180, %v180
  %v1488 = vsel %vm207, %v1486, 0.0
  %1489 = vadd.xlane.f32.xlu0 %v1488
  %v1490 = vpop.xlane.xlu0 %1489
  %v1491 = vsel %vm207, %v1487, 0.0
  %1492 = vadd.xlane.f32.xlu0 %v1491
  %v1493 = vpop.xlane.xlu0 %1492
  %v1494 = vmul.f32 %v1490, %v214
  %v1495 = vmul.f32 %v1493, %v214
  %v1496 = vadd.f32 %v1494, 1e-06
  %v1497 = vadd.f32 %v1495, 1e-06
  %v1498 = vrsqrt.pop %v1496
  %v1499 = vrsqrt.pop %v1497
  %v1500 = vmul.f32 %v177, %v1498
  %v1501 = vmul.f32 %v180, %v1499
  %v1502 = vlaneseq
  %v1503 = vshrl.u32 %v1502, 7
  %v1504 = vsub.s32 0, %v1503
  %v1505 = vrot.slane %v1451, %v1504
  %v1506 = vmul.f32 %v1500, %v1505
  %v1507 = vmul.f32 %v1501, %v1505
  %v1508 = vpack.c.bf16 %v1507, %v1506
  %v1513 = vunpack.c.l.b16 %v1454
  %v1514 = vunpack.c.l.b16 %v1455
  %v1515 = vunpack.c.l.b16 %v1456
  %v1516 = vunpack.c.l.b16 %v1457
  %v1517 = vpack.c.b16 %v1514, %v1513
  %v1518 = vpack.c.b16 %v1516, %v1515
  %v1522 = vsel %vm207, %v1508, 0
  %1524 = vmatprep.subr.bf16.mxu0 0
  %1525 = vmatpush1.bf16.msra.mxu0 0
  %1526 = vmatprep.subr.bf16.mxu0 0
  %1527 = vmatpush1.bf16.msra.mxu0 0
  %1528 = vmatprep.subr.bf16.mxu0 0
  %1529 = vmatpush1.bf16.msra.mxu0 0
  %1530 = vmatprep.subr.bf16.mxu0 0
  %1531 = vmatpush1.bf16.msra.mxu0 0
  %1532 = vmatprep.subr.bf16.mxu0 0
  %1533 = vmatpush1.bf16.msra.mxu0 0
  %1534 = vmatprep.subr.bf16.mxu0 0
  %1535 = vmatpush1.bf16.msra.mxu0 0
  %1536 = vmatprep.subr.bf16.mxu0 0
  %1537 = vmatpush1.bf16.msra.mxu0 %v1518
  %1538 = vmatprep.subr.bf16.mxu0 0
  %1539 = vmatpush1.bf16.msra.mxu0 %v1517
  %1540 = vmatprep.subr.bf16.mxu0 0
  %1541 = vmatpush2.bf16.msra.mxu0 0
  %1542 = vmatprep.subr.bf16.mxu0 0
  %1543 = vmatpush2.bf16.msra.mxu0 0
  %1544 = vmatprep.subr.bf16.mxu0 0
  %1545 = vmatpush2.bf16.msra.mxu0 0
  %1546 = vmatprep.subr.bf16.mxu0 0
  %1547 = vmatpush2.bf16.msra.mxu0 0
  %1548 = vmatprep.subr.bf16.mxu0 0
  %1549 = vmatpush2.bf16.msra.mxu0 0
  %1550 = vmatprep.subr.bf16.mxu0 0
  %1551 = vmatpush2.bf16.msra.mxu0 0
  %1552 = vmatprep.subr.bf16.mxu0 0
  %1553 = vmatpush2.bf16.msra.mxu0 0
  %1554 = vmatprep.subr.bf16.mxu0 0
  %1555 = vmatpush2.bf16.msra.mxu0 0
  %1556 = vmatprep.mubr.bf16.mxu0 0
  %1557 = vmatmul.mubr.bf16.gmra.mxu0 %v1522
  %v1558 = vpop.f32.mrf.mxu0
  %v1559 = vadd.f32 0.0, %v1558
  %v1560 = vpop.f32.mrf.mxu0
  %v1561 = vpop.f32.mrf.mxu0
  %v1562 = vadd.f32 0.0, %v1561
  %v1563 = vpop.f32.mrf.mxu0
  %1564 = vdwg.mxu0
  %v1565 = vpack.c.bf16 %v1562, %v1559
  %1567 = vrot.lane.b32.xlu0 %v1565, 96
  %v1568 = vpop.permute.xlu0 %1567
  %v1570 = vsel %vm290, %v1565, 0
  %v1573 = vsel %vm290, %v1568, 0
  %1575 = vmatprep.subr.bf16.mxu0 0
  %1576 = vmatpush1.bf16.xpose.msra.mxu0 0
  %1577 = vmatprep.subr.bf16.mxu0 0
  %1578 = vmatpush1.bf16.xpose.msra.mxu0 0
  %1579 = vmatprep.subr.bf16.mxu0 0
  %1580 = vmatpush1.bf16.xpose.msra.mxu0 0
  %1581 = vmatprep.subr.bf16.mxu0 0
  %1582 = vmatpush1.bf16.xpose.msra.mxu0 0
  %1583 = vmatprep.subr.bf16.mxu0 0
  %1584 = vmatpush1.bf16.xpose.msra.mxu0 0
  %1585 = vmatprep.subr.bf16.mxu0 0
  %1586 = vmatpush1.bf16.xpose.msra.mxu0 0
  %1587 = vmatprep.subr.bf16.mxu0 0
  %1588 = vmatpush1.bf16.xpose.msra.mxu0 0
  %1589 = vmatprep.subr.bf16.mxu0 0
  %1590 = vmatpush1.bf16.xpose.msra.mxu0 %v1573
  %1591 = vmatprep.subr.bf16.mxu0 0
  %1592 = vmatpush2.bf16.xpose.msra.mxu0 0
  %1593 = vmatprep.subr.bf16.mxu0 0
  %1594 = vmatpush2.bf16.xpose.msra.mxu0 0
  %1595 = vmatprep.subr.bf16.mxu0 0
  %1596 = vmatpush2.bf16.xpose.msra.mxu0 0
  %1597 = vmatprep.subr.bf16.mxu0 0
  %1598 = vmatpush2.bf16.xpose.msra.mxu0 0
  %1599 = vmatprep.subr.bf16.mxu0 0
  %1600 = vmatpush2.bf16.xpose.msra.mxu0 0
  %1601 = vmatprep.subr.bf16.mxu0 0
  %1602 = vmatpush2.bf16.xpose.msra.mxu0 0
  %1603 = vmatprep.subr.bf16.mxu0 0
  %1604 = vmatpush2.bf16.xpose.msra.mxu0 0
  %1605 = vmatprep.subr.bf16.mxu0 0
  %1606 = vmatpush2.bf16.xpose.msra.mxu0 0
  %1607 = vmatprep.mubr.bf16.mxu0 0
  %1608 = vmatmul.mubr.bf16.gmra.mxu0 %v1570
  %v1609 = vpop.f32.mrf.mxu0
  %v1610 = vadd.f32 %v54, %v1609
  %v1611 = vpop.f32.mrf.mxu0
  %v1612 = vpop.f32.mrf.mxu0
  %v1613 = vpop.f32.mrf.mxu0
  %1614 = vdwg.mxu0
  %v1615 = vsel %vm290, %v1610, -inf
  %1616 = vmax.xlane.f32.xlu0 %v1615
  %v1617 = vpop.xlane.xlu0 %1616
  %v1618 = vsub.f32 %v1610, %v1617
  %v1619 = vmul.f32 %v1618, 1.442695
  %v1620 = vpow.pop %v1619
  %v1621 = vsel %vm290, %v1620, 0.0
  %1622 = vadd.xlane.f32.xlu0 %v1621
  %v1623 = vpop.xlane.xlu0 %1622
  %v1624 = vrcp.pop %v1623
  %v1625 = vmul.f32 %v1620, %v1624
  %v1626 = vpack.c.bf16 %v1625, %v1625
  %1627 = vrot.lane.b32.xlu0 %v1565, 64
  %v1628 = vpop.permute.xlu0 %1627
  %v1630 = vsel %vm290, %v1626, 0
  %v1633 = vsel %vm359, %v1628, 0
  %1635 = vmatprep.subr.bf16.mxu0 0
  %1636 = vmatpush1.bf16.msra.mxu0 0
  %1637 = vmatprep.subr.bf16.mxu0 0
  %1638 = vmatpush1.bf16.msra.mxu0 0
  %1639 = vmatprep.subr.bf16.mxu0 0
  %1640 = vmatpush1.bf16.msra.mxu0 0
  %1641 = vmatprep.subr.bf16.mxu0 0
  %1642 = vmatpush1.bf16.msra.mxu0 0
  %1643 = vmatprep.subr.bf16.mxu0 0
  %1644 = vmatpush1.bf16.msra.mxu0 0
  %1645 = vmatprep.subr.bf16.mxu0 0
  %1646 = vmatpush1.bf16.msra.mxu0 0
  %1647 = vmatprep.subr.bf16.mxu0 0
  %1648 = vmatpush1.bf16.msra.mxu0 0
  %1649 = vmatprep.subr.bf16.mxu0 0
  %1650 = vmatpush1.bf16.msra.mxu0 %v1633
  %1651 = vmatprep.subr.bf16.mxu0 0
  %1652 = vmatpush2.bf16.msra.mxu0 0
  %1653 = vmatprep.subr.bf16.mxu0 0
  %1654 = vmatpush2.bf16.msra.mxu0 0
  %1655 = vmatprep.subr.bf16.mxu0 0
  %1656 = vmatpush2.bf16.msra.mxu0 0
  %1657 = vmatprep.subr.bf16.mxu0 0
  %1658 = vmatpush2.bf16.msra.mxu0 0
  %1659 = vmatprep.subr.bf16.mxu0 0
  %1660 = vmatpush2.bf16.msra.mxu0 0
  %1661 = vmatprep.subr.bf16.mxu0 0
  %1662 = vmatpush2.bf16.msra.mxu0 0
  %1663 = vmatprep.subr.bf16.mxu0 0
  %1664 = vmatpush2.bf16.msra.mxu0 0
  %1665 = vmatprep.subr.bf16.mxu0 0
  %1666 = vmatpush2.bf16.msra.mxu0 0
  %1667 = vmatprep.mubr.bf16.mxu0 0
  %1668 = vmatmul.mubr.bf16.gmra.mxu0 %v1630
  %v1669 = vpop.f32.mrf.mxu0
  %v1670 = vadd.f32 0.0, %v1669
  %v1671 = vpop.f32.mrf.mxu0
  %v1672 = vpop.f32.mrf.mxu0
  %v1673 = vpop.f32.mrf.mxu0
  %1674 = vdwg.mxu0
  %1675 = vrot.lane.b32.xlu0 %v1565, 120
  %v1676 = vpop.permute.xlu0 %1675
  %1677 = vrot.lane.b32.xlu0 %v1565, 88
  %v1678 = vpop.permute.xlu0 %1677
  %v1680 = vsel %vm290, %v1676, 0
  %v1683 = vsel %vm290, %v1678, 0
  %1685 = vmatprep.subr.bf16.mxu0 0
  %1686 = vmatpush1.bf16.xpose.msra.mxu0 0
  %1687 = vmatprep.subr.bf16.mxu0 0
  %1688 = vmatpush1.bf16.xpose.msra.mxu0 0
  %1689 = vmatprep.subr.bf16.mxu0 0
  %1690 = vmatpush1.bf16.xpose.msra.mxu0 0
  %1691 = vmatprep.subr.bf16.mxu0 0
  %1692 = vmatpush1.bf16.xpose.msra.mxu0 0
  %1693 = vmatprep.subr.bf16.mxu0 0
  %1694 = vmatpush1.bf16.xpose.msra.mxu0 0
  %1695 = vmatprep.subr.bf16.mxu0 0
  %1696 = vmatpush1.bf16.xpose.msra.mxu0 0
  %1697 = vmatprep.subr.bf16.mxu0 0
  %1698 = vmatpush1.bf16.xpose.msra.mxu0 0
  %1699 = vmatprep.subr.bf16.mxu0 0
  %1700 = vmatpush1.bf16.xpose.msra.mxu0 %v1683
  %1701 = vmatprep.subr.bf16.mxu0 0
  %1702 = vmatpush2.bf16.xpose.msra.mxu0 0
  %1703 = vmatprep.subr.bf16.mxu0 0
  %1704 = vmatpush2.bf16.xpose.msra.mxu0 0
  %1705 = vmatprep.subr.bf16.mxu0 0
  %1706 = vmatpush2.bf16.xpose.msra.mxu0 0
  %1707 = vmatprep.subr.bf16.mxu0 0
  %1708 = vmatpush2.bf16.xpose.msra.mxu0 0
  %1709 = vmatprep.subr.bf16.mxu0 0
  %1710 = vmatpush2.bf16.xpose.msra.mxu0 0
  %1711 = vmatprep.subr.bf16.mxu0 0
  %1712 = vmatpush2.bf16.xpose.msra.mxu0 0
  %1713 = vmatprep.subr.bf16.mxu0 0
  %1714 = vmatpush2.bf16.xpose.msra.mxu0 0
  %1715 = vmatprep.subr.bf16.mxu0 0
  %1716 = vmatpush2.bf16.xpose.msra.mxu0 0
  %1717 = vmatprep.mubr.bf16.mxu0 0
  %1718 = vmatmul.mubr.bf16.gmra.mxu0 %v1680
  %v1719 = vpop.f32.mrf.mxu0
  %v1720 = vadd.f32 %v55, %v1719
  %v1721 = vpop.f32.mrf.mxu0
  %v1722 = vpop.f32.mrf.mxu0
  %v1723 = vpop.f32.mrf.mxu0
  %1724 = vdwg.mxu0
  %v1725 = vsel %vm290, %v1720, -inf
  %1726 = vmax.xlane.f32.xlu0 %v1725
  %v1727 = vpop.xlane.xlu0 %1726
  %v1728 = vsub.f32 %v1720, %v1727
  %v1729 = vmul.f32 %v1728, 1.442695
  %v1730 = vpow.pop %v1729
  %v1731 = vsel %vm290, %v1730, 0.0
  %1732 = vadd.xlane.f32.xlu0 %v1731
  %v1733 = vpop.xlane.xlu0 %1732
  %v1734 = vrcp.pop %v1733
  %v1735 = vmul.f32 %v1730, %v1734
  %v1736 = vpack.c.bf16 %v1735, %v1735
  %1737 = vrot.lane.b32.xlu0 %v1565, 56
  %v1738 = vpop.permute.xlu0 %1737
  %v1740 = vsel %vm290, %v1736, 0
  %v1743 = vsel %vm359, %v1738, 0
  %1745 = vmatprep.subr.bf16.mxu0 0
  %1746 = vmatpush1.bf16.msra.mxu0 0
  %1747 = vmatprep.subr.bf16.mxu0 0
  %1748 = vmatpush1.bf16.msra.mxu0 0
  %1749 = vmatprep.subr.bf16.mxu0 0
  %1750 = vmatpush1.bf16.msra.mxu0 0
  %1751 = vmatprep.subr.bf16.mxu0 0
  %1752 = vmatpush1.bf16.msra.mxu0 0
  %1753 = vmatprep.subr.bf16.mxu0 0
  %1754 = vmatpush1.bf16.msra.mxu0 0
  %1755 = vmatprep.subr.bf16.mxu0 0
  %1756 = vmatpush1.bf16.msra.mxu0 0
  %1757 = vmatprep.subr.bf16.mxu0 0
  %1758 = vmatpush1.bf16.msra.mxu0 0
  %1759 = vmatprep.subr.bf16.mxu0 0
  %1760 = vmatpush1.bf16.msra.mxu0 %v1743
  %1761 = vmatprep.subr.bf16.mxu0 0
  %1762 = vmatpush2.bf16.msra.mxu0 0
  %1763 = vmatprep.subr.bf16.mxu0 0
  %1764 = vmatpush2.bf16.msra.mxu0 0
  %1765 = vmatprep.subr.bf16.mxu0 0
  %1766 = vmatpush2.bf16.msra.mxu0 0
  %1767 = vmatprep.subr.bf16.mxu0 0
  %1768 = vmatpush2.bf16.msra.mxu0 0
  %1769 = vmatprep.subr.bf16.mxu0 0
  %1770 = vmatpush2.bf16.msra.mxu0 0
  %1771 = vmatprep.subr.bf16.mxu0 0
  %1772 = vmatpush2.bf16.msra.mxu0 0
  %1773 = vmatprep.subr.bf16.mxu0 0
  %1774 = vmatpush2.bf16.msra.mxu0 0
  %1775 = vmatprep.subr.bf16.mxu0 0
  %1776 = vmatpush2.bf16.msra.mxu0 0
  %1777 = vmatprep.mubr.bf16.mxu0 0
  %1778 = vmatmul.mubr.bf16.gmra.mxu0 %v1740
  %v1779 = vpop.f32.mrf.mxu0
  %v1780 = vadd.f32 0.0, %v1779
  %v1781 = vpop.f32.mrf.mxu0
  %v1782 = vpop.f32.mrf.mxu0
  %v1783 = vpop.f32.mrf.mxu0
  %1784 = vdwg.mxu0
  %1785 = vrot.lane.b32.xlu0 %v1565, 112
  %v1786 = vpop.permute.xlu0 %1785
  %1787 = vrot.lane.b32.xlu0 %v1565, 80
  %v1788 = vpop.permute.xlu0 %1787
  %v1790 = vsel %vm290, %v1786, 0
  %v1793 = vsel %vm290, %v1788, 0
  %1795 = vmatprep.subr.bf16.mxu0 0
  %1796 = vmatpush1.bf16.xpose.msra.mxu0 0
  %1797 = vmatprep.subr.bf16.mxu0 0
  %1798 = vmatpush1.bf16.xpose.msra.mxu0 0
  %1799 = vmatprep.subr.bf16.mxu0 0
  %1800 = vmatpush1.bf16.xpose.msra.mxu0 0
  %1801 = vmatprep.subr.bf16.mxu0 0
  %1802 = vmatpush1.bf16.xpose.msra.mxu0 0
  %1803 = vmatprep.subr.bf16.mxu0 0
  %1804 = vmatpush1.bf16.xpose.msra.mxu0 0
  %1805 = vmatprep.subr.bf16.mxu0 0
  %1806 = vmatpush1.bf16.xpose.msra.mxu0 0
  %1807 = vmatprep.subr.bf16.mxu0 0
  %1808 = vmatpush1.bf16.xpose.msra.mxu0 0
  %1809 = vmatprep.subr.bf16.mxu0 0
  %1810 = vmatpush1.bf16.xpose.msra.mxu0 %v1793
  %1811 = vmatprep.subr.bf16.mxu0 0
  %1812 = vmatpush2.bf16.xpose.msra.mxu0 0
  %1813 = vmatprep.subr.bf16.mxu0 0
  %1814 = vmatpush2.bf16.xpose.msra.mxu0 0
  %1815 = vmatprep.subr.bf16.mxu0 0
  %1816 = vmatpush2.bf16.xpose.msra.mxu0 0
  %1817 = vmatprep.subr.bf16.mxu0 0
  %1818 = vmatpush2.bf16.xpose.msra.mxu0 0
  %1819 = vmatprep.subr.bf16.mxu0 0
  %1820 = vmatpush2.bf16.xpose.msra.mxu0 0
  %1821 = vmatprep.subr.bf16.mxu0 0
  %1822 = vmatpush2.bf16.xpose.msra.mxu0 0
  %1823 = vmatprep.subr.bf16.mxu0 0
  %1824 = vmatpush2.bf16.xpose.msra.mxu0 0
  %1825 = vmatprep.subr.bf16.mxu0 0
  %1826 = vmatpush2.bf16.xpose.msra.mxu0 0
  %1827 = vmatprep.mubr.bf16.mxu0 0
  %1828 = vmatmul.mubr.bf16.gmra.mxu0 %v1790
  %v1829 = vpop.f32.mrf.mxu0
  %v1830 = vadd.f32 %v56, %v1829
  %v1831 = vpop.f32.mrf.mxu0
  %v1832 = vpop.f32.mrf.mxu0
  %v1833 = vpop.f32.mrf.mxu0
  %1834 = vdwg.mxu0
  %v1835 = vsel %vm290, %v1830, -inf
  %1836 = vmax.xlane.f32.xlu0 %v1835
  %v1837 = vpop.xlane.xlu0 %1836
  %v1838 = vsub.f32 %v1830, %v1837
  %v1839 = vmul.f32 %v1838, 1.442695
  %v1840 = vpow.pop %v1839
  %v1841 = vsel %vm290, %v1840, 0.0
  %1842 = vadd.xlane.f32.xlu0 %v1841
  %v1843 = vpop.xlane.xlu0 %1842
  %v1844 = vrcp.pop %v1843
  %v1845 = vmul.f32 %v1840, %v1844
  %v1846 = vpack.c.bf16 %v1845, %v1845
  %1847 = vrot.lane.b32.xlu0 %v1565, 48
  %v1848 = vpop.permute.xlu0 %1847
  %v1850 = vsel %vm290, %v1846, 0
  %v1853 = vsel %vm359, %v1848, 0
  %1855 = vmatprep.subr.bf16.mxu0 0
  %1856 = vmatpush1.bf16.msra.mxu0 0
  %1857 = vmatprep.subr.bf16.mxu0 0
  %1858 = vmatpush1.bf16.msra.mxu0 0
  %1859 = vmatprep.subr.bf16.mxu0 0
  %1860 = vmatpush1.bf16.msra.mxu0 0
  %1861 = vmatprep.subr.bf16.mxu0 0
  %1862 = vmatpush1.bf16.msra.mxu0 0
  %1863 = vmatprep.subr.bf16.mxu0 0
  %1864 = vmatpush1.bf16.msra.mxu0 0
  %1865 = vmatprep.subr.bf16.mxu0 0
  %1866 = vmatpush1.bf16.msra.mxu0 0
  %1867 = vmatprep.subr.bf16.mxu0 0
  %1868 = vmatpush1.bf16.msra.mxu0 0
  %1869 = vmatprep.subr.bf16.mxu0 0
  %1870 = vmatpush1.bf16.msra.mxu0 %v1853
  %1871 = vmatprep.subr.bf16.mxu0 0
  %1872 = vmatpush2.bf16.msra.mxu0 0
  %1873 = vmatprep.subr.bf16.mxu0 0
  %1874 = vmatpush2.bf16.msra.mxu0 0
  %1875 = vmatprep.subr.bf16.mxu0 0
  %1876 = vmatpush2.bf16.msra.mxu0 0
  %1877 = vmatprep.subr.bf16.mxu0 0
  %1878 = vmatpush2.bf16.msra.mxu0 0
  %1879 = vmatprep.subr.bf16.mxu0 0
  %1880 = vmatpush2.bf16.msra.mxu0 0
  %1881 = vmatprep.subr.bf16.mxu0 0
  %1882 = vmatpush2.bf16.msra.mxu0 0
  %1883 = vmatprep.subr.bf16.mxu0 0
  %1884 = vmatpush2.bf16.msra.mxu0 0
  %1885 = vmatprep.subr.bf16.mxu0 0
  %1886 = vmatpush2.bf16.msra.mxu0 0
  %1887 = vmatprep.mubr.bf16.mxu0 0
  %1888 = vmatmul.mubr.bf16.gmra.mxu0 %v1850
  %v1889 = vpop.f32.mrf.mxu0
  %v1890 = vadd.f32 0.0, %v1889
  %v1891 = vpop.f32.mrf.mxu0
  %v1892 = vpop.f32.mrf.mxu0
  %v1893 = vpop.f32.mrf.mxu0
  %1894 = vdwg.mxu0
  %1895 = vrot.lane.b32.xlu0 %v1565, 104
  %v1896 = vpop.permute.xlu0 %1895
  %1897 = vrot.lane.b32.xlu0 %v1565, 72
  %v1898 = vpop.permute.xlu0 %1897
  %v1900 = vsel %vm290, %v1896, 0
  %v1903 = vsel %vm290, %v1898, 0
  %1905 = vmatprep.subr.bf16.mxu0 0
  %1906 = vmatpush1.bf16.xpose.msra.mxu0 0
  %1907 = vmatprep.subr.bf16.mxu0 0
  %1908 = vmatpush1.bf16.xpose.msra.mxu0 0
  %1909 = vmatprep.subr.bf16.mxu0 0
  %1910 = vmatpush1.bf16.xpose.msra.mxu0 0
  %1911 = vmatprep.subr.bf16.mxu0 0
  %1912 = vmatpush1.bf16.xpose.msra.mxu0 0
  %1913 = vmatprep.subr.bf16.mxu0 0
  %1914 = vmatpush1.bf16.xpose.msra.mxu0 0
  %1915 = vmatprep.subr.bf16.mxu0 0
  %1916 = vmatpush1.bf16.xpose.msra.mxu0 0
  %1917 = vmatprep.subr.bf16.mxu0 0
  %1918 = vmatpush1.bf16.xpose.msra.mxu0 0
  %1919 = vmatprep.subr.bf16.mxu0 0
  %1920 = vmatpush1.bf16.xpose.msra.mxu0 %v1903
  %1921 = vmatprep.subr.bf16.mxu0 0
  %1922 = vmatpush2.bf16.xpose.msra.mxu0 0
  %1923 = vmatprep.subr.bf16.mxu0 0
  %1924 = vmatpush2.bf16.xpose.msra.mxu0 0
  %1925 = vmatprep.subr.bf16.mxu0 0
  %1926 = vmatpush2.bf16.xpose.msra.mxu0 0
  %1927 = vmatprep.subr.bf16.mxu0 0
  %1928 = vmatpush2.bf16.xpose.msra.mxu0 0
  %1929 = vmatprep.subr.bf16.mxu0 0
  %1930 = vmatpush2.bf16.xpose.msra.mxu0 0
  %1931 = vmatprep.subr.bf16.mxu0 0
  %1932 = vmatpush2.bf16.xpose.msra.mxu0 0
  %1933 = vmatprep.subr.bf16.mxu0 0
  %1934 = vmatpush2.bf16.xpose.msra.mxu0 0
  %1935 = vmatprep.subr.bf16.mxu0 0
  %1936 = vmatpush2.bf16.xpose.msra.mxu0 0
  %1937 = vmatprep.mubr.bf16.mxu0 0
  %1938 = vmatmul.mubr.bf16.gmra.mxu0 %v1900
  %v1939 = vpop.f32.mrf.mxu0
  %v1940 = vadd.f32 %v57, %v1939
  %v1941 = vpop.f32.mrf.mxu0
  %v1942 = vpop.f32.mrf.mxu0
  %v1943 = vpop.f32.mrf.mxu0
  %1944 = vdwg.mxu0
  %v1945 = vsel %vm290, %v1940, -inf
  %1946 = vmax.xlane.f32.xlu0 %v1945
  %v1947 = vpop.xlane.xlu0 %1946
  %v1948 = vsub.f32 %v1940, %v1947
  %v1949 = vmul.f32 %v1948, 1.442695
  %v1950 = vpow.pop %v1949
  %v1951 = vsel %vm290, %v1950, 0.0
  %1952 = vadd.xlane.f32.xlu0 %v1951
  %v1953 = vpop.xlane.xlu0 %1952
  %v1954 = vrcp.pop %v1953
  %v1955 = vmul.f32 %v1950, %v1954
  %v1956 = vpack.c.bf16 %v1955, %v1955
  %1957 = vrot.lane.b32.xlu0 %v1565, 40
  %v1958 = vpop.permute.xlu0 %1957
  %v1960 = vsel %vm290, %v1956, 0
  %v1963 = vsel %vm359, %v1958, 0
  %1965 = vmatprep.subr.bf16.mxu0 0
  %1966 = vmatpush1.bf16.msra.mxu0 0
  %1967 = vmatprep.subr.bf16.mxu0 0
  %1968 = vmatpush1.bf16.msra.mxu0 0
  %1969 = vmatprep.subr.bf16.mxu0 0
  %1970 = vmatpush1.bf16.msra.mxu0 0
  %1971 = vmatprep.subr.bf16.mxu0 0
  %1972 = vmatpush1.bf16.msra.mxu0 0
  %1973 = vmatprep.subr.bf16.mxu0 0
  %1974 = vmatpush1.bf16.msra.mxu0 0
  %1975 = vmatprep.subr.bf16.mxu0 0
  %1976 = vmatpush1.bf16.msra.mxu0 0
  %1977 = vmatprep.subr.bf16.mxu0 0
  %1978 = vmatpush1.bf16.msra.mxu0 0
  %1979 = vmatprep.subr.bf16.mxu0 0
  %1980 = vmatpush1.bf16.msra.mxu0 %v1963
  %1981 = vmatprep.subr.bf16.mxu0 0
  %1982 = vmatpush2.bf16.msra.mxu0 0
  %1983 = vmatprep.subr.bf16.mxu0 0
  %1984 = vmatpush2.bf16.msra.mxu0 0
  %1985 = vmatprep.subr.bf16.mxu0 0
  %1986 = vmatpush2.bf16.msra.mxu0 0
  %1987 = vmatprep.subr.bf16.mxu0 0
  %1988 = vmatpush2.bf16.msra.mxu0 0
  %1989 = vmatprep.subr.bf16.mxu0 0
  %1990 = vmatpush2.bf16.msra.mxu0 0
  %1991 = vmatprep.subr.bf16.mxu0 0
  %1992 = vmatpush2.bf16.msra.mxu0 0
  %1993 = vmatprep.subr.bf16.mxu0 0
  %1994 = vmatpush2.bf16.msra.mxu0 0
  %1995 = vmatprep.subr.bf16.mxu0 0
  %1996 = vmatpush2.bf16.msra.mxu0 0
  %1997 = vmatprep.mubr.bf16.mxu0 0
  %1998 = vmatmul.mubr.bf16.gmra.mxu0 %v1960
  %v1999 = vpop.f32.mrf.mxu0
  %v2000 = vadd.f32 0.0, %v1999
  %v2001 = vpop.f32.mrf.mxu0
  %v2002 = vpop.f32.mrf.mxu0
  %v2003 = vpop.f32.mrf.mxu0
  %2004 = vdwg.mxu0
  %2006 = vrot.lane.b32.xlu0 %v1780, 8
  %v2007 = vpop.permute.xlu0 %2006
  %2010 = vrot.lane.b32.xlu0 %v1890, 16
  %v2011 = vpop.permute.xlu0 %2010
  %2014 = vrot.lane.b32.xlu0 %v2000, 24
  %v2015 = vpop.permute.xlu0 %2014
  %v2017 = vsel %vm290, %v1670, %v2007
  %v2018 = vsel %vm749, %v2017, %v2011
  %v2019 = vsel %vm751, %v2018, %v2015
  %v2020 = vrot.slane %v1565, 4
  %2021 = vrot.lane.b32.xlu0 %v2020, 96
  %v2022 = vpop.permute.xlu0 %2021
  %v2024 = vsel %vm290, %v2020, 0
  %v2027 = vsel %vm290, %v2022, 0
  %2029 = vmatprep.subr.bf16.mxu0 0
  %2030 = vmatpush1.bf16.xpose.msra.mxu0 0
  %2031 = vmatprep.subr.bf16.mxu0 0
  %2032 = vmatpush1.bf16.xpose.msra.mxu0 0
  %2033 = vmatprep.subr.bf16.mxu0 0
  %2034 = vmatpush1.bf16.xpose.msra.mxu0 0
  %2035 = vmatprep.subr.bf16.mxu0 0
  %2036 = vmatpush1.bf16.xpose.msra.mxu0 0
  %2037 = vmatprep.subr.bf16.mxu0 0
  %2038 = vmatpush1.bf16.xpose.msra.mxu0 0
  %2039 = vmatprep.subr.bf16.mxu0 0
  %2040 = vmatpush1.bf16.xpose.msra.mxu0 0
  %2041 = vmatprep.subr.bf16.mxu0 0
  %2042 = vmatpush1.bf16.xpose.msra.mxu0 0
  %2043 = vmatprep.subr.bf16.mxu0 0
  %2044 = vmatpush1.bf16.xpose.msra.mxu0 %v2027
  %2045 = vmatprep.subr.bf16.mxu0 0
  %2046 = vmatpush2.bf16.xpose.msra.mxu0 0
  %2047 = vmatprep.subr.bf16.mxu0 0
  %2048 = vmatpush2.bf16.xpose.msra.mxu0 0
  %2049 = vmatprep.subr.bf16.mxu0 0
  %2050 = vmatpush2.bf16.xpose.msra.mxu0 0
  %2051 = vmatprep.subr.bf16.mxu0 0
  %2052 = vmatpush2.bf16.xpose.msra.mxu0 0
  %2053 = vmatprep.subr.bf16.mxu0 0
  %2054 = vmatpush2.bf16.xpose.msra.mxu0 0
  %2055 = vmatprep.subr.bf16.mxu0 0
  %2056 = vmatpush2.bf16.xpose.msra.mxu0 0
  %2057 = vmatprep.subr.bf16.mxu0 0
  %2058 = vmatpush2.bf16.xpose.msra.mxu0 0
  %2059 = vmatprep.subr.bf16.mxu0 0
  %2060 = vmatpush2.bf16.xpose.msra.mxu0 0
  %2061 = vmatprep.mubr.bf16.mxu0 0
  %2062 = vmatmul.mubr.bf16.gmra.mxu0 %v2024
  %v2063 = vpop.f32.mrf.mxu0
  %v2064 = vadd.f32 %v54, %v2063
  %v2065 = vpop.f32.mrf.mxu0
  %v2066 = vpop.f32.mrf.mxu0
  %v2067 = vpop.f32.mrf.mxu0
  %2068 = vdwg.mxu0
  %v2069 = vsel %vm290, %v2064, -inf
  %2070 = vmax.xlane.f32.xlu0 %v2069
  %v2071 = vpop.xlane.xlu0 %2070
  %v2072 = vsub.f32 %v2064, %v2071
  %v2073 = vmul.f32 %v2072, 1.442695
  %v2074 = vpow.pop %v2073
  %v2075 = vsel %vm290, %v2074, 0.0
  %2076 = vadd.xlane.f32.xlu0 %v2075
  %v2077 = vpop.xlane.xlu0 %2076
  %v2078 = vrcp.pop %v2077
  %v2079 = vmul.f32 %v2074, %v2078
  %v2080 = vpack.c.bf16 %v2079, %v2079
  %2081 = vrot.lane.b32.xlu0 %v2020, 64
  %v2082 = vpop.permute.xlu0 %2081
  %v2084 = vsel %vm290, %v2080, 0
  %v2087 = vsel %vm359, %v2082, 0
  %2089 = vmatprep.subr.bf16.mxu0 0
  %2090 = vmatpush1.bf16.msra.mxu0 0
  %2091 = vmatprep.subr.bf16.mxu0 0
  %2092 = vmatpush1.bf16.msra.mxu0 0
  %2093 = vmatprep.subr.bf16.mxu0 0
  %2094 = vmatpush1.bf16.msra.mxu0 0
  %2095 = vmatprep.subr.bf16.mxu0 0
  %2096 = vmatpush1.bf16.msra.mxu0 0
  %2097 = vmatprep.subr.bf16.mxu0 0
  %2098 = vmatpush1.bf16.msra.mxu0 0
  %2099 = vmatprep.subr.bf16.mxu0 0
  %2100 = vmatpush1.bf16.msra.mxu0 0
  %2101 = vmatprep.subr.bf16.mxu0 0
  %2102 = vmatpush1.bf16.msra.mxu0 0
  %2103 = vmatprep.subr.bf16.mxu0 0
  %2104 = vmatpush1.bf16.msra.mxu0 %v2087
  %2105 = vmatprep.subr.bf16.mxu0 0
  %2106 = vmatpush2.bf16.msra.mxu0 0
  %2107 = vmatprep.subr.bf16.mxu0 0
  %2108 = vmatpush2.bf16.msra.mxu0 0
  %2109 = vmatprep.subr.bf16.mxu0 0
  %2110 = vmatpush2.bf16.msra.mxu0 0
  %2111 = vmatprep.subr.bf16.mxu0 0
  %2112 = vmatpush2.bf16.msra.mxu0 0
  %2113 = vmatprep.subr.bf16.mxu0 0
  %2114 = vmatpush2.bf16.msra.mxu0 0
  %2115 = vmatprep.subr.bf16.mxu0 0
  %2116 = vmatpush2.bf16.msra.mxu0 0
  %2117 = vmatprep.subr.bf16.mxu0 0
  %2118 = vmatpush2.bf16.msra.mxu0 0
  %2119 = vmatprep.subr.bf16.mxu0 0
  %2120 = vmatpush2.bf16.msra.mxu0 0
  %2121 = vmatprep.mubr.bf16.mxu0 0
  %2122 = vmatmul.mubr.bf16.gmra.mxu0 %v2084
  %v2123 = vpop.f32.mrf.mxu0
  %v2124 = vadd.f32 0.0, %v2123
  %v2125 = vpop.f32.mrf.mxu0
  %v2126 = vpop.f32.mrf.mxu0
  %v2127 = vpop.f32.mrf.mxu0
  %2128 = vdwg.mxu0
  %2129 = vrot.lane.b32.xlu0 %v2020, 120
  %v2130 = vpop.permute.xlu0 %2129
  %2131 = vrot.lane.b32.xlu0 %v2020, 88
  %v2132 = vpop.permute.xlu0 %2131
  %v2134 = vsel %vm290, %v2130, 0
  %v2137 = vsel %vm290, %v2132, 0
  %2139 = vmatprep.subr.bf16.mxu0 0
  %2140 = vmatpush1.bf16.xpose.msra.mxu0 0
  %2141 = vmatprep.subr.bf16.mxu0 0
  %2142 = vmatpush1.bf16.xpose.msra.mxu0 0
  %2143 = vmatprep.subr.bf16.mxu0 0
  %2144 = vmatpush1.bf16.xpose.msra.mxu0 0
  %2145 = vmatprep.subr.bf16.mxu0 0
  %2146 = vmatpush1.bf16.xpose.msra.mxu0 0
  %2147 = vmatprep.subr.bf16.mxu0 0
  %2148 = vmatpush1.bf16.xpose.msra.mxu0 0
  %2149 = vmatprep.subr.bf16.mxu0 0
  %2150 = vmatpush1.bf16.xpose.msra.mxu0 0
  %2151 = vmatprep.subr.bf16.mxu0 0
  %2152 = vmatpush1.bf16.xpose.msra.mxu0 0
  %2153 = vmatprep.subr.bf16.mxu0 0
  %2154 = vmatpush1.bf16.xpose.msra.mxu0 %v2137
  %2155 = vmatprep.subr.bf16.mxu0 0
  %2156 = vmatpush2.bf16.xpose.msra.mxu0 0
  %2157 = vmatprep.subr.bf16.mxu0 0
  %2158 = vmatpush2.bf16.xpose.msra.mxu0 0
  %2159 = vmatprep.subr.bf16.mxu0 0
  %2160 = vmatpush2.bf16.xpose.msra.mxu0 0
  %2161 = vmatprep.subr.bf16.mxu0 0
  %2162 = vmatpush2.bf16.xpose.msra.mxu0 0
  %2163 = vmatprep.subr.bf16.mxu0 0
  %2164 = vmatpush2.bf16.xpose.msra.mxu0 0
  %2165 = vmatprep.subr.bf16.mxu0 0
  %2166 = vmatpush2.bf16.xpose.msra.mxu0 0
  %2167 = vmatprep.subr.bf16.mxu0 0
  %2168 = vmatpush2.bf16.xpose.msra.mxu0 0
  %2169 = vmatprep.subr.bf16.mxu0 0
  %2170 = vmatpush2.bf16.xpose.msra.mxu0 0
  %2171 = vmatprep.mubr.bf16.mxu0 0
  %2172 = vmatmul.mubr.bf16.gmra.mxu0 %v2134
  %v2173 = vpop.f32.mrf.mxu0
  %v2174 = vadd.f32 %v55, %v2173
  %v2175 = vpop.f32.mrf.mxu0
  %v2176 = vpop.f32.mrf.mxu0
  %v2177 = vpop.f32.mrf.mxu0
  %2178 = vdwg.mxu0
  %v2179 = vsel %vm290, %v2174, -inf
  %2180 = vmax.xlane.f32.xlu0 %v2179
  %v2181 = vpop.xlane.xlu0 %2180
  %v2182 = vsub.f32 %v2174, %v2181
  %v2183 = vmul.f32 %v2182, 1.442695
  %v2184 = vpow.pop %v2183
  %v2185 = vsel %vm290, %v2184, 0.0
  %2186 = vadd.xlane.f32.xlu0 %v2185
  %v2187 = vpop.xlane.xlu0 %2186
  %v2188 = vrcp.pop %v2187
  %v2189 = vmul.f32 %v2184, %v2188
  %v2190 = vpack.c.bf16 %v2189, %v2189
  %2191 = vrot.lane.b32.xlu0 %v2020, 56
  %v2192 = vpop.permute.xlu0 %2191
  %v2194 = vsel %vm290, %v2190, 0
  %v2197 = vsel %vm359, %v2192, 0
  %2199 = vmatprep.subr.bf16.mxu0 0
  %2200 = vmatpush1.bf16.msra.mxu0 0
  %2201 = vmatprep.subr.bf16.mxu0 0
  %2202 = vmatpush1.bf16.msra.mxu0 0
  %2203 = vmatprep.subr.bf16.mxu0 0
  %2204 = vmatpush1.bf16.msra.mxu0 0
  %2205 = vmatprep.subr.bf16.mxu0 0
  %2206 = vmatpush1.bf16.msra.mxu0 0
  %2207 = vmatprep.subr.bf16.mxu0 0
  %2208 = vmatpush1.bf16.msra.mxu0 0
  %2209 = vmatprep.subr.bf16.mxu0 0
  %2210 = vmatpush1.bf16.msra.mxu0 0
  %2211 = vmatprep.subr.bf16.mxu0 0
  %2212 = vmatpush1.bf16.msra.mxu0 0
  %2213 = vmatprep.subr.bf16.mxu0 0
  %2214 = vmatpush1.bf16.msra.mxu0 %v2197
  %2215 = vmatprep.subr.bf16.mxu0 0
  %2216 = vmatpush2.bf16.msra.mxu0 0
  %2217 = vmatprep.subr.bf16.mxu0 0
  %2218 = vmatpush2.bf16.msra.mxu0 0
  %2219 = vmatprep.subr.bf16.mxu0 0
  %2220 = vmatpush2.bf16.msra.mxu0 0
  %2221 = vmatprep.subr.bf16.mxu0 0
  %2222 = vmatpush2.bf16.msra.mxu0 0
  %2223 = vmatprep.subr.bf16.mxu0 0
  %2224 = vmatpush2.bf16.msra.mxu0 0
  %2225 = vmatprep.subr.bf16.mxu0 0
  %2226 = vmatpush2.bf16.msra.mxu0 0
  %2227 = vmatprep.subr.bf16.mxu0 0
  %2228 = vmatpush2.bf16.msra.mxu0 0
  %2229 = vmatprep.subr.bf16.mxu0 0
  %2230 = vmatpush2.bf16.msra.mxu0 0
  %2231 = vmatprep.mubr.bf16.mxu0 0
  %2232 = vmatmul.mubr.bf16.gmra.mxu0 %v2194
  %v2233 = vpop.f32.mrf.mxu0
  %v2234 = vadd.f32 0.0, %v2233
  %v2235 = vpop.f32.mrf.mxu0
  %v2236 = vpop.f32.mrf.mxu0
  %v2237 = vpop.f32.mrf.mxu0
  %2238 = vdwg.mxu0
  %2239 = vrot.lane.b32.xlu0 %v2020, 112
  %v2240 = vpop.permute.xlu0 %2239
  %2241 = vrot.lane.b32.xlu0 %v2020, 80
  %v2242 = vpop.permute.xlu0 %2241
  %v2244 = vsel %vm290, %v2240, 0
  %v2247 = vsel %vm290, %v2242, 0
  %2249 = vmatprep.subr.bf16.mxu0 0
  %2250 = vmatpush1.bf16.xpose.msra.mxu0 0
  %2251 = vmatprep.subr.bf16.mxu0 0
  %2252 = vmatpush1.bf16.xpose.msra.mxu0 0
  %2253 = vmatprep.subr.bf16.mxu0 0
  %2254 = vmatpush1.bf16.xpose.msra.mxu0 0
  %2255 = vmatprep.subr.bf16.mxu0 0
  %2256 = vmatpush1.bf16.xpose.msra.mxu0 0
  %2257 = vmatprep.subr.bf16.mxu0 0
  %2258 = vmatpush1.bf16.xpose.msra.mxu0 0
  %2259 = vmatprep.subr.bf16.mxu0 0
  %2260 = vmatpush1.bf16.xpose.msra.mxu0 0
  %2261 = vmatprep.subr.bf16.mxu0 0
  %2262 = vmatpush1.bf16.xpose.msra.mxu0 0
  %2263 = vmatprep.subr.bf16.mxu0 0
  %2264 = vmatpush1.bf16.xpose.msra.mxu0 %v2247
  %2265 = vmatprep.subr.bf16.mxu0 0
  %2266 = vmatpush2.bf16.xpose.msra.mxu0 0
  %2267 = vmatprep.subr.bf16.mxu0 0
  %2268 = vmatpush2.bf16.xpose.msra.mxu0 0
  %2269 = vmatprep.subr.bf16.mxu0 0
  %2270 = vmatpush2.bf16.xpose.msra.mxu0 0
  %2271 = vmatprep.subr.bf16.mxu0 0
  %2272 = vmatpush2.bf16.xpose.msra.mxu0 0
  %2273 = vmatprep.subr.bf16.mxu0 0
  %2274 = vmatpush2.bf16.xpose.msra.mxu0 0
  %2275 = vmatprep.subr.bf16.mxu0 0
  %2276 = vmatpush2.bf16.xpose.msra.mxu0 0
  %2277 = vmatprep.subr.bf16.mxu0 0
  %2278 = vmatpush2.bf16.xpose.msra.mxu0 0
  %2279 = vmatprep.subr.bf16.mxu0 0
  %2280 = vmatpush2.bf16.xpose.msra.mxu0 0
  %2281 = vmatprep.mubr.bf16.mxu0 0
  %2282 = vmatmul.mubr.bf16.gmra.mxu0 %v2244
  %v2283 = vpop.f32.mrf.mxu0
  %v2284 = vadd.f32 %v56, %v2283
  %v2285 = vpop.f32.mrf.mxu0
  %v2286 = vpop.f32.mrf.mxu0
  %v2287 = vpop.f32.mrf.mxu0
  %2288 = vdwg.mxu0
  %v2289 = vsel %vm290, %v2284, -inf
  %2290 = vmax.xlane.f32.xlu0 %v2289
  %v2291 = vpop.xlane.xlu0 %2290
  %v2292 = vsub.f32 %v2284, %v2291
  %v2293 = vmul.f32 %v2292, 1.442695
  %v2294 = vpow.pop %v2293
  %v2295 = vsel %vm290, %v2294, 0.0
  %2296 = vadd.xlane.f32.xlu0 %v2295
  %v2297 = vpop.xlane.xlu0 %2296
  %v2298 = vrcp.pop %v2297
  %v2299 = vmul.f32 %v2294, %v2298
  %v2300 = vpack.c.bf16 %v2299, %v2299
  %2301 = vrot.lane.b32.xlu0 %v2020, 48
  %v2302 = vpop.permute.xlu0 %2301
  %v2304 = vsel %vm290, %v2300, 0
  %v2307 = vsel %vm359, %v2302, 0
  %2309 = vmatprep.subr.bf16.mxu0 0
  %2310 = vmatpush1.bf16.msra.mxu0 0
  %2311 = vmatprep.subr.bf16.mxu0 0
  %2312 = vmatpush1.bf16.msra.mxu0 0
  %2313 = vmatprep.subr.bf16.mxu0 0
  %2314 = vmatpush1.bf16.msra.mxu0 0
  %2315 = vmatprep.subr.bf16.mxu0 0
  %2316 = vmatpush1.bf16.msra.mxu0 0
  %2317 = vmatprep.subr.bf16.mxu0 0
  %2318 = vmatpush1.bf16.msra.mxu0 0
  %2319 = vmatprep.subr.bf16.mxu0 0
  %2320 = vmatpush1.bf16.msra.mxu0 0
  %2321 = vmatprep.subr.bf16.mxu0 0
  %2322 = vmatpush1.bf16.msra.mxu0 0
  %2323 = vmatprep.subr.bf16.mxu0 0
  %2324 = vmatpush1.bf16.msra.mxu0 %v2307
  %2325 = vmatprep.subr.bf16.mxu0 0
  %2326 = vmatpush2.bf16.msra.mxu0 0
  %2327 = vmatprep.subr.bf16.mxu0 0
  %2328 = vmatpush2.bf16.msra.mxu0 0
  %2329 = vmatprep.subr.bf16.mxu0 0
  %2330 = vmatpush2.bf16.msra.mxu0 0
  %2331 = vmatprep.subr.bf16.mxu0 0
  %2332 = vmatpush2.bf16.msra.mxu0 0
  %2333 = vmatprep.subr.bf16.mxu0 0
  %2334 = vmatpush2.bf16.msra.mxu0 0
  %2335 = vmatprep.subr.bf16.mxu0 0
  %2336 = vmatpush2.bf16.msra.mxu0 0
  %2337 = vmatprep.subr.bf16.mxu0 0
  %2338 = vmatpush2.bf16.msra.mxu0 0
  %2339 = vmatprep.subr.bf16.mxu0 0
  %2340 = vmatpush2.bf16.msra.mxu0 0
  %2341 = vmatprep.mubr.bf16.mxu0 0
  %2342 = vmatmul.mubr.bf16.gmra.mxu0 %v2304
  %v2343 = vpop.f32.mrf.mxu0
  %v2344 = vadd.f32 0.0, %v2343
  %v2345 = vpop.f32.mrf.mxu0
  %v2346 = vpop.f32.mrf.mxu0
  %v2347 = vpop.f32.mrf.mxu0
  %2348 = vdwg.mxu0
  %2349 = vrot.lane.b32.xlu0 %v2020, 104
  %v2350 = vpop.permute.xlu0 %2349
  %2351 = vrot.lane.b32.xlu0 %v2020, 72
  %v2352 = vpop.permute.xlu0 %2351
  %v2354 = vsel %vm290, %v2350, 0
  %v2357 = vsel %vm290, %v2352, 0
  %2359 = vmatprep.subr.bf16.mxu0 0
  %2360 = vmatpush1.bf16.xpose.msra.mxu0 0
  %2361 = vmatprep.subr.bf16.mxu0 0
  %2362 = vmatpush1.bf16.xpose.msra.mxu0 0
  %2363 = vmatprep.subr.bf16.mxu0 0
  %2364 = vmatpush1.bf16.xpose.msra.mxu0 0
  %2365 = vmatprep.subr.bf16.mxu0 0
  %2366 = vmatpush1.bf16.xpose.msra.mxu0 0
  %2367 = vmatprep.subr.bf16.mxu0 0
  %2368 = vmatpush1.bf16.xpose.msra.mxu0 0
  %2369 = vmatprep.subr.bf16.mxu0 0
  %2370 = vmatpush1.bf16.xpose.msra.mxu0 0
  %2371 = vmatprep.subr.bf16.mxu0 0
  %2372 = vmatpush1.bf16.xpose.msra.mxu0 0
  %2373 = vmatprep.subr.bf16.mxu0 0
  %2374 = vmatpush1.bf16.xpose.msra.mxu0 %v2357
  %2375 = vmatprep.subr.bf16.mxu0 0
  %2376 = vmatpush2.bf16.xpose.msra.mxu0 0
  %2377 = vmatprep.subr.bf16.mxu0 0
  %2378 = vmatpush2.bf16.xpose.msra.mxu0 0
  %2379 = vmatprep.subr.bf16.mxu0 0
  %2380 = vmatpush2.bf16.xpose.msra.mxu0 0
  %2381 = vmatprep.subr.bf16.mxu0 0
  %2382 = vmatpush2.bf16.xpose.msra.mxu0 0
  %2383 = vmatprep.subr.bf16.mxu0 0
  %2384 = vmatpush2.bf16.xpose.msra.mxu0 0
  %2385 = vmatprep.subr.bf16.mxu0 0
  %2386 = vmatpush2.bf16.xpose.msra.mxu0 0
  %2387 = vmatprep.subr.bf16.mxu0 0
  %2388 = vmatpush2.bf16.xpose.msra.mxu0 0
  %2389 = vmatprep.subr.bf16.mxu0 0
  %2390 = vmatpush2.bf16.xpose.msra.mxu0 0
  %2391 = vmatprep.mubr.bf16.mxu0 0
  %2392 = vmatmul.mubr.bf16.gmra.mxu0 %v2354
  %v2393 = vpop.f32.mrf.mxu0
  %v2394 = vadd.f32 %v57, %v2393
  %v2395 = vpop.f32.mrf.mxu0
  %v2396 = vpop.f32.mrf.mxu0
  %v2397 = vpop.f32.mrf.mxu0
  %2398 = vdwg.mxu0
  %v2399 = vsel %vm290, %v2394, -inf
  %2400 = vmax.xlane.f32.xlu0 %v2399
  %v2401 = vpop.xlane.xlu0 %2400
  %v2402 = vsub.f32 %v2394, %v2401
  %v2403 = vmul.f32 %v2402, 1.442695
  %v2404 = vpow.pop %v2403
  %v2405 = vsel %vm290, %v2404, 0.0
  %2406 = vadd.xlane.f32.xlu0 %v2405
  %v2407 = vpop.xlane.xlu0 %2406
  %v2408 = vrcp.pop %v2407
  %v2409 = vmul.f32 %v2404, %v2408
  %v2410 = vpack.c.bf16 %v2409, %v2409
  %2411 = vrot.lane.b32.xlu0 %v2020, 40
  %v2412 = vpop.permute.xlu0 %2411
  %v2414 = vsel %vm290, %v2410, 0
  %v2417 = vsel %vm359, %v2412, 0
  %2419 = vmatprep.subr.bf16.mxu0 0
  %2420 = vmatpush1.bf16.msra.mxu0 0
  %2421 = vmatprep.subr.bf16.mxu0 0
  %2422 = vmatpush1.bf16.msra.mxu0 0
  %2423 = vmatprep.subr.bf16.mxu0 0
  %2424 = vmatpush1.bf16.msra.mxu0 0
  %2425 = vmatprep.subr.bf16.mxu0 0
  %2426 = vmatpush1.bf16.msra.mxu0 0
  %2427 = vmatprep.subr.bf16.mxu0 0
  %2428 = vmatpush1.bf16.msra.mxu0 0
  %2429 = vmatprep.subr.bf16.mxu0 0
  %2430 = vmatpush1.bf16.msra.mxu0 0
  %2431 = vmatprep.subr.bf16.mxu0 0
  %2432 = vmatpush1.bf16.msra.mxu0 0
  %2433 = vmatprep.subr.bf16.mxu0 0
  %2434 = vmatpush1.bf16.msra.mxu0 %v2417
  %2435 = vmatprep.subr.bf16.mxu0 0
  %2436 = vmatpush2.bf16.msra.mxu0 0
  %2437 = vmatprep.subr.bf16.mxu0 0
  %2438 = vmatpush2.bf16.msra.mxu0 0
  %2439 = vmatprep.subr.bf16.mxu0 0
  %2440 = vmatpush2.bf16.msra.mxu0 0
  %2441 = vmatprep.subr.bf16.mxu0 0
  %2442 = vmatpush2.bf16.msra.mxu0 0
  %2443 = vmatprep.subr.bf16.mxu0 0
  %2444 = vmatpush2.bf16.msra.mxu0 0
  %2445 = vmatprep.subr.bf16.mxu0 0
  %2446 = vmatpush2.bf16.msra.mxu0 0
  %2447 = vmatprep.subr.bf16.mxu0 0
  %2448 = vmatpush2.bf16.msra.mxu0 0
  %2449 = vmatprep.subr.bf16.mxu0 0
  %2450 = vmatpush2.bf16.msra.mxu0 0
  %2451 = vmatprep.mubr.bf16.mxu0 0
  %2452 = vmatmul.mubr.bf16.gmra.mxu0 %v2414
  %v2453 = vpop.f32.mrf.mxu0
  %v2454 = vadd.f32 0.0, %v2453
  %v2455 = vpop.f32.mrf.mxu0
  %v2456 = vpop.f32.mrf.mxu0
  %v2457 = vpop.f32.mrf.mxu0
  %2458 = vdwg.mxu0
  %2460 = vrot.lane.b32.xlu0 %v2234, 8
  %v2461 = vpop.permute.xlu0 %2460
  %2464 = vrot.lane.b32.xlu0 %v2344, 16
  %v2465 = vpop.permute.xlu0 %2464
  %2468 = vrot.lane.b32.xlu0 %v2454, 24
  %v2469 = vpop.permute.xlu0 %2468
  %v2471 = vsel %vm290, %v2124, %v2461
  %v2472 = vsel %vm749, %v2471, %v2465
  %v2473 = vsel %vm751, %v2472, %v2469
  %v2474 = vpack.c.bf16 %v2473, %v2019
  %v2479 = vunpack.c.l.b16 %v1466
  %v2480 = vunpack.c.l.b16 %v1467
  %v2481 = vunpack.c.l.b16 %v1468
  %v2482 = vunpack.c.l.b16 %v1469
  %v2483 = vpack.c.b16 %v2480, %v2479
  %v2484 = vpack.c.b16 %v2482, %v2481
  %v2488 = vsel %vm207, %v2474, 0
  %2490 = vmatprep.subr.bf16.mxu0 0
  %2491 = vmatpush1.bf16.msra.mxu0 0
  %2492 = vmatprep.subr.bf16.mxu0 0
  %2493 = vmatpush1.bf16.msra.mxu0 0
  %2494 = vmatprep.subr.bf16.mxu0 0
  %2495 = vmatpush1.bf16.msra.mxu0 0
  %2496 = vmatprep.subr.bf16.mxu0 0
  %2497 = vmatpush1.bf16.msra.mxu0 0
  %2498 = vmatprep.subr.bf16.mxu0 0
  %2499 = vmatpush1.bf16.msra.mxu0 0
  %2500 = vmatprep.subr.bf16.mxu0 0
  %2501 = vmatpush1.bf16.msra.mxu0 0
  %2502 = vmatprep.subr.bf16.mxu0 0
  %2503 = vmatpush1.bf16.msra.mxu0 %v2484
  %2504 = vmatprep.subr.bf16.mxu0 0
  %2505 = vmatpush1.bf16.msra.mxu0 %v2483
  %2506 = vmatprep.subr.bf16.mxu0 0
  %2507 = vmatpush2.bf16.msra.mxu0 0
  %2508 = vmatprep.subr.bf16.mxu0 0
  %2509 = vmatpush2.bf16.msra.mxu0 0
  %2510 = vmatprep.subr.bf16.mxu0 0
  %2511 = vmatpush2.bf16.msra.mxu0 0
  %2512 = vmatprep.subr.bf16.mxu0 0
  %2513 = vmatpush2.bf16.msra.mxu0 0
  %2514 = vmatprep.subr.bf16.mxu0 0
  %2515 = vmatpush2.bf16.msra.mxu0 0
  %2516 = vmatprep.subr.bf16.mxu0 0
  %2517 = vmatpush2.bf16.msra.mxu0 0
  %2518 = vmatprep.subr.bf16.mxu0 0
  %2519 = vmatpush2.bf16.msra.mxu0 0
  %2520 = vmatprep.subr.bf16.mxu0 0
  %2521 = vmatpush2.bf16.msra.mxu0 0
  %2522 = vmatprep.mubr.bf16.mxu0 0
  %2523 = vmatmul.mubr.bf16.gmra.mxu0 %v2488
  %v2524 = vpop.f32.mrf.mxu0
  %v2525 = vadd.f32 0.0, %v2524
  %v2526 = vpop.f32.mrf.mxu0
  %v2527 = vpop.f32.mrf.mxu0
  %v2528 = vadd.f32 0.0, %v2527
  %v2529 = vpop.f32.mrf.mxu0
  %2530 = vdwg.mxu0
  %v2531 = vadd.f32 %v177, %v2525
  %v2532 = vadd.f32 %v180, %v2528
  %v2533 = vmul.f32 %v2531, %v2531
  %v2534 = vmul.f32 %v2532, %v2532
  %v2535 = vsel %vm207, %v2533, 0.0
  %2536 = vadd.xlane.f32.xlu0 %v2535
  %v2537 = vpop.xlane.xlu0 %2536
  %v2538 = vsel %vm207, %v2534, 0.0
  %2539 = vadd.xlane.f32.xlu0 %v2538
  %v2540 = vpop.xlane.xlu0 %2539
  %v2541 = vmul.f32 %v2537, %v214
  %v2542 = vmul.f32 %v2540, %v214
  %v2543 = vadd.f32 %v2541, 1e-06
  %v2544 = vadd.f32 %v2542, 1e-06
  %v2545 = vrsqrt.pop %v2543
  %v2546 = vrsqrt.pop %v2544
  %v2547 = vmul.f32 %v2531, %v2545
  %v2548 = vmul.f32 %v2532, %v2546
  %v2549 = vlaneseq
  %v2550 = vshrl.u32 %v2549, 7
  %v2551 = vsub.s32 0, %v2550
  %v2552 = vrot.slane %v1452, %v2551
  %v2553 = vmul.f32 %v2547, %v2552
  %v2554 = vmul.f32 %v2548, %v2552
  %v2555 = vpack.c.bf16 %v2554, %v2553
  %v2560 = vunpack.c.l.b16 %v1470
  %v2561 = vunpack.c.l.b16 %v1471
  %v2562 = vunpack.c.l.b16 %v1472
  %v2563 = vunpack.c.l.b16 %v1473
  %v2564 = vpack.c.b16 %v2561, %v2560
  %v2565 = vpack.c.b16 %v2563, %v2562
  %v2569 = vsel %vm207, %v2555, 0
  %2571 = vmatprep.subr.bf16.mxu0 0
  %2572 = vmatpush1.bf16.msra.mxu0 0
  %2573 = vmatprep.subr.bf16.mxu0 0
  %2574 = vmatpush1.bf16.msra.mxu0 0
  %2575 = vmatprep.subr.bf16.mxu0 0
  %2576 = vmatpush1.bf16.msra.mxu0 0
  %2577 = vmatprep.subr.bf16.mxu0 0
  %2578 = vmatpush1.bf16.msra.mxu0 0
  %2579 = vmatprep.subr.bf16.mxu0 0
  %2580 = vmatpush1.bf16.msra.mxu0 0
  %2581 = vmatprep.subr.bf16.mxu0 0
  %2582 = vmatpush1.bf16.msra.mxu0 0
  %2583 = vmatprep.subr.bf16.mxu0 0
  %2584 = vmatpush1.bf16.msra.mxu0 %v2565
  %2585 = vmatprep.subr.bf16.mxu0 0
  %2586 = vmatpush1.bf16.msra.mxu0 %v2564
  %2587 = vmatprep.subr.bf16.mxu0 0
  %2588 = vmatpush2.bf16.msra.mxu0 0
  %2589 = vmatprep.subr.bf16.mxu0 0
  %2590 = vmatpush2.bf16.msra.mxu0 0
  %2591 = vmatprep.subr.bf16.mxu0 0
  %2592 = vmatpush2.bf16.msra.mxu0 0
  %2593 = vmatprep.subr.bf16.mxu0 0
  %2594 = vmatpush2.bf16.msra.mxu0 0
  %2595 = vmatprep.subr.bf16.mxu0 0
  %2596 = vmatpush2.bf16.msra.mxu0 0
  %2597 = vmatprep.subr.bf16.mxu0 0
  %2598 = vmatpush2.bf16.msra.mxu0 0
  %2599 = vmatprep.subr.bf16.mxu0 0
  %2600 = vmatpush2.bf16.msra.mxu0 0
  %2601 = vmatprep.subr.bf16.mxu0 0
  %2602 = vmatpush2.bf16.msra.mxu0 0
  %2603 = vmatprep.mubr.bf16.mxu0 0
  %2604 = vmatmul.mubr.bf16.gmra.mxu0 %v2569
  %v2605 = vpop.f32.mrf.mxu0
  %v2606 = vadd.f32 0.0, %v2605
  %v2607 = vpop.f32.mrf.mxu0
  %v2608 = vpop.f32.mrf.mxu0
  %v2609 = vadd.f32 0.0, %v2608
  %v2610 = vpop.f32.mrf.mxu0
  %2611 = vdwg.mxu0
  %v2616 = vunpack.c.l.b16 %v1462
  %v2617 = vunpack.c.l.b16 %v1463
  %v2618 = vunpack.c.l.b16 %v1464
  %v2619 = vunpack.c.l.b16 %v1465
  %v2620 = vpack.c.b16 %v2617, %v2616
  %v2621 = vpack.c.b16 %v2619, %v2618
  %v2625 = vsel %vm207, %v1450, 0
  %2627 = vmatprep.subr.bf16.mxu0 0
  %2628 = vmatpush1.bf16.msra.mxu0 0
  %2629 = vmatprep.subr.bf16.mxu0 0
  %2630 = vmatpush1.bf16.msra.mxu0 0
  %2631 = vmatprep.subr.bf16.mxu0 0
  %2632 = vmatpush1.bf16.msra.mxu0 0
  %2633 = vmatprep.subr.bf16.mxu0 0
  %2634 = vmatpush1.bf16.msra.mxu0 0
  %2635 = vmatprep.subr.bf16.mxu0 0
  %2636 = vmatpush1.bf16.msra.mxu0 0
  %2637 = vmatprep.subr.bf16.mxu0 0
  %2638 = vmatpush1.bf16.msra.mxu0 0
  %2639 = vmatprep.subr.bf16.mxu0 0
  %2640 = vmatpush1.bf16.msra.mxu0 %v2621
  %2641 = vmatprep.subr.bf16.mxu0 0
  %2642 = vmatpush1.bf16.msra.mxu0 %v2620
  %2643 = vmatprep.subr.bf16.mxu0 0
  %2644 = vmatpush2.bf16.msra.mxu0 0
  %2645 = vmatprep.subr.bf16.mxu0 0
  %2646 = vmatpush2.bf16.msra.mxu0 0
  %2647 = vmatprep.subr.bf16.mxu0 0
  %2648 = vmatpush2.bf16.msra.mxu0 0
  %2649 = vmatprep.subr.bf16.mxu0 0
  %2650 = vmatpush2.bf16.msra.mxu0 0
  %2651 = vmatprep.subr.bf16.mxu0 0
  %2652 = vmatpush2.bf16.msra.mxu0 0
  %2653 = vmatprep.subr.bf16.mxu0 0
  %2654 = vmatpush2.bf16.msra.mxu0 0
  %2655 = vmatprep.subr.bf16.mxu0 0
  %2656 = vmatpush2.bf16.msra.mxu0 0
  %2657 = vmatprep.subr.bf16.mxu0 0
  %2658 = vmatpush2.bf16.msra.mxu0 0
  %2659 = vmatprep.mubr.bf16.mxu0 0
  %2660 = vmatmul.mubr.bf16.gmra.mxu0 %v2625
  %v2661 = vpop.f32.mrf.mxu0
  %v2662 = vadd.f32 0.0, %v2661
  %v2663 = vpop.f32.mrf.mxu0
  %v2664 = vpop.f32.mrf.mxu0
  %v2665 = vadd.f32 0.0, %v2664
  %v2666 = vpop.f32.mrf.mxu0
  %2667 = vdwg.mxu0
  %v2668 = vpack.c.bf16 %v2609, %v2606
  %v2669 = vpack.c.bf16 %v2665, %v2662
  %v2671 = vsel %vm290, %v2668, 0
  %v2674 = vsel %vm290, %v2669, 0
  %2676 = vmatprep.subr.bf16.mxu0 0
  %2677 = vmatpush1.bf16.xpose.msra.mxu0 0
  %2678 = vmatprep.subr.bf16.mxu0 0
  %2679 = vmatpush1.bf16.xpose.msra.mxu0 0
  %2680 = vmatprep.subr.bf16.mxu0 0
  %2681 = vmatpush1.bf16.xpose.msra.mxu0 0
  %2682 = vmatprep.subr.bf16.mxu0 0
  %2683 = vmatpush1.bf16.xpose.msra.mxu0 0
  %2684 = vmatprep.subr.bf16.mxu0 0
  %2685 = vmatpush1.bf16.xpose.msra.mxu0 0
  %2686 = vmatprep.subr.bf16.mxu0 0
  %2687 = vmatpush1.bf16.xpose.msra.mxu0 0
  %2688 = vmatprep.subr.bf16.mxu0 0
  %2689 = vmatpush1.bf16.xpose.msra.mxu0 0
  %2690 = vmatprep.subr.bf16.mxu0 0
  %2691 = vmatpush1.bf16.xpose.msra.mxu0 %v2674
  %2692 = vmatprep.subr.bf16.mxu0 0
  %2693 = vmatpush2.bf16.xpose.msra.mxu0 0
  %2694 = vmatprep.subr.bf16.mxu0 0
  %2695 = vmatpush2.bf16.xpose.msra.mxu0 0
  %2696 = vmatprep.subr.bf16.mxu0 0
  %2697 = vmatpush2.bf16.xpose.msra.mxu0 0
  %2698 = vmatprep.subr.bf16.mxu0 0
  %2699 = vmatpush2.bf16.xpose.msra.mxu0 0
  %2700 = vmatprep.subr.bf16.mxu0 0
  %2701 = vmatpush2.bf16.xpose.msra.mxu0 0
  %2702 = vmatprep.subr.bf16.mxu0 0
  %2703 = vmatpush2.bf16.xpose.msra.mxu0 0
  %2704 = vmatprep.subr.bf16.mxu0 0
  %2705 = vmatpush2.bf16.xpose.msra.mxu0 0
  %2706 = vmatprep.subr.bf16.mxu0 0
  %2707 = vmatpush2.bf16.xpose.msra.mxu0 0
  %2708 = vmatprep.mubr.bf16.mxu0 0
  %2709 = vmatmul.mubr.bf16.gmra.mxu0 %v2671
  %v2710 = vpop.f32.mrf.mxu0
  %v2711 = vadd.f32 %v340, %v2710
  %v2712 = vpop.f32.mrf.mxu0
  %v2713 = vpop.f32.mrf.mxu0
  %v2714 = vpop.f32.mrf.mxu0
  %2715 = vdwg.mxu0
  %v2716 = vsel %vm290, %v2711, -inf
  %2717 = vmax.xlane.f32.xlu0 %v2716
  %v2718 = vpop.xlane.xlu0 %2717
  %v2719 = vsub.f32 %v2711, %v2718
  %v2720 = vmul.f32 %v2719, 1.442695
  %v2721 = vpow.pop %v2720
  %v2722 = vsel %vm290, %v2721, 0.0
  %2723 = vadd.xlane.f32.xlu0 %v2722
  %v2724 = vpop.xlane.xlu0 %2723
  %v2725 = vrcp.pop %v2724
  %v2726 = vmul.f32 %v2721, %v2725
  %v2727 = vpack.c.bf16 %v2726, %v2726
  %2729 = vrot.lane.b32.xlu0 %v2669, 96
  %v2730 = vpop.permute.xlu0 %2729
  %v2732 = vsel %vm290, %v2727, 0
  %v2735 = vsel %vm359, %v2730, 0
  %2737 = vmatprep.subr.bf16.mxu0 0
  %2738 = vmatpush1.bf16.msra.mxu0 0
  %2739 = vmatprep.subr.bf16.mxu0 0
  %2740 = vmatpush1.bf16.msra.mxu0 0
  %2741 = vmatprep.subr.bf16.mxu0 0
  %2742 = vmatpush1.bf16.msra.mxu0 0
  %2743 = vmatprep.subr.bf16.mxu0 0
  %2744 = vmatpush1.bf16.msra.mxu0 0
  %2745 = vmatprep.subr.bf16.mxu0 0
  %2746 = vmatpush1.bf16.msra.mxu0 0
  %2747 = vmatprep.subr.bf16.mxu0 0
  %2748 = vmatpush1.bf16.msra.mxu0 0
  %2749 = vmatprep.subr.bf16.mxu0 0
  %2750 = vmatpush1.bf16.msra.mxu0 0
  %2751 = vmatprep.subr.bf16.mxu0 0
  %2752 = vmatpush1.bf16.msra.mxu0 %v2735
  %2753 = vmatprep.subr.bf16.mxu0 0
  %2754 = vmatpush2.bf16.msra.mxu0 0
  %2755 = vmatprep.subr.bf16.mxu0 0
  %2756 = vmatpush2.bf16.msra.mxu0 0
  %2757 = vmatprep.subr.bf16.mxu0 0
  %2758 = vmatpush2.bf16.msra.mxu0 0
  %2759 = vmatprep.subr.bf16.mxu0 0
  %2760 = vmatpush2.bf16.msra.mxu0 0
  %2761 = vmatprep.subr.bf16.mxu0 0
  %2762 = vmatpush2.bf16.msra.mxu0 0
  %2763 = vmatprep.subr.bf16.mxu0 0
  %2764 = vmatpush2.bf16.msra.mxu0 0
  %2765 = vmatprep.subr.bf16.mxu0 0
  %2766 = vmatpush2.bf16.msra.mxu0 0
  %2767 = vmatprep.subr.bf16.mxu0 0
  %2768 = vmatpush2.bf16.msra.mxu0 0
  %2769 = vmatprep.mubr.bf16.mxu0 0
  %2770 = vmatmul.mubr.bf16.gmra.mxu0 %v2732
  %v2771 = vpop.f32.mrf.mxu0
  %v2772 = vadd.f32 0.0, %v2771
  %v2773 = vpop.f32.mrf.mxu0
  %v2774 = vpop.f32.mrf.mxu0
  %v2775 = vpop.f32.mrf.mxu0
  %2776 = vdwg.mxu0
  %2778 = vrot.lane.b32.xlu0 %v2668, 120
  %v2779 = vpop.permute.xlu0 %2778
  %2780 = vrot.lane.b32.xlu0 %v2669, 120
  %v2781 = vpop.permute.xlu0 %2780
  %v2783 = vsel %vm290, %v2779, 0
  %v2786 = vsel %vm290, %v2781, 0
  %2788 = vmatprep.subr.bf16.mxu0 0
  %2789 = vmatpush1.bf16.xpose.msra.mxu0 0
  %2790 = vmatprep.subr.bf16.mxu0 0
  %2791 = vmatpush1.bf16.xpose.msra.mxu0 0
  %2792 = vmatprep.subr.bf16.mxu0 0
  %2793 = vmatpush1.bf16.xpose.msra.mxu0 0
  %2794 = vmatprep.subr.bf16.mxu0 0
  %2795 = vmatpush1.bf16.xpose.msra.mxu0 0
  %2796 = vmatprep.subr.bf16.mxu0 0
  %2797 = vmatpush1.bf16.xpose.msra.mxu0 0
  %2798 = vmatprep.subr.bf16.mxu0 0
  %2799 = vmatpush1.bf16.xpose.msra.mxu0 0
  %2800 = vmatprep.subr.bf16.mxu0 0
  %2801 = vmatpush1.bf16.xpose.msra.mxu0 0
  %2802 = vmatprep.subr.bf16.mxu0 0
  %2803 = vmatpush1.bf16.xpose.msra.mxu0 %v2786
  %2804 = vmatprep.subr.bf16.mxu0 0
  %2805 = vmatpush2.bf16.xpose.msra.mxu0 0
  %2806 = vmatprep.subr.bf16.mxu0 0
  %2807 = vmatpush2.bf16.xpose.msra.mxu0 0
  %2808 = vmatprep.subr.bf16.mxu0 0
  %2809 = vmatpush2.bf16.xpose.msra.mxu0 0
  %2810 = vmatprep.subr.bf16.mxu0 0
  %2811 = vmatpush2.bf16.xpose.msra.mxu0 0
  %2812 = vmatprep.subr.bf16.mxu0 0
  %2813 = vmatpush2.bf16.xpose.msra.mxu0 0
  %2814 = vmatprep.subr.bf16.mxu0 0
  %2815 = vmatpush2.bf16.xpose.msra.mxu0 0
  %2816 = vmatprep.subr.bf16.mxu0 0
  %2817 = vmatpush2.bf16.xpose.msra.mxu0 0
  %2818 = vmatprep.subr.bf16.mxu0 0
  %2819 = vmatpush2.bf16.xpose.msra.mxu0 0
  %2820 = vmatprep.mubr.bf16.mxu0 0
  %2821 = vmatmul.mubr.bf16.gmra.mxu0 %v2783
  %v2822 = vpop.f32.mrf.mxu0
  %v2823 = vadd.f32 %v340, %v2822
  %v2824 = vpop.f32.mrf.mxu0
  %v2825 = vpop.f32.mrf.mxu0
  %v2826 = vpop.f32.mrf.mxu0
  %2827 = vdwg.mxu0
  %v2828 = vsel %vm290, %v2823, -inf
  %2829 = vmax.xlane.f32.xlu0 %v2828
  %v2830 = vpop.xlane.xlu0 %2829
  %v2831 = vsub.f32 %v2823, %v2830
  %v2832 = vmul.f32 %v2831, 1.442695
  %v2833 = vpow.pop %v2832
  %v2834 = vsel %vm290, %v2833, 0.0
  %2835 = vadd.xlane.f32.xlu0 %v2834
  %v2836 = vpop.xlane.xlu0 %2835
  %v2837 = vrcp.pop %v2836
  %v2838 = vmul.f32 %v2833, %v2837
  %v2839 = vpack.c.bf16 %v2838, %v2838
  %2840 = vrot.lane.b32.xlu0 %v2669, 88
  %v2841 = vpop.permute.xlu0 %2840
  %v2843 = vsel %vm290, %v2839, 0
  %v2846 = vsel %vm359, %v2841, 0
  %2848 = vmatprep.subr.bf16.mxu0 0
  %2849 = vmatpush1.bf16.msra.mxu0 0
  %2850 = vmatprep.subr.bf16.mxu0 0
  %2851 = vmatpush1.bf16.msra.mxu0 0
  %2852 = vmatprep.subr.bf16.mxu0 0
  %2853 = vmatpush1.bf16.msra.mxu0 0
  %2854 = vmatprep.subr.bf16.mxu0 0
  %2855 = vmatpush1.bf16.msra.mxu0 0
  %2856 = vmatprep.subr.bf16.mxu0 0
  %2857 = vmatpush1.bf16.msra.mxu0 0
  %2858 = vmatprep.subr.bf16.mxu0 0
  %2859 = vmatpush1.bf16.msra.mxu0 0
  %2860 = vmatprep.subr.bf16.mxu0 0
  %2861 = vmatpush1.bf16.msra.mxu0 0
  %2862 = vmatprep.subr.bf16.mxu0 0
  %2863 = vmatpush1.bf16.msra.mxu0 %v2846
  %2864 = vmatprep.subr.bf16.mxu0 0
  %2865 = vmatpush2.bf16.msra.mxu0 0
  %2866 = vmatprep.subr.bf16.mxu0 0
  %2867 = vmatpush2.bf16.msra.mxu0 0
  %2868 = vmatprep.subr.bf16.mxu0 0
  %2869 = vmatpush2.bf16.msra.mxu0 0
  %2870 = vmatprep.subr.bf16.mxu0 0
  %2871 = vmatpush2.bf16.msra.mxu0 0
  %2872 = vmatprep.subr.bf16.mxu0 0
  %2873 = vmatpush2.bf16.msra.mxu0 0
  %2874 = vmatprep.subr.bf16.mxu0 0
  %2875 = vmatpush2.bf16.msra.mxu0 0
  %2876 = vmatprep.subr.bf16.mxu0 0
  %2877 = vmatpush2.bf16.msra.mxu0 0
  %2878 = vmatprep.subr.bf16.mxu0 0
  %2879 = vmatpush2.bf16.msra.mxu0 0
  %2880 = vmatprep.mubr.bf16.mxu0 0
  %2881 = vmatmul.mubr.bf16.gmra.mxu0 %v2843
  %v2882 = vpop.f32.mrf.mxu0
  %v2883 = vadd.f32 0.0, %v2882
  %v2884 = vpop.f32.mrf.mxu0
  %v2885 = vpop.f32.mrf.mxu0
  %v2886 = vpop.f32.mrf.mxu0
  %2887 = vdwg.mxu0
  %2888 = vrot.lane.b32.xlu0 %v2668, 112
  %v2889 = vpop.permute.xlu0 %2888
  %2890 = vrot.lane.b32.xlu0 %v2669, 112
  %v2891 = vpop.permute.xlu0 %2890
  %v2893 = vsel %vm290, %v2889, 0
  %v2896 = vsel %vm290, %v2891, 0
  %2898 = vmatprep.subr.bf16.mxu0 0
  %2899 = vmatpush1.bf16.xpose.msra.mxu0 0
  %2900 = vmatprep.subr.bf16.mxu0 0
  %2901 = vmatpush1.bf16.xpose.msra.mxu0 0
  %2902 = vmatprep.subr.bf16.mxu0 0
  %2903 = vmatpush1.bf16.xpose.msra.mxu0 0
  %2904 = vmatprep.subr.bf16.mxu0 0
  %2905 = vmatpush1.bf16.xpose.msra.mxu0 0
  %2906 = vmatprep.subr.bf16.mxu0 0
  %2907 = vmatpush1.bf16.xpose.msra.mxu0 0
  %2908 = vmatprep.subr.bf16.mxu0 0
  %2909 = vmatpush1.bf16.xpose.msra.mxu0 0
  %2910 = vmatprep.subr.bf16.mxu0 0
  %2911 = vmatpush1.bf16.xpose.msra.mxu0 0
  %2912 = vmatprep.subr.bf16.mxu0 0
  %2913 = vmatpush1.bf16.xpose.msra.mxu0 %v2896
  %2914 = vmatprep.subr.bf16.mxu0 0
  %2915 = vmatpush2.bf16.xpose.msra.mxu0 0
  %2916 = vmatprep.subr.bf16.mxu0 0
  %2917 = vmatpush2.bf16.xpose.msra.mxu0 0
  %2918 = vmatprep.subr.bf16.mxu0 0
  %2919 = vmatpush2.bf16.xpose.msra.mxu0 0
  %2920 = vmatprep.subr.bf16.mxu0 0
  %2921 = vmatpush2.bf16.xpose.msra.mxu0 0
  %2922 = vmatprep.subr.bf16.mxu0 0
  %2923 = vmatpush2.bf16.xpose.msra.mxu0 0
  %2924 = vmatprep.subr.bf16.mxu0 0
  %2925 = vmatpush2.bf16.xpose.msra.mxu0 0
  %2926 = vmatprep.subr.bf16.mxu0 0
  %2927 = vmatpush2.bf16.xpose.msra.mxu0 0
  %2928 = vmatprep.subr.bf16.mxu0 0
  %2929 = vmatpush2.bf16.xpose.msra.mxu0 0
  %2930 = vmatprep.mubr.bf16.mxu0 0
  %2931 = vmatmul.mubr.bf16.gmra.mxu0 %v2893
  %v2932 = vpop.f32.mrf.mxu0
  %v2933 = vadd.f32 %v340, %v2932
  %v2934 = vpop.f32.mrf.mxu0
  %v2935 = vpop.f32.mrf.mxu0
  %v2936 = vpop.f32.mrf.mxu0
  %2937 = vdwg.mxu0
  %v2938 = vsel %vm290, %v2933, -inf
  %2939 = vmax.xlane.f32.xlu0 %v2938
  %v2940 = vpop.xlane.xlu0 %2939
  %v2941 = vsub.f32 %v2933, %v2940
  %v2942 = vmul.f32 %v2941, 1.442695
  %v2943 = vpow.pop %v2942
  %v2944 = vsel %vm290, %v2943, 0.0
  %2945 = vadd.xlane.f32.xlu0 %v2944
  %v2946 = vpop.xlane.xlu0 %2945
  %v2947 = vrcp.pop %v2946
  %v2948 = vmul.f32 %v2943, %v2947
  %v2949 = vpack.c.bf16 %v2948, %v2948
  %2950 = vrot.lane.b32.xlu0 %v2669, 80
  %v2951 = vpop.permute.xlu0 %2950
  %v2953 = vsel %vm290, %v2949, 0
  %v2956 = vsel %vm359, %v2951, 0
  %2958 = vmatprep.subr.bf16.mxu0 0
  %2959 = vmatpush1.bf16.msra.mxu0 0
  %2960 = vmatprep.subr.bf16.mxu0 0
  %2961 = vmatpush1.bf16.msra.mxu0 0
  %2962 = vmatprep.subr.bf16.mxu0 0
  %2963 = vmatpush1.bf16.msra.mxu0 0
  %2964 = vmatprep.subr.bf16.mxu0 0
  %2965 = vmatpush1.bf16.msra.mxu0 0
  %2966 = vmatprep.subr.bf16.mxu0 0
  %2967 = vmatpush1.bf16.msra.mxu0 0
  %2968 = vmatprep.subr.bf16.mxu0 0
  %2969 = vmatpush1.bf16.msra.mxu0 0
  %2970 = vmatprep.subr.bf16.mxu0 0
  %2971 = vmatpush1.bf16.msra.mxu0 0
  %2972 = vmatprep.subr.bf16.mxu0 0
  %2973 = vmatpush1.bf16.msra.mxu0 %v2956
  %2974 = vmatprep.subr.bf16.mxu0 0
  %2975 = vmatpush2.bf16.msra.mxu0 0
  %2976 = vmatprep.subr.bf16.mxu0 0
  %2977 = vmatpush2.bf16.msra.mxu0 0
  %2978 = vmatprep.subr.bf16.mxu0 0
  %2979 = vmatpush2.bf16.msra.mxu0 0
  %2980 = vmatprep.subr.bf16.mxu0 0
  %2981 = vmatpush2.bf16.msra.mxu0 0
  %2982 = vmatprep.subr.bf16.mxu0 0
  %2983 = vmatpush2.bf16.msra.mxu0 0
  %2984 = vmatprep.subr.bf16.mxu0 0
  %2985 = vmatpush2.bf16.msra.mxu0 0
  %2986 = vmatprep.subr.bf16.mxu0 0
  %2987 = vmatpush2.bf16.msra.mxu0 0
  %2988 = vmatprep.subr.bf16.mxu0 0
  %2989 = vmatpush2.bf16.msra.mxu0 0
  %2990 = vmatprep.mubr.bf16.mxu0 0
  %2991 = vmatmul.mubr.bf16.gmra.mxu0 %v2953
  %v2992 = vpop.f32.mrf.mxu0
  %v2993 = vadd.f32 0.0, %v2992
  %v2994 = vpop.f32.mrf.mxu0
  %v2995 = vpop.f32.mrf.mxu0
  %v2996 = vpop.f32.mrf.mxu0
  %2997 = vdwg.mxu0
  %2998 = vrot.lane.b32.xlu0 %v2668, 104
  %v2999 = vpop.permute.xlu0 %2998
  %3000 = vrot.lane.b32.xlu0 %v2669, 104
  %v3001 = vpop.permute.xlu0 %3000
  %v3003 = vsel %vm290, %v2999, 0
  %v3006 = vsel %vm290, %v3001, 0
  %3008 = vmatprep.subr.bf16.mxu0 0
  %3009 = vmatpush1.bf16.xpose.msra.mxu0 0
  %3010 = vmatprep.subr.bf16.mxu0 0
  %3011 = vmatpush1.bf16.xpose.msra.mxu0 0
  %3012 = vmatprep.subr.bf16.mxu0 0
  %3013 = vmatpush1.bf16.xpose.msra.mxu0 0
  %3014 = vmatprep.subr.bf16.mxu0 0
  %3015 = vmatpush1.bf16.xpose.msra.mxu0 0
  %3016 = vmatprep.subr.bf16.mxu0 0
  %3017 = vmatpush1.bf16.xpose.msra.mxu0 0
  %3018 = vmatprep.subr.bf16.mxu0 0
  %3019 = vmatpush1.bf16.xpose.msra.mxu0 0
  %3020 = vmatprep.subr.bf16.mxu0 0
  %3021 = vmatpush1.bf16.xpose.msra.mxu0 0
  %3022 = vmatprep.subr.bf16.mxu0 0
  %3023 = vmatpush1.bf16.xpose.msra.mxu0 %v3006
  %3024 = vmatprep.subr.bf16.mxu0 0
  %3025 = vmatpush2.bf16.xpose.msra.mxu0 0
  %3026 = vmatprep.subr.bf16.mxu0 0
  %3027 = vmatpush2.bf16.xpose.msra.mxu0 0
  %3028 = vmatprep.subr.bf16.mxu0 0
  %3029 = vmatpush2.bf16.xpose.msra.mxu0 0
  %3030 = vmatprep.subr.bf16.mxu0 0
  %3031 = vmatpush2.bf16.xpose.msra.mxu0 0
  %3032 = vmatprep.subr.bf16.mxu0 0
  %3033 = vmatpush2.bf16.xpose.msra.mxu0 0
  %3034 = vmatprep.subr.bf16.mxu0 0
  %3035 = vmatpush2.bf16.xpose.msra.mxu0 0
  %3036 = vmatprep.subr.bf16.mxu0 0
  %3037 = vmatpush2.bf16.xpose.msra.mxu0 0
  %3038 = vmatprep.subr.bf16.mxu0 0
  %3039 = vmatpush2.bf16.xpose.msra.mxu0 0
  %3040 = vmatprep.mubr.bf16.mxu0 0
  %3041 = vmatmul.mubr.bf16.gmra.mxu0 %v3003
  %v3042 = vpop.f32.mrf.mxu0
  %v3043 = vadd.f32 %v340, %v3042
  %v3044 = vpop.f32.mrf.mxu0
  %v3045 = vpop.f32.mrf.mxu0
  %v3046 = vpop.f32.mrf.mxu0
  %3047 = vdwg.mxu0
  %v3048 = vsel %vm290, %v3043, -inf
  %3049 = vmax.xlane.f32.xlu0 %v3048
  %v3050 = vpop.xlane.xlu0 %3049
  %v3051 = vsub.f32 %v3043, %v3050
  %v3052 = vmul.f32 %v3051, 1.442695
  %v3053 = vpow.pop %v3052
  %v3054 = vsel %vm290, %v3053, 0.0
  %3055 = vadd.xlane.f32.xlu0 %v3054
  %v3056 = vpop.xlane.xlu0 %3055
  %v3057 = vrcp.pop %v3056
  %v3058 = vmul.f32 %v3053, %v3057
  %v3059 = vpack.c.bf16 %v3058, %v3058
  %3060 = vrot.lane.b32.xlu0 %v2669, 72
  %v3061 = vpop.permute.xlu0 %3060
  %v3063 = vsel %vm290, %v3059, 0
  %v3066 = vsel %vm359, %v3061, 0
  %3068 = vmatprep.subr.bf16.mxu0 0
  %3069 = vmatpush1.bf16.msra.mxu0 0
  %3070 = vmatprep.subr.bf16.mxu0 0
  %3071 = vmatpush1.bf16.msra.mxu0 0
  %3072 = vmatprep.subr.bf16.mxu0 0
  %3073 = vmatpush1.bf16.msra.mxu0 0
  %3074 = vmatprep.subr.bf16.mxu0 0
  %3075 = vmatpush1.bf16.msra.mxu0 0
  %3076 = vmatprep.subr.bf16.mxu0 0
  %3077 = vmatpush1.bf16.msra.mxu0 0
  %3078 = vmatprep.subr.bf16.mxu0 0
  %3079 = vmatpush1.bf16.msra.mxu0 0
  %3080 = vmatprep.subr.bf16.mxu0 0
  %3081 = vmatpush1.bf16.msra.mxu0 0
  %3082 = vmatprep.subr.bf16.mxu0 0
  %3083 = vmatpush1.bf16.msra.mxu0 %v3066
  %3084 = vmatprep.subr.bf16.mxu0 0
  %3085 = vmatpush2.bf16.msra.mxu0 0
  %3086 = vmatprep.subr.bf16.mxu0 0
  %3087 = vmatpush2.bf16.msra.mxu0 0
  %3088 = vmatprep.subr.bf16.mxu0 0
  %3089 = vmatpush2.bf16.msra.mxu0 0
  %3090 = vmatprep.subr.bf16.mxu0 0
  %3091 = vmatpush2.bf16.msra.mxu0 0
  %3092 = vmatprep.subr.bf16.mxu0 0
  %3093 = vmatpush2.bf16.msra.mxu0 0
  %3094 = vmatprep.subr.bf16.mxu0 0
  %3095 = vmatpush2.bf16.msra.mxu0 0
  %3096 = vmatprep.subr.bf16.mxu0 0
  %3097 = vmatpush2.bf16.msra.mxu0 0
  %3098 = vmatprep.subr.bf16.mxu0 0
  %3099 = vmatpush2.bf16.msra.mxu0 0
  %3100 = vmatprep.mubr.bf16.mxu0 0
  %3101 = vmatmul.mubr.bf16.gmra.mxu0 %v3063
  %v3102 = vpop.f32.mrf.mxu0
  %v3103 = vadd.f32 0.0, %v3102
  %v3104 = vpop.f32.mrf.mxu0
  %v3105 = vpop.f32.mrf.mxu0
  %v3106 = vpop.f32.mrf.mxu0
  %3107 = vdwg.mxu0
  %3109 = vrot.lane.b32.xlu0 %v2883, 8
  %v3110 = vpop.permute.xlu0 %3109
  %3113 = vrot.lane.b32.xlu0 %v2993, 16
  %v3114 = vpop.permute.xlu0 %3113
  %3117 = vrot.lane.b32.xlu0 %v3103, 24
  %v3118 = vpop.permute.xlu0 %3117
  %v3120 = vsel %vm290, %v2772, %v3110
  %v3121 = vsel %vm749, %v3120, %v3114
  %v3122 = vsel %vm751, %v3121, %v3118
  %v3123 = vrot.slane %v2668, 4
  %v3124 = vrot.slane %v2669, 4
  %v3126 = vsel %vm290, %v3123, 0
  %v3129 = vsel %vm290, %v3124, 0
  %3131 = vmatprep.subr.bf16.mxu0 0
  %3132 = vmatpush1.bf16.xpose.msra.mxu0 0
  %3133 = vmatprep.subr.bf16.mxu0 0
  %3134 = vmatpush1.bf16.xpose.msra.mxu0 0
  %3135 = vmatprep.subr.bf16.mxu0 0
  %3136 = vmatpush1.bf16.xpose.msra.mxu0 0
  %3137 = vmatprep.subr.bf16.mxu0 0
  %3138 = vmatpush1.bf16.xpose.msra.mxu0 0
  %3139 = vmatprep.subr.bf16.mxu0 0
  %3140 = vmatpush1.bf16.xpose.msra.mxu0 0
  %3141 = vmatprep.subr.bf16.mxu0 0
  %3142 = vmatpush1.bf16.xpose.msra.mxu0 0
  %3143 = vmatprep.subr.bf16.mxu0 0
  %3144 = vmatpush1.bf16.xpose.msra.mxu0 0
  %3145 = vmatprep.subr.bf16.mxu0 0
  %3146 = vmatpush1.bf16.xpose.msra.mxu0 %v3129
  %3147 = vmatprep.subr.bf16.mxu0 0
  %3148 = vmatpush2.bf16.xpose.msra.mxu0 0
  %3149 = vmatprep.subr.bf16.mxu0 0
  %3150 = vmatpush2.bf16.xpose.msra.mxu0 0
  %3151 = vmatprep.subr.bf16.mxu0 0
  %3152 = vmatpush2.bf16.xpose.msra.mxu0 0
  %3153 = vmatprep.subr.bf16.mxu0 0
  %3154 = vmatpush2.bf16.xpose.msra.mxu0 0
  %3155 = vmatprep.subr.bf16.mxu0 0
  %3156 = vmatpush2.bf16.xpose.msra.mxu0 0
  %3157 = vmatprep.subr.bf16.mxu0 0
  %3158 = vmatpush2.bf16.xpose.msra.mxu0 0
  %3159 = vmatprep.subr.bf16.mxu0 0
  %3160 = vmatpush2.bf16.xpose.msra.mxu0 0
  %3161 = vmatprep.subr.bf16.mxu0 0
  %3162 = vmatpush2.bf16.xpose.msra.mxu0 0
  %3163 = vmatprep.mubr.bf16.mxu0 0
  %3164 = vmatmul.mubr.bf16.gmra.mxu0 %v3126
  %v3165 = vpop.f32.mrf.mxu0
  %v3166 = vadd.f32 %v805, %v3165
  %v3167 = vpop.f32.mrf.mxu0
  %v3168 = vpop.f32.mrf.mxu0
  %v3169 = vpop.f32.mrf.mxu0
  %3170 = vdwg.mxu0
  %v3171 = vsel %vm290, %v3166, -inf
  %3172 = vmax.xlane.f32.xlu0 %v3171
  %v3173 = vpop.xlane.xlu0 %3172
  %v3174 = vsub.f32 %v3166, %v3173
  %v3175 = vmul.f32 %v3174, 1.442695
  %v3176 = vpow.pop %v3175
  %v3177 = vsel %vm290, %v3176, 0.0
  %3178 = vadd.xlane.f32.xlu0 %v3177
  %v3179 = vpop.xlane.xlu0 %3178
  %v3180 = vrcp.pop %v3179
  %v3181 = vmul.f32 %v3176, %v3180
  %v3182 = vpack.c.bf16 %v3181, %v3181
  %3183 = vrot.lane.b32.xlu0 %v3124, 96
  %v3184 = vpop.permute.xlu0 %3183
  %v3186 = vsel %vm290, %v3182, 0
  %v3189 = vsel %vm359, %v3184, 0
  %3191 = vmatprep.subr.bf16.mxu0 0
  %3192 = vmatpush1.bf16.msra.mxu0 0
  %3193 = vmatprep.subr.bf16.mxu0 0
  %3194 = vmatpush1.bf16.msra.mxu0 0
  %3195 = vmatprep.subr.bf16.mxu0 0
  %3196 = vmatpush1.bf16.msra.mxu0 0
  %3197 = vmatprep.subr.bf16.mxu0 0
  %3198 = vmatpush1.bf16.msra.mxu0 0
  %3199 = vmatprep.subr.bf16.mxu0 0
  %3200 = vmatpush1.bf16.msra.mxu0 0
  %3201 = vmatprep.subr.bf16.mxu0 0
  %3202 = vmatpush1.bf16.msra.mxu0 0
  %3203 = vmatprep.subr.bf16.mxu0 0
  %3204 = vmatpush1.bf16.msra.mxu0 0
  %3205 = vmatprep.subr.bf16.mxu0 0
  %3206 = vmatpush1.bf16.msra.mxu0 %v3189
  %3207 = vmatprep.subr.bf16.mxu0 0
  %3208 = vmatpush2.bf16.msra.mxu0 0
  %3209 = vmatprep.subr.bf16.mxu0 0
  %3210 = vmatpush2.bf16.msra.mxu0 0
  %3211 = vmatprep.subr.bf16.mxu0 0
  %3212 = vmatpush2.bf16.msra.mxu0 0
  %3213 = vmatprep.subr.bf16.mxu0 0
  %3214 = vmatpush2.bf16.msra.mxu0 0
  %3215 = vmatprep.subr.bf16.mxu0 0
  %3216 = vmatpush2.bf16.msra.mxu0 0
  %3217 = vmatprep.subr.bf16.mxu0 0
  %3218 = vmatpush2.bf16.msra.mxu0 0
  %3219 = vmatprep.subr.bf16.mxu0 0
  %3220 = vmatpush2.bf16.msra.mxu0 0
  %3221 = vmatprep.subr.bf16.mxu0 0
  %3222 = vmatpush2.bf16.msra.mxu0 0
  %3223 = vmatprep.mubr.bf16.mxu0 0
  %3224 = vmatmul.mubr.bf16.gmra.mxu0 %v3186
  %v3225 = vpop.f32.mrf.mxu0
  %v3226 = vadd.f32 0.0, %v3225
  %v3227 = vpop.f32.mrf.mxu0
  %v3228 = vpop.f32.mrf.mxu0
  %v3229 = vpop.f32.mrf.mxu0
  %3230 = vdwg.mxu0
  %3231 = vrot.lane.b32.xlu0 %v3123, 120
  %v3232 = vpop.permute.xlu0 %3231
  %3233 = vrot.lane.b32.xlu0 %v3124, 120
  %v3234 = vpop.permute.xlu0 %3233
  %v3236 = vsel %vm290, %v3232, 0
  %v3239 = vsel %vm290, %v3234, 0
  %3241 = vmatprep.subr.bf16.mxu0 0
  %3242 = vmatpush1.bf16.xpose.msra.mxu0 0
  %3243 = vmatprep.subr.bf16.mxu0 0
  %3244 = vmatpush1.bf16.xpose.msra.mxu0 0
  %3245 = vmatprep.subr.bf16.mxu0 0
  %3246 = vmatpush1.bf16.xpose.msra.mxu0 0
  %3247 = vmatprep.subr.bf16.mxu0 0
  %3248 = vmatpush1.bf16.xpose.msra.mxu0 0
  %3249 = vmatprep.subr.bf16.mxu0 0
  %3250 = vmatpush1.bf16.xpose.msra.mxu0 0
  %3251 = vmatprep.subr.bf16.mxu0 0
  %3252 = vmatpush1.bf16.xpose.msra.mxu0 0
  %3253 = vmatprep.subr.bf16.mxu0 0
  %3254 = vmatpush1.bf16.xpose.msra.mxu0 0
  %3255 = vmatprep.subr.bf16.mxu0 0
  %3256 = vmatpush1.bf16.xpose.msra.mxu0 %v3239
  %3257 = vmatprep.subr.bf16.mxu0 0
  %3258 = vmatpush2.bf16.xpose.msra.mxu0 0
  %3259 = vmatprep.subr.bf16.mxu0 0
  %3260 = vmatpush2.bf16.xpose.msra.mxu0 0
  %3261 = vmatprep.subr.bf16.mxu0 0
  %3262 = vmatpush2.bf16.xpose.msra.mxu0 0
  %3263 = vmatprep.subr.bf16.mxu0 0
  %3264 = vmatpush2.bf16.xpose.msra.mxu0 0
  %3265 = vmatprep.subr.bf16.mxu0 0
  %3266 = vmatpush2.bf16.xpose.msra.mxu0 0
  %3267 = vmatprep.subr.bf16.mxu0 0
  %3268 = vmatpush2.bf16.xpose.msra.mxu0 0
  %3269 = vmatprep.subr.bf16.mxu0 0
  %3270 = vmatpush2.bf16.xpose.msra.mxu0 0
  %3271 = vmatprep.subr.bf16.mxu0 0
  %3272 = vmatpush2.bf16.xpose.msra.mxu0 0
  %3273 = vmatprep.mubr.bf16.mxu0 0
  %3274 = vmatmul.mubr.bf16.gmra.mxu0 %v3236
  %v3275 = vpop.f32.mrf.mxu0
  %v3276 = vadd.f32 %v805, %v3275
  %v3277 = vpop.f32.mrf.mxu0
  %v3278 = vpop.f32.mrf.mxu0
  %v3279 = vpop.f32.mrf.mxu0
  %3280 = vdwg.mxu0
  %v3281 = vsel %vm290, %v3276, -inf
  %3282 = vmax.xlane.f32.xlu0 %v3281
  %v3283 = vpop.xlane.xlu0 %3282
  %v3284 = vsub.f32 %v3276, %v3283
  %v3285 = vmul.f32 %v3284, 1.442695
  %v3286 = vpow.pop %v3285
  %v3287 = vsel %vm290, %v3286, 0.0
  %3288 = vadd.xlane.f32.xlu0 %v3287
  %v3289 = vpop.xlane.xlu0 %3288
  %v3290 = vrcp.pop %v3289
  %v3291 = vmul.f32 %v3286, %v3290
  %v3292 = vpack.c.bf16 %v3291, %v3291
  %3293 = vrot.lane.b32.xlu0 %v3124, 88
  %v3294 = vpop.permute.xlu0 %3293
  %v3296 = vsel %vm290, %v3292, 0
  %v3299 = vsel %vm359, %v3294, 0
  %3301 = vmatprep.subr.bf16.mxu0 0
  %3302 = vmatpush1.bf16.msra.mxu0 0
  %3303 = vmatprep.subr.bf16.mxu0 0
  %3304 = vmatpush1.bf16.msra.mxu0 0
  %3305 = vmatprep.subr.bf16.mxu0 0
  %3306 = vmatpush1.bf16.msra.mxu0 0
  %3307 = vmatprep.subr.bf16.mxu0 0
  %3308 = vmatpush1.bf16.msra.mxu0 0
  %3309 = vmatprep.subr.bf16.mxu0 0
  %3310 = vmatpush1.bf16.msra.mxu0 0
  %3311 = vmatprep.subr.bf16.mxu0 0
  %3312 = vmatpush1.bf16.msra.mxu0 0
  %3313 = vmatprep.subr.bf16.mxu0 0
  %3314 = vmatpush1.bf16.msra.mxu0 0
  %3315 = vmatprep.subr.bf16.mxu0 0
  %3316 = vmatpush1.bf16.msra.mxu0 %v3299
  %3317 = vmatprep.subr.bf16.mxu0 0
  %3318 = vmatpush2.bf16.msra.mxu0 0
  %3319 = vmatprep.subr.bf16.mxu0 0
  %3320 = vmatpush2.bf16.msra.mxu0 0
  %3321 = vmatprep.subr.bf16.mxu0 0
  %3322 = vmatpush2.bf16.msra.mxu0 0
  %3323 = vmatprep.subr.bf16.mxu0 0
  %3324 = vmatpush2.bf16.msra.mxu0 0
  %3325 = vmatprep.subr.bf16.mxu0 0
  %3326 = vmatpush2.bf16.msra.mxu0 0
  %3327 = vmatprep.subr.bf16.mxu0 0
  %3328 = vmatpush2.bf16.msra.mxu0 0
  %3329 = vmatprep.subr.bf16.mxu0 0
  %3330 = vmatpush2.bf16.msra.mxu0 0
  %3331 = vmatprep.subr.bf16.mxu0 0
  %3332 = vmatpush2.bf16.msra.mxu0 0
  %3333 = vmatprep.mubr.bf16.mxu0 0
  %3334 = vmatmul.mubr.bf16.gmra.mxu0 %v3296
  %v3335 = vpop.f32.mrf.mxu0
  %v3336 = vadd.f32 0.0, %v3335
  %v3337 = vpop.f32.mrf.mxu0
  %v3338 = vpop.f32.mrf.mxu0
  %v3339 = vpop.f32.mrf.mxu0
  %3340 = vdwg.mxu0
  %3341 = vrot.lane.b32.xlu0 %v3123, 112
  %v3342 = vpop.permute.xlu0 %3341
  %3343 = vrot.lane.b32.xlu0 %v3124, 112
  %v3344 = vpop.permute.xlu0 %3343
  %v3346 = vsel %vm290, %v3342, 0
  %v3349 = vsel %vm290, %v3344, 0
  %3351 = vmatprep.subr.bf16.mxu0 0
  %3352 = vmatpush1.bf16.xpose.msra.mxu0 0
  %3353 = vmatprep.subr.bf16.mxu0 0
  %3354 = vmatpush1.bf16.xpose.msra.mxu0 0
  %3355 = vmatprep.subr.bf16.mxu0 0
  %3356 = vmatpush1.bf16.xpose.msra.mxu0 0
  %3357 = vmatprep.subr.bf16.mxu0 0
  %3358 = vmatpush1.bf16.xpose.msra.mxu0 0
  %3359 = vmatprep.subr.bf16.mxu0 0
  %3360 = vmatpush1.bf16.xpose.msra.mxu0 0
  %3361 = vmatprep.subr.bf16.mxu0 0
  %3362 = vmatpush1.bf16.xpose.msra.mxu0 0
  %3363 = vmatprep.subr.bf16.mxu0 0
  %3364 = vmatpush1.bf16.xpose.msra.mxu0 0
  %3365 = vmatprep.subr.bf16.mxu0 0
  %3366 = vmatpush1.bf16.xpose.msra.mxu0 %v3349
  %3367 = vmatprep.subr.bf16.mxu0 0
  %3368 = vmatpush2.bf16.xpose.msra.mxu0 0
  %3369 = vmatprep.subr.bf16.mxu0 0
  %3370 = vmatpush2.bf16.xpose.msra.mxu0 0
  %3371 = vmatprep.subr.bf16.mxu0 0
  %3372 = vmatpush2.bf16.xpose.msra.mxu0 0
  %3373 = vmatprep.subr.bf16.mxu0 0
  %3374 = vmatpush2.bf16.xpose.msra.mxu0 0
  %3375 = vmatprep.subr.bf16.mxu0 0
  %3376 = vmatpush2.bf16.xpose.msra.mxu0 0
  %3377 = vmatprep.subr.bf16.mxu0 0
  %3378 = vmatpush2.bf16.xpose.msra.mxu0 0
  %3379 = vmatprep.subr.bf16.mxu0 0
  %3380 = vmatpush2.bf16.xpose.msra.mxu0 0
  %3381 = vmatprep.subr.bf16.mxu0 0
  %3382 = vmatpush2.bf16.xpose.msra.mxu0 0
  %3383 = vmatprep.mubr.bf16.mxu0 0
  %3384 = vmatmul.mubr.bf16.gmra.mxu0 %v3346
  %v3385 = vpop.f32.mrf.mxu0
  %v3386 = vadd.f32 %v805, %v3385
  %v3387 = vpop.f32.mrf.mxu0
  %v3388 = vpop.f32.mrf.mxu0
  %v3389 = vpop.f32.mrf.mxu0
  %3390 = vdwg.mxu0
  %v3391 = vsel %vm290, %v3386, -inf
  %3392 = vmax.xlane.f32.xlu0 %v3391
  %v3393 = vpop.xlane.xlu0 %3392
  %v3394 = vsub.f32 %v3386, %v3393
  %v3395 = vmul.f32 %v3394, 1.442695
  %v3396 = vpow.pop %v3395
  %v3397 = vsel %vm290, %v3396, 0.0
  %3398 = vadd.xlane.f32.xlu0 %v3397
  %v3399 = vpop.xlane.xlu0 %3398
  %v3400 = vrcp.pop %v3399
  %v3401 = vmul.f32 %v3396, %v3400
  %v3402 = vpack.c.bf16 %v3401, %v3401
  %3403 = vrot.lane.b32.xlu0 %v3124, 80
  %v3404 = vpop.permute.xlu0 %3403
  %v3406 = vsel %vm290, %v3402, 0
  %v3409 = vsel %vm359, %v3404, 0
  %3411 = vmatprep.subr.bf16.mxu0 0
  %3412 = vmatpush1.bf16.msra.mxu0 0
  %3413 = vmatprep.subr.bf16.mxu0 0
  %3414 = vmatpush1.bf16.msra.mxu0 0
  %3415 = vmatprep.subr.bf16.mxu0 0
  %3416 = vmatpush1.bf16.msra.mxu0 0
  %3417 = vmatprep.subr.bf16.mxu0 0
  %3418 = vmatpush1.bf16.msra.mxu0 0
  %3419 = vmatprep.subr.bf16.mxu0 0
  %3420 = vmatpush1.bf16.msra.mxu0 0
  %3421 = vmatprep.subr.bf16.mxu0 0
  %3422 = vmatpush1.bf16.msra.mxu0 0
  %3423 = vmatprep.subr.bf16.mxu0 0
  %3424 = vmatpush1.bf16.msra.mxu0 0
  %3425 = vmatprep.subr.bf16.mxu0 0
  %3426 = vmatpush1.bf16.msra.mxu0 %v3409
  %3427 = vmatprep.subr.bf16.mxu0 0
  %3428 = vmatpush2.bf16.msra.mxu0 0
  %3429 = vmatprep.subr.bf16.mxu0 0
  %3430 = vmatpush2.bf16.msra.mxu0 0
  %3431 = vmatprep.subr.bf16.mxu0 0
  %3432 = vmatpush2.bf16.msra.mxu0 0
  %3433 = vmatprep.subr.bf16.mxu0 0
  %3434 = vmatpush2.bf16.msra.mxu0 0
  %3435 = vmatprep.subr.bf16.mxu0 0
  %3436 = vmatpush2.bf16.msra.mxu0 0
  %3437 = vmatprep.subr.bf16.mxu0 0
  %3438 = vmatpush2.bf16.msra.mxu0 0
  %3439 = vmatprep.subr.bf16.mxu0 0
  %3440 = vmatpush2.bf16.msra.mxu0 0
  %3441 = vmatprep.subr.bf16.mxu0 0
  %3442 = vmatpush2.bf16.msra.mxu0 0
  %3443 = vmatprep.mubr.bf16.mxu0 0
  %3444 = vmatmul.mubr.bf16.gmra.mxu0 %v3406
  %v3445 = vpop.f32.mrf.mxu0
  %v3446 = vadd.f32 0.0, %v3445
  %v3447 = vpop.f32.mrf.mxu0
  %v3448 = vpop.f32.mrf.mxu0
  %v3449 = vpop.f32.mrf.mxu0
  %3450 = vdwg.mxu0
  %3451 = vrot.lane.b32.xlu0 %v3123, 104
  %v3452 = vpop.permute.xlu0 %3451
  %3453 = vrot.lane.b32.xlu0 %v3124, 104
  %v3454 = vpop.permute.xlu0 %3453
  %v3456 = vsel %vm290, %v3452, 0
  %v3459 = vsel %vm290, %v3454, 0
  %3461 = vmatprep.subr.bf16.mxu0 0
  %3462 = vmatpush1.bf16.xpose.msra.mxu0 0
  %3463 = vmatprep.subr.bf16.mxu0 0
  %3464 = vmatpush1.bf16.xpose.msra.mxu0 0
  %3465 = vmatprep.subr.bf16.mxu0 0
  %3466 = vmatpush1.bf16.xpose.msra.mxu0 0
  %3467 = vmatprep.subr.bf16.mxu0 0
  %3468 = vmatpush1.bf16.xpose.msra.mxu0 0
  %3469 = vmatprep.subr.bf16.mxu0 0
  %3470 = vmatpush1.bf16.xpose.msra.mxu0 0
  %3471 = vmatprep.subr.bf16.mxu0 0
  %3472 = vmatpush1.bf16.xpose.msra.mxu0 0
  %3473 = vmatprep.subr.bf16.mxu0 0
  %3474 = vmatpush1.bf16.xpose.msra.mxu0 0
  %3475 = vmatprep.subr.bf16.mxu0 0
  %3476 = vmatpush1.bf16.xpose.msra.mxu0 %v3459
  %3477 = vmatprep.subr.bf16.mxu0 0
  %3478 = vmatpush2.bf16.xpose.msra.mxu0 0
  %3479 = vmatprep.subr.bf16.mxu0 0
  %3480 = vmatpush2.bf16.xpose.msra.mxu0 0
  %3481 = vmatprep.subr.bf16.mxu0 0
  %3482 = vmatpush2.bf16.xpose.msra.mxu0 0
  %3483 = vmatprep.subr.bf16.mxu0 0
  %3484 = vmatpush2.bf16.xpose.msra.mxu0 0
  %3485 = vmatprep.subr.bf16.mxu0 0
  %3486 = vmatpush2.bf16.xpose.msra.mxu0 0
  %3487 = vmatprep.subr.bf16.mxu0 0
  %3488 = vmatpush2.bf16.xpose.msra.mxu0 0
  %3489 = vmatprep.subr.bf16.mxu0 0
  %3490 = vmatpush2.bf16.xpose.msra.mxu0 0
  %3491 = vmatprep.subr.bf16.mxu0 0
  %3492 = vmatpush2.bf16.xpose.msra.mxu0 0
  %3493 = vmatprep.mubr.bf16.mxu0 0
  %3494 = vmatmul.mubr.bf16.gmra.mxu0 %v3456
  %v3495 = vpop.f32.mrf.mxu0
  %v3496 = vadd.f32 %v805, %v3495
  %v3497 = vpop.f32.mrf.mxu0
  %v3498 = vpop.f32.mrf.mxu0
  %v3499 = vpop.f32.mrf.mxu0
  %3500 = vdwg.mxu0
  %v3501 = vsel %vm290, %v3496, -inf
  %3502 = vmax.xlane.f32.xlu0 %v3501
  %v3503 = vpop.xlane.xlu0 %3502
  %v3504 = vsub.f32 %v3496, %v3503
  %v3505 = vmul.f32 %v3504, 1.442695
  %v3506 = vpow.pop %v3505
  %v3507 = vsel %vm290, %v3506, 0.0
  %3508 = vadd.xlane.f32.xlu0 %v3507
  %v3509 = vpop.xlane.xlu0 %3508
  %v3510 = vrcp.pop %v3509
  %v3511 = vmul.f32 %v3506, %v3510
  %v3512 = vpack.c.bf16 %v3511, %v3511
  %3513 = vrot.lane.b32.xlu0 %v3124, 72
  %v3514 = vpop.permute.xlu0 %3513
  %v3516 = vsel %vm290, %v3512, 0
  %v3519 = vsel %vm359, %v3514, 0
  %3521 = vmatprep.subr.bf16.mxu0 0
  %3522 = vmatpush1.bf16.msra.mxu0 0
  %3523 = vmatprep.subr.bf16.mxu0 0
  %3524 = vmatpush1.bf16.msra.mxu0 0
  %3525 = vmatprep.subr.bf16.mxu0 0
  %3526 = vmatpush1.bf16.msra.mxu0 0
  %3527 = vmatprep.subr.bf16.mxu0 0
  %3528 = vmatpush1.bf16.msra.mxu0 0
  %3529 = vmatprep.subr.bf16.mxu0 0
  %3530 = vmatpush1.bf16.msra.mxu0 0
  %3531 = vmatprep.subr.bf16.mxu0 0
  %3532 = vmatpush1.bf16.msra.mxu0 0
  %3533 = vmatprep.subr.bf16.mxu0 0
  %3534 = vmatpush1.bf16.msra.mxu0 0
  %3535 = vmatprep.subr.bf16.mxu0 0
  %3536 = vmatpush1.bf16.msra.mxu0 %v3519
  %3537 = vmatprep.subr.bf16.mxu0 0
  %3538 = vmatpush2.bf16.msra.mxu0 0
  %3539 = vmatprep.subr.bf16.mxu0 0
  %3540 = vmatpush2.bf16.msra.mxu0 0
  %3541 = vmatprep.subr.bf16.mxu0 0
  %3542 = vmatpush2.bf16.msra.mxu0 0
  %3543 = vmatprep.subr.bf16.mxu0 0
  %3544 = vmatpush2.bf16.msra.mxu0 0
  %3545 = vmatprep.subr.bf16.mxu0 0
  %3546 = vmatpush2.bf16.msra.mxu0 0
  %3547 = vmatprep.subr.bf16.mxu0 0
  %3548 = vmatpush2.bf16.msra.mxu0 0
  %3549 = vmatprep.subr.bf16.mxu0 0
  %3550 = vmatpush2.bf16.msra.mxu0 0
  %3551 = vmatprep.subr.bf16.mxu0 0
  %3552 = vmatpush2.bf16.msra.mxu0 0
  %3553 = vmatprep.mubr.bf16.mxu0 0
  %3554 = vmatmul.mubr.bf16.gmra.mxu0 %v3516
  %v3555 = vpop.f32.mrf.mxu0
  %v3556 = vadd.f32 0.0, %v3555
  %v3557 = vpop.f32.mrf.mxu0
  %v3558 = vpop.f32.mrf.mxu0
  %v3559 = vpop.f32.mrf.mxu0
  %3560 = vdwg.mxu0
  %3562 = vrot.lane.b32.xlu0 %v3336, 8
  %v3563 = vpop.permute.xlu0 %3562
  %3566 = vrot.lane.b32.xlu0 %v3446, 16
  %v3567 = vpop.permute.xlu0 %3566
  %3570 = vrot.lane.b32.xlu0 %v3556, 24
  %v3571 = vpop.permute.xlu0 %3570
  %v3573 = vsel %vm290, %v3226, %v3563
  %v3574 = vsel %vm749, %v3573, %v3567
  %v3575 = vsel %vm751, %v3574, %v3571
  %v3576 = vpack.c.bf16 %v3575, %v3122
  %v3581 = vunpack.c.l.b16 %v1474
  %v3582 = vunpack.c.l.b16 %v1475
  %v3583 = vunpack.c.l.b16 %v1476
  %v3584 = vunpack.c.l.b16 %v1477
  %v3585 = vpack.c.b16 %v3582, %v3581
  %v3586 = vpack.c.b16 %v3584, %v3583
  %v3590 = vsel %vm207, %v3576, 0
  %3592 = vmatprep.subr.bf16.mxu0 0
  %3593 = vmatpush1.bf16.msra.mxu0 0
  %3594 = vmatprep.subr.bf16.mxu0 0
  %3595 = vmatpush1.bf16.msra.mxu0 0
  %3596 = vmatprep.subr.bf16.mxu0 0
  %3597 = vmatpush1.bf16.msra.mxu0 0
  %3598 = vmatprep.subr.bf16.mxu0 0
  %3599 = vmatpush1.bf16.msra.mxu0 0
  %3600 = vmatprep.subr.bf16.mxu0 0
  %3601 = vmatpush1.bf16.msra.mxu0 0
  %3602 = vmatprep.subr.bf16.mxu0 0
  %3603 = vmatpush1.bf16.msra.mxu0 0
  %3604 = vmatprep.subr.bf16.mxu0 0
  %3605 = vmatpush1.bf16.msra.mxu0 %v3586
  %3606 = vmatprep.subr.bf16.mxu0 0
  %3607 = vmatpush1.bf16.msra.mxu0 %v3585
  %3608 = vmatprep.subr.bf16.mxu0 0
  %3609 = vmatpush2.bf16.msra.mxu0 0
  %3610 = vmatprep.subr.bf16.mxu0 0
  %3611 = vmatpush2.bf16.msra.mxu0 0
  %3612 = vmatprep.subr.bf16.mxu0 0
  %3613 = vmatpush2.bf16.msra.mxu0 0
  %3614 = vmatprep.subr.bf16.mxu0 0
  %3615 = vmatpush2.bf16.msra.mxu0 0
  %3616 = vmatprep.subr.bf16.mxu0 0
  %3617 = vmatpush2.bf16.msra.mxu0 0
  %3618 = vmatprep.subr.bf16.mxu0 0
  %3619 = vmatpush2.bf16.msra.mxu0 0
  %3620 = vmatprep.subr.bf16.mxu0 0
  %3621 = vmatpush2.bf16.msra.mxu0 0
  %3622 = vmatprep.subr.bf16.mxu0 0
  %3623 = vmatpush2.bf16.msra.mxu0 0
  %3624 = vmatprep.mubr.bf16.mxu0 0
  %3625 = vmatmul.mubr.bf16.gmra.mxu0 %v3590
  %v3626 = vpop.f32.mrf.mxu0
  %v3627 = vadd.f32 0.0, %v3626
  %v3628 = vpop.f32.mrf.mxu0
  %v3629 = vpop.f32.mrf.mxu0
  %v3630 = vadd.f32 0.0, %v3629
  %v3631 = vpop.f32.mrf.mxu0
  %3632 = vdwg.mxu0
  %v3633 = vadd.f32 %v2531, %v3627
  %v3634 = vadd.f32 %v2532, %v3630
  %v3635 = vmul.f32 %v3633, %v3633
  %v3636 = vmul.f32 %v3634, %v3634
  %v3637 = vsel %vm207, %v3635, 0.0
  %3638 = vadd.xlane.f32.xlu0 %v3637
  %v3639 = vpop.xlane.xlu0 %3638
  %v3640 = vsel %vm207, %v3636, 0.0
  %3641 = vadd.xlane.f32.xlu0 %v3640
  %v3642 = vpop.xlane.xlu0 %3641
  %v3643 = vmul.f32 %v3639, %v214
  %v3644 = vmul.f32 %v3642, %v214
  %v3645 = vadd.f32 %v3643, 1e-06
  %v3646 = vadd.f32 %v3644, 1e-06
  %v3647 = vrsqrt.pop %v3645
  %v3648 = vrsqrt.pop %v3646
  %v3649 = vmul.f32 %v3633, %v3647
  %v3650 = vmul.f32 %v3634, %v3648
  %v3651 = vlaneseq
  %v3652 = vshrl.u32 %v3651, 7
  %v3653 = vsub.s32 0, %v3652
  %v3654 = vrot.slane %v1453, %v3653
  %v3655 = vmul.f32 %v3649, %v3654
  %v3656 = vmul.f32 %v3650, %v3654
  %v3657 = vpack.c.bf16 %v3656, %v3655
  %v3662 = vunpack.c.l.b16 %v1458
  %v3663 = vunpack.c.l.b16 %v1459
  %v3664 = vunpack.c.l.b16 %v1460
  %v3665 = vunpack.c.l.b16 %v1461
  %v3666 = vpack.c.b16 %v3663, %v3662
  %v3667 = vpack.c.b16 %v3665, %v3664
  %v3671 = vsel %vm207, %v3657, 0
  %3673 = vmatprep.subr.bf16.mxu0 0
  %3674 = vmatpush1.bf16.msra.mxu0 0
  %3675 = vmatprep.subr.bf16.mxu0 0
  %3676 = vmatpush1.bf16.msra.mxu0 0
  %3677 = vmatprep.subr.bf16.mxu0 0
  %3678 = vmatpush1.bf16.msra.mxu0 0
  %3679 = vmatprep.subr.bf16.mxu0 0
  %3680 = vmatpush1.bf16.msra.mxu0 0
  %3681 = vmatprep.subr.bf16.mxu0 0
  %3682 = vmatpush1.bf16.msra.mxu0 0
  %3683 = vmatprep.subr.bf16.mxu0 0
  %3684 = vmatpush1.bf16.msra.mxu0 0
  %3685 = vmatprep.subr.bf16.mxu0 0
  %3686 = vmatpush1.bf16.msra.mxu0 %v3667
  %3687 = vmatprep.subr.bf16.mxu0 0
  %3688 = vmatpush1.bf16.msra.mxu0 %v3666
  %3689 = vmatprep.subr.bf16.mxu0 0
  %3690 = vmatpush2.bf16.msra.mxu0 0
  %3691 = vmatprep.subr.bf16.mxu0 0
  %3692 = vmatpush2.bf16.msra.mxu0 0
  %3693 = vmatprep.subr.bf16.mxu0 0
  %3694 = vmatpush2.bf16.msra.mxu0 0
  %3695 = vmatprep.subr.bf16.mxu0 0
  %3696 = vmatpush2.bf16.msra.mxu0 0
  %3697 = vmatprep.subr.bf16.mxu0 0
  %3698 = vmatpush2.bf16.msra.mxu0 0
  %3699 = vmatprep.subr.bf16.mxu0 0
  %3700 = vmatpush2.bf16.msra.mxu0 0
  %3701 = vmatprep.subr.bf16.mxu0 0
  %3702 = vmatpush2.bf16.msra.mxu0 0
  %3703 = vmatprep.subr.bf16.mxu0 0
  %3704 = vmatpush2.bf16.msra.mxu0 0
  %3705 = vmatprep.mubr.bf16.mxu0 0
  %3706 = vmatmul.mubr.bf16.gmra.mxu0 %v3671
  %v3707 = vpop.f32.mrf.mxu0
  %v3708 = vadd.f32 0.0, %v3707
  %v3709 = vpop.f32.mrf.mxu0
  %v3710 = vpop.f32.mrf.mxu0
  %v3711 = vadd.f32 0.0, %v3710
  %v3712 = vpop.f32.mrf.mxu0
  %3713 = vdwg.mxu0
  %v3714 = vmax.f32 %v3708, 0.0
  %v3715 = vmax.f32 %v3711, 0.0
  %v3716 = vpack.c.bf16 %v3715, %v3714
  %v3725 = vunpack.c.l.b16 %v1478
  %v3726 = vunpack.c.l.b16 %v1479
  %v3727 = vunpack.c.l.b16 %v1480
  %v3728 = vunpack.c.l.b16 %v1481
  %v3729 = vunpack.c.l.b16 %v1482
  %v3730 = vunpack.c.l.b16 %v1483
  %v3731 = vunpack.c.l.b16 %v1484
  %v3732 = vunpack.c.l.b16 %v1485
  %v3733 = vpack.c.b16 %v3726, %v3725
  %v3734 = vpack.c.b16 %v3728, %v3727
  %v3735 = vpack.c.b16 %v3730, %v3729
  %v3736 = vpack.c.b16 %v3732, %v3731
  %v3742 = vsel %vm1380, %v3716, 0
  %3744 = vmatprep.subr.bf16.mxu0 0
  %3745 = vmatpush1.bf16.msra.mxu0 0
  %3746 = vmatprep.subr.bf16.mxu0 0
  %3747 = vmatpush1.bf16.msra.mxu0 0
  %3748 = vmatprep.subr.bf16.mxu0 0
  %3749 = vmatpush1.bf16.msra.mxu0 0
  %3750 = vmatprep.subr.bf16.mxu0 0
  %3751 = vmatpush1.bf16.msra.mxu0 0
  %3752 = vmatprep.subr.bf16.mxu0 0
  %3753 = vmatpush1.bf16.msra.mxu0 %v3736
  %3754 = vmatprep.subr.bf16.mxu0 0
  %3755 = vmatpush1.bf16.msra.mxu0 %v3735
  %3756 = vmatprep.subr.bf16.mxu0 0
  %3757 = vmatpush1.bf16.msra.mxu0 %v3734
  %3758 = vmatprep.subr.bf16.mxu0 0
  %3759 = vmatpush1.bf16.msra.mxu0 %v3733
  %3760 = vmatprep.subr.bf16.mxu0 0
  %3761 = vmatpush2.bf16.msra.mxu0 0
  %3762 = vmatprep.subr.bf16.mxu0 0
  %3763 = vmatpush2.bf16.msra.mxu0 0
  %3764 = vmatprep.subr.bf16.mxu0 0
  %3765 = vmatpush2.bf16.msra.mxu0 0
  %3766 = vmatprep.subr.bf16.mxu0 0
  %3767 = vmatpush2.bf16.msra.mxu0 0
  %3768 = vmatprep.subr.bf16.mxu0 0
  %3769 = vmatpush2.bf16.msra.mxu0 0
  %3770 = vmatprep.subr.bf16.mxu0 0
  %3771 = vmatpush2.bf16.msra.mxu0 0
  %3772 = vmatprep.subr.bf16.mxu0 0
  %3773 = vmatpush2.bf16.msra.mxu0 0
  %3774 = vmatprep.subr.bf16.mxu0 0
  %3775 = vmatpush2.bf16.msra.mxu0 0
  %3776 = vmatprep.mubr.bf16.mxu0 0
  %3777 = vmatmul.mubr.bf16.gmra.mxu0 %v3742
  %v3778 = vpop.f32.mrf.mxu0
  %v3779 = vadd.f32 0.0, %v3778
  %v3780 = vpop.f32.mrf.mxu0
  %v3781 = vpop.f32.mrf.mxu0
  %v3782 = vadd.f32 0.0, %v3781
  %v3783 = vpop.f32.mrf.mxu0
  %3784 = vdwg.mxu0
  %v3785 = vadd.f32 %v3633, %v3779
  %v3786 = vadd.f32 %v3634, %v3782
  %v3787 = vld [vmem:[%s7 + $0x6] sm:$0x1]
  %v3788 = vmul.f32 %v3785, %v3785
  %v3789 = vmul.f32 %v3786, %v3786
  %v3790 = vsel %vm207, %v3788, 0.0
  %3791 = vadd.xlane.f32.xlu0 %v3790
  %v3792 = vpop.xlane.xlu0 %3791
  %v3793 = vsel %vm207, %v3789, 0.0
  %3794 = vadd.xlane.f32.xlu0 %v3793
  %v3795 = vpop.xlane.xlu0 %3794
  %v3796 = vmul.f32 %v3792, %v214
  %v3797 = vmul.f32 %v3795, %v214
  %v3798 = vadd.f32 %v3796, 1e-06
  %v3799 = vadd.f32 %v3797, 1e-06
  %v3800 = vrsqrt.pop %v3798
  %v3801 = vrsqrt.pop %v3799
  %v3802 = vmul.f32 %v3785, %v3800
  %v3803 = vmul.f32 %v3786, %v3801
  %v3804 = vlaneseq
  %v3805 = vshrl.u32 %v3804, 7
  %v3806 = vsub.s32 0, %v3805
  %v3807 = vrot.slane %v3787, %v3806
  %v3808 = vmul.f32 %v3802, %v3807
  %v3809 = vmul.f32 %v3803, %v3807
  %v3810 = vmul.f32 %v3808, 0.17677669
  %v3811 = vmul.f32 %v3809, 0.17677669
  %v3812 = vpack.c.bf16 %v3811, %v3810
  %v3814 = vsel %vm207, %v3812, 0
  %v3817 = vsel %vm207, %v118, 0
  %v3820 = vsel %vm207, %v119, 0
  %v3823 = vsel %vm207, %v120, 0
  %v3826 = vsel %vm207, %v121, 0
  %v3829 = vsel %vm207, %v122, 0
  %v3832 = vsel %vm207, %v123, 0
  %v3835 = vsel %vm207, %v124, 0
  %v3838 = vsel %vm207, %v125, 0
  %3840 = vmatprep.subr.bf16.mxu0 0
  %3841 = vmatpush1.bf16.xpose.msra.mxu0 %v3838
  %3842 = vmatprep.subr.bf16.mxu0 0
  %3843 = vmatpush1.bf16.xpose.msra.mxu0 %v3835
  %3844 = vmatprep.subr.bf16.mxu0 0
  %3845 = vmatpush1.bf16.xpose.msra.mxu0 %v3832
  %3846 = vmatprep.subr.bf16.mxu0 0
  %3847 = vmatpush1.bf16.xpose.msra.mxu0 %v3829
  %3848 = vmatprep.subr.bf16.mxu0 0
  %3849 = vmatpush1.bf16.xpose.msra.mxu0 %v3826
  %3850 = vmatprep.subr.bf16.mxu0 0
  %3851 = vmatpush1.bf16.xpose.msra.mxu0 %v3823
  %3852 = vmatprep.subr.bf16.mxu0 0
  %3853 = vmatpush1.bf16.xpose.msra.mxu0 %v3820
  %3854 = vmatprep.subr.bf16.mxu0 0
  %3855 = vmatpush1.bf16.xpose.msra.mxu0 %v3817
  %3856 = vmatprep.subr.bf16.mxu0 0
  %3857 = vmatpush2.bf16.xpose.msra.mxu0 0
  %3858 = vmatprep.subr.bf16.mxu0 0
  %3859 = vmatpush2.bf16.xpose.msra.mxu0 0
  %3860 = vmatprep.subr.bf16.mxu0 0
  %3861 = vmatpush2.bf16.xpose.msra.mxu0 0
  %3862 = vmatprep.subr.bf16.mxu0 0
  %3863 = vmatpush2.bf16.xpose.msra.mxu0 0
  %3864 = vmatprep.subr.bf16.mxu0 0
  %3865 = vmatpush2.bf16.xpose.msra.mxu0 0
  %3866 = vmatprep.subr.bf16.mxu0 0
  %3867 = vmatpush2.bf16.xpose.msra.mxu0 0
  %3868 = vmatprep.subr.bf16.mxu0 0
  %3869 = vmatpush2.bf16.xpose.msra.mxu0 0
  %3870 = vmatprep.subr.bf16.mxu0 0
  %3871 = vmatpush2.bf16.xpose.msra.mxu0 0
  %3872 = vmatprep.mubr.bf16.mxu0 0
  %3873 = vmatmul.mubr.bf16.gmra.mxu0 %v3814
  %v3874 = vpop.f32.mrf.mxu0
  %v3875 = vadd.f32 0.0, %v3874
  %v3876 = vpop.f32.mrf.mxu0
  %v3877 = vpop.f32.mrf.mxu0
  %v3878 = vadd.f32 0.0, %v3877
  %v3879 = vpop.f32.mrf.mxu0
  %3880 = vdwg.mxu0
  %3881 = vst [vmem:[%s8] sm:$0xff] %v3875
  %3882 = vst [vmem:[%s8 + $0x8] sm:$0xff] %v3878
  // Predicated region
  $region34: #{scoring_model_forward.1} parent=0 // pred_check
    _
  $region35: #{scoring_model_forward.1} parent=0 // pred_check_branch
    %3884 = sbr.rel (0) target = $region37
  $region36: #{scoring_model_forward.1} parent=0 // pred_region
    _
  $region37: #{scoring_model_forward.1} parent=0 // pred_fallthru
    _
  // Predicated region
  $region38: #{scoring_model_forward.1} parent=0 // pred_check
    _
  $region39: #{scoring_model_forward.1} parent=0 // pred_check_branch
    %3886 = sbr.rel (0) target = $region41
  $region40: #{scoring_model_forward.1} parent=0 // pred_region
    _
  $region41: #{scoring_model_forward.1} parent=0 // pred_fallthru
    _

</llo_original>
